<compile_context>
chip_gen: v7x
topology: tpu7x:2x2x1
jax: 0.10.0
libtpu: 0.0.40
codegen_flags: <defaults>
</compile_context>

<pallas_src>
import functools
import math

import jax
import jax.numpy as jnp
from jax import lax
from jax.experimental import pallas as pl
from jax.experimental.pallas import tpu as pltpu

_EPS = 1e-5
_VMEM_LIMIT = 32 * 1024 * 1024


def _cparams(n_grid_axes=1):
    return pltpu.CompilerParams(
        dimension_semantics=("parallel",) * n_grid_axes,
        vmem_limit_bytes=_VMEM_LIMIT)


def _row_block(n_rows):
    # Largest row tile that divides n_rows and respects the (8, 128) layout
    # rule on the second-to-last dim (falls back to the full extent).
    for cand in (512, 256, 128, 64, 32, 16, 8):
        if n_rows % cand == 0:
            return cand
    return n_rows


def _layernorm(x, g, b):
    mu = jnp.mean(x, axis=-1, keepdims=True)
    var = jnp.mean(jnp.square(x - mu), axis=-1, keepdims=True)
    return (x - mu) * lax.rsqrt(var + _EPS) * g + b


# ----------------------------- kernels --------------------------------------

def _ln_qkv_kernel(x_ref, g_ref, beta_ref,
                   wq_ref, bq_ref, wk_ref, bk_ref, wv_ref, bv_ref,
                   q_ref, k_ref, v_ref, *, q_scale):
    """LayerNorm + fused Q/K/V projections (self-attention source)."""
    x = x_ref[...].astype(jnp.float32)
    xn = _layernorm(x, g_ref[...], beta_ref[...])
    q = jnp.dot(xn, wq_ref[...], preferred_element_type=jnp.float32) + bq_ref[...]
    q_ref[...] = (q * q_scale).astype(q_ref.dtype)      # 1/sqrt(d) folded once
    k = jnp.dot(xn, wk_ref[...], preferred_element_type=jnp.float32) + bk_ref[...]
    k_ref[...] = k.astype(k_ref.dtype)
    v = jnp.dot(xn, wv_ref[...], preferred_element_type=jnp.float32) + bv_ref[...]
    v_ref[...] = v.astype(v_ref.dtype)


def _ln_linear_kernel(x_ref, g_ref, beta_ref, w_ref, b_ref, o_ref, *, out_scale):
    """LayerNorm + single projection (cross-attention query)."""
    x = x_ref[...].astype(jnp.float32)
    xn = _layernorm(x, g_ref[...], beta_ref[...])
    y = jnp.dot(xn, w_ref[...], preferred_element_type=jnp.float32) + b_ref[...]
    o_ref[...] = (y * out_scale).astype(o_ref.dtype)


def _linear_kernel(x_ref, w_ref, b_ref, o_ref):
    y = jnp.dot(x_ref[...], w_ref[...], preferred_element_type=jnp.float32) + b_ref[...]
    o_ref[...] = y.astype(o_ref.dtype)


def _linear_residual_kernel(x_ref, res_ref, w_ref, b_ref, o_ref):
    """Output projection fused with the residual add."""
    y = jnp.dot(x_ref[...], w_ref[...], preferred_element_type=jnp.float32) + b_ref[...]
    o_ref[...] = (y + res_ref[...].astype(jnp.float32)).astype(o_ref.dtype)


def _attention_body(q_ref, k_ref, v_ref, o_ref, mask_ref=None):
    """Scaled-dot-product attention; all heads batched in one dot_general."""
    q = q_ref[0].astype(jnp.float32)          # (heads, Sq, d) -- already scaled
    k = k_ref[0].astype(jnp.float32)          # (heads, Sk, d)
    v = v_ref[0].astype(jnp.float32)          # (heads, Sk, d)
    # Contract on d for both operands: no explicit K transpose in-kernel.
    s = jnp.einsum("hqd,hkd->hqk", q, k, preferred_element_type=jnp.float32)
    if mask_ref is not None:
        s = s + mask_ref[...][None, :, :]
    # TODO(synk): attn_bias (None in this configuration) would be added here.
    m = jnp.max(s, axis=-1, keepdims=True)
    e = jnp.exp(s - m)
    l = jnp.sum(e, axis=-1, keepdims=True)
    p = e * pl.reciprocal(l, approx=True)      # EUP reciprocal, no per-elem div
    # TODO(synk): attention dropout omitted (rate = 0.0 / eval path).
    ctx = jnp.einsum("hqk,hkd->hqd", p, v, preferred_element_type=jnp.float32)
    o_ref[0] = ctx.astype(o_ref.dtype)


def _attn_kernel(q_ref, k_ref, v_ref, o_ref):
    _attention_body(q_ref, k_ref, v_ref, o_ref)


def _attn_masked_kernel(q_ref, k_ref, v_ref, mask_ref, o_ref):
    _attention_body(q_ref, k_ref, v_ref, o_ref, mask_ref)


def _ffn_kernel(x_ref, g_ref, beta_ref, w1_ref, b1_ref, w2_ref, b2_ref, o_ref):
    """LayerNorm + Linear + GELU + Linear + residual, fused."""
    x = x_ref[...].astype(jnp.float32)
    xn = _layernorm(x, g_ref[...], beta_ref[...])
    h = jnp.dot(xn, w1_ref[...], preferred_element_type=jnp.float32) + b1_ref[...]
    # TODO(synk): tanh-approx GELU (nn.GELU default is exact erf; diff < 1e-3).
    c = 0.7978845608028654  # sqrt(2/pi)
    h = 0.5 * h * (1.0 + jnp.tanh(c * (h + 0.044715 * h * h * h)))
    y = jnp.dot(h, w2_ref[...], preferred_element_type=jnp.float32) + b2_ref[...]
    o_ref[...] = (x + y).astype(o_ref.dtype)


# --------------------------- pallas_call wrappers ----------------------------

def _ln_qkv(x_rows, g, beta, wq, bq, wk, bk, wv, bv, *, q_scale):
    n, h = x_rows.shape
    rt = _row_block(n)
    row = pl.BlockSpec((rt, h), lambda r: (r, 0))
    mat = pl.BlockSpec((h, h), lambda r: (0, 0))
    vec = pl.BlockSpec((1, h), lambda r: (0, 0))
    out = jax.ShapeDtypeStruct((n, h), x_rows.dtype)
    return pl.pallas_call(
        functools.partial(_ln_qkv_kernel, q_scale=q_scale),
        grid=(n // rt,),
        in_specs=[row, vec, vec, mat, vec, mat, vec, mat, vec],
        out_specs=(row, row, row),
        out_shape=(out, out, out),
        compiler_params=_cparams(),
    )(x_rows, g, beta, wq, bq, wk, bk, wv, bv)


def _ln_linear(x_rows, g, beta, w, b, *, out_scale=1.0):
    n, h = x_rows.shape
    o = w.shape[1]
    rt = _row_block(n)
    return pl.pallas_call(
        functools.partial(_ln_linear_kernel, out_scale=out_scale),
        grid=(n // rt,),
        in_specs=[pl.BlockSpec((rt, h), lambda r: (r, 0)),
                  pl.BlockSpec((1, h), lambda r: (0, 0)),
                  pl.BlockSpec((1, h), lambda r: (0, 0)),
                  pl.BlockSpec((h, o), lambda r: (0, 0)),
                  pl.BlockSpec((1, o), lambda r: (0, 0))],
        out_specs=pl.BlockSpec((rt, o), lambda r: (r, 0)),
        out_shape=jax.ShapeDtypeStruct((n, o), x_rows.dtype),
        compiler_params=_cparams(),
    )(x_rows, g, beta, w, b)


def _linear(x_rows, w, b):
    n, h = x_rows.shape
    o = w.shape[1]
    rt = _row_block(n)
    return pl.pallas_call(
        _linear_kernel,
        grid=(n // rt,),
        in_specs=[pl.BlockSpec((rt, h), lambda r: (r, 0)),
                  pl.BlockSpec((h, o), lambda r: (0, 0)),
                  pl.BlockSpec((1, o), lambda r: (0, 0))],
        out_specs=pl.BlockSpec((rt, o), lambda r: (r, 0)),
        out_shape=jax.ShapeDtypeStruct((n, o), x_rows.dtype),
        compiler_params=_cparams(),
    )(x_rows, w, b)


def _linear_residual(x_rows, res_rows, w, b):
    n, h = x_rows.shape
    o = w.shape[1]
    rt = _row_block(n)
    row_in = pl.BlockSpec((rt, h), lambda r: (r, 0))
    row_out = pl.BlockSpec((rt, o), lambda r: (r, 0))
    return pl.pallas_call(
        _linear_residual_kernel,
        grid=(n // rt,),
        in_specs=[row_in, row_out,
                  pl.BlockSpec((h, o), lambda r: (0, 0)),
                  pl.BlockSpec((1, o), lambda r: (0, 0))],
        out_specs=row_out,
        out_shape=jax.ShapeDtypeStruct((n, o), x_rows.dtype),
        compiler_params=_cparams(),
    )(x_rows, res_rows, w, b)


def _heads_attention(q, k, v, *, head_size, mask=None):
    """q: (B, Sq, H); k, v: (B, Sk, H); optional additive mask (Sq, Sk)."""
    b, sq, hdim = q.shape
    sk = k.shape[1]
    d = hdim // head_size
    # Head split is wrapper-side layout plumbing (no in-kernel lane slicing).
    qh = q.reshape(b, sq, head_size, d).transpose(0, 2, 1, 3)
    kh = k.reshape(b, sk, head_size, d).transpose(0, 2, 1, 3)
    vh = v.reshape(b, sk, head_size, d).transpose(0, 2, 1, 3)

    q_spec = pl.BlockSpec((1, head_size, sq, d), lambda i: (i, 0, 0, 0))
    kv_spec = pl.BlockSpec((1, head_size, sk, d), lambda i: (i, 0, 0, 0))
    in_specs = [q_spec, kv_spec, kv_spec]
    args = [qh, kh, vh]
    if mask is not None:
        in_specs.append(pl.BlockSpec((sq, sk), lambda i: (0, 0)))
        args.append(mask)
        kernel = _attn_masked_kernel
    else:
        kernel = _attn_kernel

    ctx = pl.pallas_call(
        kernel,
        grid=(b,),
        in_specs=in_specs,
        out_specs=q_spec,
        out_shape=jax.ShapeDtypeStruct((b, head_size, sq, d), q.dtype),
        compiler_params=_cparams(),
    )(*args)
    # Merge heads back onto the hidden (lane) axis.
    return ctx.transpose(0, 2, 1, 3).reshape(b, sq, hdim)


def _ffn(x_rows, g, beta, w1, b1, w2, b2):
    n, h = x_rows.shape
    f = w1.shape[1]
    rt = _row_block(n)
    return pl.pallas_call(
        _ffn_kernel,
        grid=(n // rt,),
        in_specs=[pl.BlockSpec((rt, h), lambda r: (r, 0)),
                  pl.BlockSpec((1, h), lambda r: (0, 0)),
                  pl.BlockSpec((1, h), lambda r: (0, 0)),
                  pl.BlockSpec((h, f), lambda r: (0, 0)),
                  pl.BlockSpec((1, f), lambda r: (0, 0)),
                  pl.BlockSpec((f, h), lambda r: (0, 0)),
                  pl.BlockSpec((1, h), lambda r: (0, 0))],
        out_specs=pl.BlockSpec((rt, h), lambda r: (r, 0)),
        out_shape=jax.ShapeDtypeStruct((n, h), x_rows.dtype),
        compiler_params=_cparams(),
    )(x_rows, g, beta, w1, b1, w2, b2)


# ----------------------------- DecoderLayer ----------------------------------

def decoder_layer(x, memk, memv, tgt_padding_mask, params, *, head_size):
    """Forward pass of DecoderLayer (eval / valid path: dropouts are identity)."""
    b, sq, hdim = x.shape
    sm = memk.shape[1]
    d = hdim // head_size
    scale = d ** (-0.5)

    x_rows = x.reshape(b * sq, hdim)

    # --- masked self-attention sub-layer (pre-LN, residual) ------------------
    sa = params["self_attn"]
    q, kk, vv = _ln_qkv(x_rows, params["ln1_g"], params["ln1_b"],
                        sa["wq"], sa["bq"], sa["wk"], sa["bk"], sa["wv"], sa["bv"],
                        q_scale=scale)
    ctx = _heads_attention(q.reshape(b, sq, hdim), kk.reshape(b, sq, hdim),
                           vv.reshape(b, sq, hdim),
                           head_size=head_size, mask=tgt_padding_mask)
    # TODO(synk): self_attention_dropout omitted (rate = 0.0 / eval path).
    x_rows = _linear_residual(ctx.reshape(b * sq, hdim), x_rows, sa["wo"], sa["bo"])

    # --- memory (cross) attention sub-layer (pre-LN on query only) -----------
    ma = params["mem_attn"]
    q2 = _ln_linear(x_rows, params["ln2_g"], params["ln2_b"],
                    ma["wq"], ma["bq"], out_scale=scale)
    k2 = _linear(memk.reshape(b * sm, hdim), ma["wk"], ma["bk"])
    v2 = _linear(memv.reshape(b * sm, hdim), ma["wv"], ma["bv"])
    ctx2 = _heads_attention(q2.reshape(b, sq, hdim), k2.reshape(b, sm, hdim),
                            v2.reshape(b, sm, hdim),
                            head_size=head_size, mask=None)
    # TODO(synk): self_mem_attention_dropout omitted (rate = 0.0 / eval path).
    x_rows = _linear_residual(ctx2.reshape(b * sq, hdim), x_rows, ma["wo"], ma["bo"])

    # --- feed-forward sub-layer (pre-LN, residual fused in kernel) ------------
    f = params["ffn"]
    x_rows = _ffn(x_rows, params["ln3_g"], params["ln3_b"],
                  f["w1"], f["b1"], f["w2"], f["b2"])
    # TODO(synk): ffn_dropout omitted (rate = 0.0 / eval path).

    return x_rows.reshape(b, sq, hdim)


# --------------------------- pure-JAX reference ------------------------------

def _mha_ref(q, k, v, p, *, head_size, mask=None):
    b, sq, hdim = q.shape
    d = hdim // head_size
    scale = d ** (-0.5)

    def split(t, s):
        return t.reshape(b, s, head_size, d).transpose(0, 2, 1, 3)

    Q = split(q @ p["wq"] + p["bq"], sq) * scale
    K = split(k @ p["wk"] + p["bk"], k.shape[1])
    V = split(v @ p["wv"] + p["bv"], v.shape[1])
    s = jnp.einsum("bhqd,bhkd->bhqk", Q, K)
    if mask is not None:
        s = s + mask
    pr = jax.nn.softmax(s, axis=-1)
    ctx = jnp.einsum("bhqk,bhkd->bhqd", pr, V)
    ctx = ctx.transpose(0, 2, 1, 3).reshape(b, sq, hdim)
    return ctx @ p["wo"] + p["bo"]


def _decoder_layer_ref(x, memk, memv, tgt_padding_mask, params, *, head_size):
    y = _layernorm(x, params["ln1_g"], params["ln1_b"])
    y = _mha_ref(y, y, y, params["self_attn"], head_size=head_size,
                 mask=tgt_padding_mask)
    x = x + y
    y = _layernorm(x, params["ln2_g"], params["ln2_b"])
    y = _mha_ref(y, memk, memv, params["mem_attn"], head_size=head_size)
    x = x + y
    y = _layernorm(x, params["ln3_g"], params["ln3_b"])
    f = params["ffn"]
    y = jax.nn.gelu(y @ f["w1"] + f["b1"], approximate=False)
    y = y @ f["w2"] + f["b2"]
    return x + y


# ------------------------------- params / demo -------------------------------

def _init_params(key, hidden, ffn_size):
    keys = iter(jax.random.split(key, 32))

    def linear(fan_in, fan_out):
        bound = 1.0 / math.sqrt(fan_in)
        w = jax.random.uniform(next(keys), (fan_in, fan_out), jnp.float32, -bound, bound)
        b = jax.random.uniform(next(keys), (1, fan_out), jnp.float32, -bound, bound)
        return w, b

    def attn_params():
        p = {}
        for name in ("q", "k", "v", "o"):
            w, b = linear(hidden, hidden)
            p["w" + name] = w            # stored as [in, out] (torch weight.T)
            p["b" + name] = b
        return p

    def ln_params():
        # PyTorch inits LN to (1, 0); perturb slightly so the affine is exercised.
        g = 1.0 + 0.05 * jax.random.normal(next(keys), (1, hidden), jnp.float32)
        b = 0.05 * jax.random.normal(next(keys), (1, hidden), jnp.float32)
        return g, b

    ln1_g, ln1_b = ln_params()
    self_attn = attn_params()
    ln2_g, ln2_b = ln_params()
    mem_attn = attn_params()
    ln3_g, ln3_b = ln_params()
    w1, b1 = linear(hidden, ffn_size)
    w2, b2 = linear(ffn_size, hidden)

    return {
        "ln1_g": ln1_g, "ln1_b": ln1_b, "self_attn": self_attn,
        "ln2_g": ln2_g, "ln2_b": ln2_b, "mem_attn": mem_attn,
        "ln3_g": ln3_g, "ln3_b": ln3_b,
        "ffn": {"w1": w1, "b1": b1, "w2": w2, "b2": b2},
    }


if __name__ == "__main__":
    B, S, H = 2, 8, 32          # batch, seq (tgt & memory), hidden
    FFN = 64                    # ffn_size
    HEADS = 4                   # -> att_size d = 8
    # dropout_rate = attention_dropout_rate = 0.0 (dropouts are identity)

    root = jax.random.PRNGKey(0)
    kx, kk, kv, kp = jax.random.split(root, 4)
    x = jax.random.normal(kx, (B, S, H), jnp.float32)
    memk = jax.random.normal(kk, (B, S, H), jnp.float32)
    memv = jax.random.normal(kv, (B, S, H), jnp.float32)
    params = _init_params(kp, H, FFN)

    # Subsequent (causal) mask passed as tgt_padding_mask: 0 where attended,
    # -1e9 where masked; broadcast over batch and heads like the torch module.
    row = lax.broadcasted_iota(jnp.int32, (S, S), 0)
    col = lax.broadcasted_iota(jnp.int32, (S, S), 1)
    tgt_mask = jnp.where(col <= row, 0.0, -1e9).astype(jnp.float32)

    fwd = jax.jit(functools.partial(decoder_layer, head_size=HEADS))
    out = jax.block_until_ready(fwd(x, memk, memv, tgt_mask, params))

    ref = _decoder_layer_ref(x, memk, memv, tgt_mask, params, head_size=HEADS)
    assert out.shape == (B, S, H)
    max_err = float(jnp.max(jnp.abs(out - ref)))
    # Tolerance covers the EUP approx-reciprocal softmax and tanh-approx GELU.
    assert jnp.allclose(out, ref, atol=1e-2, rtol=1e-2), (
        f"mismatch vs reference (max abs err {max_err:.3e})")
    print("KERNEL_OK")
</pallas_src>

<mosaic_0001>
module attributes {stable_mosaic.version = 11 : i64} {
  func.func @_ln_qkv_kernel(%arg0: i32, %arg1: memref<16x32xf32, #tpu.memory_space<vmem>>, %arg2: memref<1x32xf32, #tpu.memory_space<vmem>>, %arg3: memref<1x32xf32, #tpu.memory_space<vmem>>, %arg4: memref<32x32xf32, #tpu.memory_space<vmem>>, %arg5: memref<1x32xf32, #tpu.memory_space<vmem>>, %arg6: memref<32x32xf32, #tpu.memory_space<vmem>>, %arg7: memref<1x32xf32, #tpu.memory_space<vmem>>, %arg8: memref<32x32xf32, #tpu.memory_space<vmem>>, %arg9: memref<1x32xf32, #tpu.memory_space<vmem>>, %arg10: memref<16x32xf32, #tpu.memory_space<vmem>>, %arg11: memref<16x32xf32, #tpu.memory_space<vmem>>, %arg12: memref<16x32xf32, #tpu.memory_space<vmem>>) attributes {dimension_semantics = [#tpu.dimension_semantics<parallel>], iteration_bounds = array<i64: 1>, scalar_prefetch = 0 : i64, scratch_operands = 0 : i64, tpu.core_type = #tpu.core_type<tc>, window_params = [{transform_indices = @transform_0, window_bounds = array<i64: 16, 32>}, {pipeline_mode = #tpu.pipeline_mode<synchronous>, transform_indices = @transform_1, window_bounds = array<i64: 1, 32>}, {pipeline_mode = #tpu.pipeline_mode<synchronous>, transform_indices = @transform_2, window_bounds = array<i64: 1, 32>}, {pipeline_mode = #tpu.pipeline_mode<synchronous>, transform_indices = @transform_3, window_bounds = array<i64: 32, 32>}, {pipeline_mode = #tpu.pipeline_mode<synchronous>, transform_indices = @transform_4, window_bounds = array<i64: 1, 32>}, {pipeline_mode = #tpu.pipeline_mode<synchronous>, transform_indices = @transform_5, window_bounds = array<i64: 32, 32>}, {pipeline_mode = #tpu.pipeline_mode<synchronous>, transform_indices = @transform_6, window_bounds = array<i64: 1, 32>}, {pipeline_mode = #tpu.pipeline_mode<synchronous>, transform_indices = @transform_7, window_bounds = array<i64: 32, 32>}, {pipeline_mode = #tpu.pipeline_mode<synchronous>, transform_indices = @transform_8, window_bounds = array<i64: 1, 32>}, {transform_indices = @transform_9, window_bounds = array<i64: 16, 32>}, {transform_indices = @transform_10, window_bounds = array<i64: 16, 32>}, {transform_indices = @transform_11, window_bounds = array<i64: 16, 32>}]} {
    %c0 = arith.constant 0 : index
    %c0_0 = arith.constant 0 : index
    %0 = vector.load %arg1[%c0, %c0_0] : memref<16x32xf32, #tpu.memory_space<vmem>>, vector<16x32xf32>
    %c0_1 = arith.constant 0 : index
    %c0_2 = arith.constant 0 : index
    %1 = vector.load %arg2[%c0_1, %c0_2] : memref<1x32xf32, #tpu.memory_space<vmem>>, vector<1x32xf32>
    %c0_3 = arith.constant 0 : index
    %c0_4 = arith.constant 0 : index
    %2 = vector.load %arg3[%c0_3, %c0_4] : memref<1x32xf32, #tpu.memory_space<vmem>>, vector<1x32xf32>
    %cst = arith.constant dense<0.000000e+00> : vector<16xf32>
    %3 = vector.multi_reduction <add>, %0, %cst [1] : vector<16x32xf32> to vector<16xf32>
    %4 = vector.shape_cast %3 : vector<16xf32> to vector<16x1xf32>
    %cst_5 = arith.constant 3.200000e+01 : f32
    %5 = vector.broadcast %cst_5 : f32 to vector<16x1xf32>
    %6 = arith.divf %4, %5 : vector<16x1xf32>
    %7 = vector.broadcast %6 : vector<16x1xf32> to vector<16x32xf32>
    %8 = arith.subf %0, %7 : vector<16x32xf32>
    %9 = arith.mulf %8, %8 : vector<16x32xf32>
    %cst_6 = arith.constant dense<0.000000e+00> : vector<16xf32>
    %10 = vector.multi_reduction <add>, %9, %cst_6 [1] : vector<16x32xf32> to vector<16xf32>
    %11 = vector.shape_cast %10 : vector<16xf32> to vector<16x1xf32>
    %cst_7 = arith.constant 3.200000e+01 : f32
    %12 = vector.broadcast %cst_7 : f32 to vector<16x1xf32>
    %13 = arith.divf %11, %12 : vector<16x1xf32>
    %14 = vector.broadcast %6 : vector<16x1xf32> to vector<16x32xf32>
    %15 = arith.subf %0, %14 : vector<16x32xf32>
    %cst_8 = arith.constant 9.99999974E-6 : f32
    %16 = vector.broadcast %cst_8 : f32 to vector<16x1xf32>
    %17 = arith.addf %13, %16 : vector<16x1xf32>
    %18 = math.rsqrt %17 : vector<16x1xf32>
    %19 = vector.broadcast %18 : vector<16x1xf32> to vector<16x32xf32>
    %20 = arith.mulf %15, %19 : vector<16x32xf32>
    %21 = vector.broadcast %1 : vector<1x32xf32> to vector<16x32xf32>
    %22 = arith.mulf %20, %21 : vector<16x32xf32>
    %23 = vector.broadcast %2 : vector<1x32xf32> to vector<16x32xf32>
    %24 = arith.addf %22, %23 : vector<16x32xf32>
    %c0_9 = arith.constant 0 : index
    %c0_10 = arith.constant 0 : index
    %25 = vector.load %arg4[%c0_9, %c0_10] : memref<32x32xf32, #tpu.memory_space<vmem>>, vector<32x32xf32>
    %cst_11 = arith.constant dense<0.000000e+00> : vector<16x32xf32>
    %26 = tpu.matmul %24, %25, %cst_11 {dimension_numbers = #tpu.dot_dimension_numbers<[1], [0], [0], [1], [0, 0, 1, 1], [], []>} : vector<16x32xf32>, vector<32x32xf32>, vector<16x32xf32> -> vector<16x32xf32>
    %c0_12 = arith.constant 0 : index
    %c0_13 = arith.constant 0 : index
    %27 = vector.load %arg5[%c0_12, %c0_13] : memref<1x32xf32, #tpu.memory_space<vmem>>, vector<1x32xf32>
    %28 = vector.broadcast %27 : vector<1x32xf32> to vector<16x32xf32>
    %29 = arith.addf %26, %28 : vector<16x32xf32>
    %cst_14 = arith.constant 0.353553385 : f32
    %30 = vector.broadcast %cst_14 : f32 to vector<16x32xf32>
    %31 = arith.mulf %29, %30 : vector<16x32xf32>
    %c0_15 = arith.constant 0 : index
    %c0_16 = arith.constant 0 : index
    %32 = vector.load %arg10[%c0_15, %c0_16] : memref<16x32xf32, #tpu.memory_space<vmem>>, vector<16x32xf32>
    tpu.vector_store %arg10[%c0_15, %c0_16], %31 {strides = array<i32>} : memref<16x32xf32, #tpu.memory_space<vmem>>, vector<16x32xf32>,
    %c0_17 = arith.constant 0 : index
    %c0_18 = arith.constant 0 : index
    %33 = vector.load %arg6[%c0_17, %c0_18] : memref<32x32xf32, #tpu.memory_space<vmem>>, vector<32x32xf32>
    %cst_19 = arith.constant dense<0.000000e+00> : vector<16x32xf32>
    %34 = tpu.matmul %24, %33, %cst_19 {dimension_numbers = #tpu.dot_dimension_numbers<[1], [0], [0], [1], [0, 0, 1, 1], [], []>} : vector<16x32xf32>, vector<32x32xf32>, vector<16x32xf32> -> vector<16x32xf32>
    %c0_20 = arith.constant 0 : index
    %c0_21 = arith.constant 0 : index
    %35 = vector.load %arg7[%c0_20, %c0_21] : memref<1x32xf32, #tpu.memory_space<vmem>>, vector<1x32xf32>
    %36 = vector.broadcast %35 : vector<1x32xf32> to vector<16x32xf32>
    %37 = arith.addf %34, %36 : vector<16x32xf32>
    %c0_22 = arith.constant 0 : index
    %c0_23 = arith.constant 0 : index
    %38 = vector.load %arg11[%c0_22, %c0_23] : memref<16x32xf32, #tpu.memory_space<vmem>>, vector<16x32xf32>
    tpu.vector_store %arg11[%c0_22, %c0_23], %37 {strides = array<i32>} : memref<16x32xf32, #tpu.memory_space<vmem>>, vector<16x32xf32>,
    %c0_24 = arith.constant 0 : index
    %c0_25 = arith.constant 0 : index
    %39 = vector.load %arg8[%c0_24, %c0_25] : memref<32x32xf32, #tpu.memory_space<vmem>>, vector<32x32xf32>
    %cst_26 = arith.constant dense<0.000000e+00> : vector<16x32xf32>
    %40 = tpu.matmul %24, %39, %cst_26 {dimension_numbers = #tpu.dot_dimension_numbers<[1], [0], [0], [1], [0, 0, 1, 1], [], []>} : vector<16x32xf32>, vector<32x32xf32>, vector<16x32xf32> -> vector<16x32xf32>
    %c0_27 = arith.constant 0 : index
    %c0_28 = arith.constant 0 : index
    %41 = vector.load %arg9[%c0_27, %c0_28] : memref<1x32xf32, #tpu.memory_space<vmem>>, vector<1x32xf32>
    %42 = vector.broadcast %41 : vector<1x32xf32> to vector<16x32xf32>
    %43 = arith.addf %40, %42 : vector<16x32xf32>
    %c0_29 = arith.constant 0 : index
    %c0_30 = arith.constant 0 : index
    %44 = vector.load %arg12[%c0_29, %c0_30] : memref<16x32xf32, #tpu.memory_space<vmem>>, vector<16x32xf32>
    tpu.vector_store %arg12[%c0_29, %c0_30], %43 {strides = array<i32>} : memref<16x32xf32, #tpu.memory_space<vmem>>, vector<16x32xf32>,
    return
  }
  func.func @transform_0(%arg0: i32) -> (i32, i32) {
    %c0_i32 = arith.constant 0 : i32
    %c0_i32_0 = arith.constant 0 : i32
    return %arg0, %c0_i32 : i32, i32
  }
  func.func @transform_1(%arg0: i32) -> (i32, i32) {
    %c0_i32 = arith.constant 0 : i32
    %c0_i32_0 = arith.constant 0 : i32
    %c0_i32_1 = arith.constant 0 : i32
    return %c0_i32, %c0_i32_0 : i32, i32
  }
  func.func @transform_2(%arg0: i32) -> (i32, i32) {
    %c0_i32 = arith.constant 0 : i32
    %c0_i32_0 = arith.constant 0 : i32
    %c0_i32_1 = arith.constant 0 : i32
    return %c0_i32, %c0_i32_0 : i32, i32
  }
  func.func @transform_3(%arg0: i32) -> (i32, i32) {
    %c0_i32 = arith.constant 0 : i32
    %c0_i32_0 = arith.constant 0 : i32
    %c0_i32_1 = arith.constant 0 : i32
    return %c0_i32, %c0_i32_0 : i32, i32
  }
  func.func @transform_4(%arg0: i32) -> (i32, i32) {
    %c0_i32 = arith.constant 0 : i32
    %c0_i32_0 = arith.constant 0 : i32
    %c0_i32_1 = arith.constant 0 : i32
    return %c0_i32, %c0_i32_0 : i32, i32
  }
  func.func @transform_5(%arg0: i32) -> (i32, i32) {
    %c0_i32 = arith.constant 0 : i32
    %c0_i32_0 = arith.constant 0 : i32
    %c0_i32_1 = arith.constant 0 : i32
    return %c0_i32, %c0_i32_0 : i32, i32
  }
  func.func @transform_6(%arg0: i32) -> (i32, i32) {
    %c0_i32 = arith.constant 0 : i32
    %c0_i32_0 = arith.constant 0 : i32
    %c0_i32_1 = arith.constant 0 : i32
    return %c0_i32, %c0_i32_0 : i32, i32
  }
  func.func @transform_7(%arg0: i32) -> (i32, i32) {
    %c0_i32 = arith.constant 0 : i32
    %c0_i32_0 = arith.constant 0 : i32
    %c0_i32_1 = arith.constant 0 : i32
    return %c0_i32, %c0_i32_0 : i32, i32
  }
  func.func @transform_8(%arg0: i32) -> (i32, i32) {
    %c0_i32 = arith.constant 0 : i32
    %c0_i32_0 = arith.constant 0 : i32
    %c0_i32_1 = arith.constant 0 : i32
    return %c0_i32, %c0_i32_0 : i32, i32
  }
  func.func @transform_9(%arg0: i32) -> (i32, i32) {
    %c0_i32 = arith.constant 0 : i32
    %c0_i32_0 = arith.constant 0 : i32
    return %arg0, %c0_i32 : i32, i32
  }
  func.func @transform_10(%arg0: i32) -> (i32, i32) {
    %c0_i32 = arith.constant 0 : i32
    %c0_i32_0 = arith.constant 0 : i32
    return %arg0, %c0_i32 : i32, i32
  }
  func.func @transform_11(%arg0: i32) -> (i32, i32) {
    %c0_i32 = arith.constant 0 : i32
    %c0_i32_0 = arith.constant 0 : i32
    return %arg0, %c0_i32 : i32, i32
  }
}

module attributes {stable_mosaic.version = 11 : i64} {
  func.func @_ln_linear_kernel(%arg0: i32, %arg1: memref<16x32xf32, #tpu.memory_space<vmem>>, %arg2: memref<1x32xf32, #tpu.memory_space<vmem>>, %arg3: memref<1x32xf32, #tpu.memory_space<vmem>>, %arg4: memref<32x32xf32, #tpu.memory_space<vmem>>, %arg5: memref<1x32xf32, #tpu.memory_space<vmem>>, %arg6: memref<16x32xf32, #tpu.memory_space<vmem>>) attributes {dimension_semantics = [#tpu.dimension_semantics<parallel>], iteration_bounds = array<i64: 1>, scalar_prefetch = 0 : i64, scratch_operands = 0 : i64, tpu.core_type = #tpu.core_type<tc>, window_params = [{transform_indices = @transform_0, window_bounds = array<i64: 16, 32>}, {pipeline_mode = #tpu.pipeline_mode<synchronous>, transform_indices = @transform_1, window_bounds = array<i64: 1, 32>}, {pipeline_mode = #tpu.pipeline_mode<synchronous>, transform_indices = @transform_2, window_bounds = array<i64: 1, 32>}, {pipeline_mode = #tpu.pipeline_mode<synchronous>, transform_indices = @transform_3, window_bounds = array<i64: 32, 32>}, {pipeline_mode = #tpu.pipeline_mode<synchronous>, transform_indices = @transform_4, window_bounds = array<i64: 1, 32>}, {transform_indices = @transform_5, window_bounds = array<i64: 16, 32>}]} {
    %c0 = arith.constant 0 : index
    %c0_0 = arith.constant 0 : index
    %0 = vector.load %arg1[%c0, %c0_0] : memref<16x32xf32, #tpu.memory_space<vmem>>, vector<16x32xf32>
    %c0_1 = arith.constant 0 : index
    %c0_2 = arith.constant 0 : index
    %1 = vector.load %arg2[%c0_1, %c0_2] : memref<1x32xf32, #tpu.memory_space<vmem>>, vector<1x32xf32>
    %c0_3 = arith.constant 0 : index
    %c0_4 = arith.constant 0 : index
    %2 = vector.load %arg3[%c0_3, %c0_4] : memref<1x32xf32, #tpu.memory_space<vmem>>, vector<1x32xf32>
    %cst = arith.constant dense<0.000000e+00> : vector<16xf32>
    %3 = vector.multi_reduction <add>, %0, %cst [1] : vector<16x32xf32> to vector<16xf32>
    %4 = vector.shape_cast %3 : vector<16xf32> to vector<16x1xf32>
    %cst_5 = arith.constant 3.200000e+01 : f32
    %5 = vector.broadcast %cst_5 : f32 to vector<16x1xf32>
    %6 = arith.divf %4, %5 : vector<16x1xf32>
    %7 = vector.broadcast %6 : vector<16x1xf32> to vector<16x32xf32>
    %8 = arith.subf %0, %7 : vector<16x32xf32>
    %9 = arith.mulf %8, %8 : vector<16x32xf32>
    %cst_6 = arith.constant dense<0.000000e+00> : vector<16xf32>
    %10 = vector.multi_reduction <add>, %9, %cst_6 [1] : vector<16x32xf32> to vector<16xf32>
    %11 = vector.shape_cast %10 : vector<16xf32> to vector<16x1xf32>
    %cst_7 = arith.constant 3.200000e+01 : f32
    %12 = vector.broadcast %cst_7 : f32 to vector<16x1xf32>
    %13 = arith.divf %11, %12 : vector<16x1xf32>
    %14 = vector.broadcast %6 : vector<16x1xf32> to vector<16x32xf32>
    %15 = arith.subf %0, %14 : vector<16x32xf32>
    %cst_8 = arith.constant 9.99999974E-6 : f32
    %16 = vector.broadcast %cst_8 : f32 to vector<16x1xf32>
    %17 = arith.addf %13, %16 : vector<16x1xf32>
    %18 = math.rsqrt %17 : vector<16x1xf32>
    %19 = vector.broadcast %18 : vector<16x1xf32> to vector<16x32xf32>
    %20 = arith.mulf %15, %19 : vector<16x32xf32>
    %21 = vector.broadcast %1 : vector<1x32xf32> to vector<16x32xf32>
    %22 = arith.mulf %20, %21 : vector<16x32xf32>
    %23 = vector.broadcast %2 : vector<1x32xf32> to vector<16x32xf32>
    %24 = arith.addf %22, %23 : vector<16x32xf32>
    %c0_9 = arith.constant 0 : index
    %c0_10 = arith.constant 0 : index
    %25 = vector.load %arg4[%c0_9, %c0_10] : memref<32x32xf32, #tpu.memory_space<vmem>>, vector<32x32xf32>
    %cst_11 = arith.constant dense<0.000000e+00> : vector<16x32xf32>
    %26 = tpu.matmul %24, %25, %cst_11 {dimension_numbers = #tpu.dot_dimension_numbers<[1], [0], [0], [1], [0, 0, 1, 1], [], []>} : vector<16x32xf32>, vector<32x32xf32>, vector<16x32xf32> -> vector<16x32xf32>
    %c0_12 = arith.constant 0 : index
    %c0_13 = arith.constant 0 : index
    %27 = vector.load %arg5[%c0_12, %c0_13] : memref<1x32xf32, #tpu.memory_space<vmem>>, vector<1x32xf32>
    %28 = vector.broadcast %27 : vector<1x32xf32> to vector<16x32xf32>
    %29 = arith.addf %26, %28 : vector<16x32xf32>
    %cst_14 = arith.constant 0.353553385 : f32
    %30 = vector.broadcast %cst_14 : f32 to vector<16x32xf32>
    %31 = arith.mulf %29, %30 : vector<16x32xf32>
    %c0_15 = arith.constant 0 : index
    %c0_16 = arith.constant 0 : index
    %32 = vector.load %arg6[%c0_15, %c0_16] : memref<16x32xf32, #tpu.memory_space<vmem>>, vector<16x32xf32>
    tpu.vector_store %arg6[%c0_15, %c0_16], %31 {strides = array<i32>} : memref<16x32xf32, #tpu.memory_space<vmem>>, vector<16x32xf32>,
    return
  }
  func.func @transform_0(%arg0: i32) -> (i32, i32) {
    %c0_i32 = arith.constant 0 : i32
    %c0_i32_0 = arith.constant 0 : i32
    return %arg0, %c0_i32 : i32, i32
  }
  func.func @transform_1(%arg0: i32) -> (i32, i32) {
    %c0_i32 = arith.constant 0 : i32
    %c0_i32_0 = arith.constant 0 : i32
    %c0_i32_1 = arith.constant 0 : i32
    return %c0_i32, %c0_i32_0 : i32, i32
  }
  func.func @transform_2(%arg0: i32) -> (i32, i32) {
    %c0_i32 = arith.constant 0 : i32
    %c0_i32_0 = arith.constant 0 : i32
    %c0_i32_1 = arith.constant 0 : i32
    return %c0_i32, %c0_i32_0 : i32, i32
  }
  func.func @transform_3(%arg0: i32) -> (i32, i32) {
    %c0_i32 = arith.constant 0 : i32
    %c0_i32_0 = arith.constant 0 : i32
    %c0_i32_1 = arith.constant 0 : i32
    return %c0_i32, %c0_i32_0 : i32, i32
  }
  func.func @transform_4(%arg0: i32) -> (i32, i32) {
    %c0_i32 = arith.constant 0 : i32
    %c0_i32_0 = arith.constant 0 : i32
    %c0_i32_1 = arith.constant 0 : i32
    return %c0_i32, %c0_i32_0 : i32, i32
  }
  func.func @transform_5(%arg0: i32) -> (i32, i32) {
    %c0_i32 = arith.constant 0 : i32
    %c0_i32_0 = arith.constant 0 : i32
    return %arg0, %c0_i32 : i32, i32
  }
}

module attributes {stable_mosaic.version = 11 : i64} {
  func.func @_attn_masked_kernel(%arg0: i32, %arg1: memref<1x4x8x8xf32, #tpu.memory_space<vmem>>, %arg2: memref<1x4x8x8xf32, #tpu.memory_space<vmem>>, %arg3: memref<1x4x8x8xf32, #tpu.memory_space<vmem>>, %arg4: memref<8x8xf32, #tpu.memory_space<vmem>>, %arg5: memref<1x4x8x8xf32, #tpu.memory_space<vmem>>) attributes {dimension_semantics = [#tpu.dimension_semantics<parallel>], iteration_bounds = array<i64: 2>, scalar_prefetch = 0 : i64, scratch_operands = 0 : i64, tpu.core_type = #tpu.core_type<tc>, window_params = [{transform_indices = @transform_0, window_bounds = array<i64: 1, 4, 8, 8>}, {transform_indices = @transform_1, window_bounds = array<i64: 1, 4, 8, 8>}, {transform_indices = @transform_2, window_bounds = array<i64: 1, 4, 8, 8>}, {pipeline_mode = #tpu.pipeline_mode<synchronous>, transform_indices = @transform_3, window_bounds = array<i64: 8, 8>}, {transform_indices = @transform_4, window_bounds = array<i64: 1, 4, 8, 8>}]} {
    %c0 = arith.constant 0 : index
    %c0_0 = arith.constant 0 : index
    %c0_1 = arith.constant 0 : index
    %c0_2 = arith.constant 0 : index
    %0 = vector.load %arg1[%c0, %c0_0, %c0_1, %c0_2] : memref<1x4x8x8xf32, #tpu.memory_space<vmem>>, vector<1x4x8x8xf32>
    %1 = vector.shape_cast %0 : vector<1x4x8x8xf32> to vector<4x8x8xf32>
    %c0_3 = arith.constant 0 : index
    %c0_4 = arith.constant 0 : index
    %c0_5 = arith.constant 0 : index
    %c0_6 = arith.constant 0 : index
    %2 = vector.load %arg2[%c0_3, %c0_4, %c0_5, %c0_6] : memref<1x4x8x8xf32, #tpu.memory_space<vmem>>, vector<1x4x8x8xf32>
    %3 = vector.shape_cast %2 : vector<1x4x8x8xf32> to vector<4x8x8xf32>
    %c0_7 = arith.constant 0 : index
    %c0_8 = arith.constant 0 : index
    %c0_9 = arith.constant 0 : index
    %c0_10 = arith.constant 0 : index
    %4 = vector.load %arg3[%c0_7, %c0_8, %c0_9, %c0_10] : memref<1x4x8x8xf32, #tpu.memory_space<vmem>>, vector<1x4x8x8xf32>
    %5 = vector.shape_cast %4 : vector<1x4x8x8xf32> to vector<4x8x8xf32>
    "tpu.trace_start"() <{level = 10 : i32, message = "hqd,hkd->hqk"}> : () -> ()
    %cst = arith.constant dense<0.000000e+00> : vector<4x8x8xf32>
    %6 = tpu.matmul %1, %3, %cst {dimension_numbers = #tpu.dot_dimension_numbers<[2], [2], [1], [1], [0, 0, 0, 1, 1, 1], [0], [0]>} : vector<4x8x8xf32>, vector<4x8x8xf32>, vector<4x8x8xf32> -> vector<4x8x8xf32>
    "tpu.trace_stop"() : () -> ()
    %c0_11 = arith.constant 0 : index
    %c0_12 = arith.constant 0 : index
    %7 = vector.load %arg4[%c0_11, %c0_12] : memref<8x8xf32, #tpu.memory_space<vmem>>, vector<8x8xf32>
    %8 = vector.shape_cast %7 : vector<8x8xf32> to vector<1x8x8xf32>
    %9 = vector.broadcast %8 : vector<1x8x8xf32> to vector<4x8x8xf32>
    %10 = arith.addf %6, %9 : vector<4x8x8xf32>
    %cst_13 = arith.constant dense<0xFF800000> : vector<4x8xf32>
    %11 = vector.multi_reduction <maximumf>, %10, %cst_13 [2] : vector<4x8x8xf32> to vector<4x8xf32>
    %12 = vector.shape_cast %11 : vector<4x8xf32> to vector<4x8x1xf32>
    %13 = vector.broadcast %12 : vector<4x8x1xf32> to vector<4x8x8xf32>
    %14 = arith.subf %10, %13 : vector<4x8x8xf32>
    %15 = math.exp %14 : vector<4x8x8xf32>
    %cst_14 = arith.constant dense<0.000000e+00> : vector<4x8xf32>
    %16 = vector.multi_reduction <add>, %15, %cst_14 [2] : vector<4x8x8xf32> to vector<4x8xf32>
    %17 = vector.shape_cast %16 : vector<4x8xf32> to vector<4x8x1xf32>
    %18 = tpu.reciprocal %17 {approx = true} : vector<4x8x1xf32> -> vector<4x8x1xf32>
    %19 = vector.broadcast %18 : vector<4x8x1xf32> to vector<4x8x8xf32>
    %20 = arith.mulf %15, %19 : vector<4x8x8xf32>
    "tpu.trace_start"() <{level = 10 : i32, message = "hqk,hkd->hqd"}> : () -> ()
    %cst_15 = arith.constant dense<0.000000e+00> : vector<4x8x8xf32>
    %21 = tpu.matmul %20, %5, %cst_15 {dimension_numbers = #tpu.dot_dimension_numbers<[2], [1], [1], [2], [0, 0, 0, 1, 1, 2], [0], [0]>} : vector<4x8x8xf32>, vector<4x8x8xf32>, vector<4x8x8xf32> -> vector<4x8x8xf32>
    "tpu.trace_stop"() : () -> ()
    %c0_16 = arith.constant 0 : index
    %c0_17 = arith.constant 0 : index
    %c0_18 = arith.constant 0 : index
    %c0_19 = arith.constant 0 : index
    %22 = vector.load %arg5[%c0_16, %c0_17, %c0_18, %c0_19] : memref<1x4x8x8xf32, #tpu.memory_space<vmem>>, vector<1x4x8x8xf32>
    %23 = vector.shape_cast %22 : vector<1x4x8x8xf32> to vector<4x8x8xf32>
    %24 = vector.shape_cast %21 : vector<4x8x8xf32> to vector<1x4x8x8xf32>
    tpu.vector_store %arg5[%c0_16, %c0_17, %c0_18, %c0_19], %24 {strides = array<i32>} : memref<1x4x8x8xf32, #tpu.memory_space<vmem>>, vector<1x4x8x8xf32>,
    return
  }
  func.func @transform_0(%arg0: i32) -> (i32, i32, i32, i32) {
    %c0_i32 = arith.constant 0 : i32
    %c0_i32_0 = arith.constant 0 : i32
    %c0_i32_1 = arith.constant 0 : i32
    %c0_i32_2 = arith.constant 0 : i32
    return %arg0, %c0_i32, %c0_i32_0, %c0_i32_1 : i32, i32, i32, i32
  }
  func.func @transform_1(%arg0: i32) -> (i32, i32, i32, i32) {
    %c0_i32 = arith.constant 0 : i32
    %c0_i32_0 = arith.constant 0 : i32
    %c0_i32_1 = arith.constant 0 : i32
    %c0_i32_2 = arith.constant 0 : i32
    return %arg0, %c0_i32, %c0_i32_0, %c0_i32_1 : i32, i32, i32, i32
  }
  func.func @transform_2(%arg0: i32) -> (i32, i32, i32, i32) {
    %c0_i32 = arith.constant 0 : i32
    %c0_i32_0 = arith.constant 0 : i32
    %c0_i32_1 = arith.constant 0 : i32
    %c0_i32_2 = arith.constant 0 : i32
    return %arg0, %c0_i32, %c0_i32_0, %c0_i32_1 : i32, i32, i32, i32
  }
  func.func @transform_3(%arg0: i32) -> (i32, i32) {
    %c0_i32 = arith.constant 0 : i32
    %c0_i32_0 = arith.constant 0 : i32
    %c0_i32_1 = arith.constant 0 : i32
    return %c0_i32, %c0_i32_0 : i32, i32
  }
  func.func @transform_4(%arg0: i32) -> (i32, i32, i32, i32) {
    %c0_i32 = arith.constant 0 : i32
    %c0_i32_0 = arith.constant 0 : i32
    %c0_i32_1 = arith.constant 0 : i32
    %c0_i32_2 = arith.constant 0 : i32
    return %arg0, %c0_i32, %c0_i32_0, %c0_i32_1 : i32, i32, i32, i32
  }
}

module attributes {stable_mosaic.version = 11 : i64} {
  func.func @_linear_residual_kernel(%arg0: i32, %arg1: memref<16x32xf32, #tpu.memory_space<vmem>>, %arg2: memref<16x32xf32, #tpu.memory_space<vmem>>, %arg3: memref<32x32xf32, #tpu.memory_space<vmem>>, %arg4: memref<1x32xf32, #tpu.memory_space<vmem>>, %arg5: memref<16x32xf32, #tpu.memory_space<vmem>>) attributes {dimension_semantics = [#tpu.dimension_semantics<parallel>], iteration_bounds = array<i64: 1>, scalar_prefetch = 0 : i64, scratch_operands = 0 : i64, tpu.core_type = #tpu.core_type<tc>, window_params = [{transform_indices = @transform_0, window_bounds = array<i64: 16, 32>}, {transform_indices = @transform_1, window_bounds = array<i64: 16, 32>}, {pipeline_mode = #tpu.pipeline_mode<synchronous>, transform_indices = @transform_2, window_bounds = array<i64: 32, 32>}, {pipeline_mode = #tpu.pipeline_mode<synchronous>, transform_indices = @transform_3, window_bounds = array<i64: 1, 32>}, {transform_indices = @transform_4, window_bounds = array<i64: 16, 32>}]} {
    %c0 = arith.constant 0 : index
    %c0_0 = arith.constant 0 : index
    %0 = vector.load %arg1[%c0, %c0_0] : memref<16x32xf32, #tpu.memory_space<vmem>>, vector<16x32xf32>
    %c0_1 = arith.constant 0 : index
    %c0_2 = arith.constant 0 : index
    %1 = vector.load %arg3[%c0_1, %c0_2] : memref<32x32xf32, #tpu.memory_space<vmem>>, vector<32x32xf32>
    %cst = arith.constant dense<0.000000e+00> : vector<16x32xf32>
    %2 = tpu.matmul %0, %1, %cst {dimension_numbers = #tpu.dot_dimension_numbers<[1], [0], [0], [1], [0, 0, 1, 1], [], []>} : vector<16x32xf32>, vector<32x32xf32>, vector<16x32xf32> -> vector<16x32xf32>
    %c0_3 = arith.constant 0 : index
    %c0_4 = arith.constant 0 : index
    %3 = vector.load %arg4[%c0_3, %c0_4] : memref<1x32xf32, #tpu.memory_space<vmem>>, vector<1x32xf32>
    %4 = vector.broadcast %3 : vector<1x32xf32> to vector<16x32xf32>
    %5 = arith.addf %2, %4 : vector<16x32xf32>
    %c0_5 = arith.constant 0 : index
    %c0_6 = arith.constant 0 : index
    %6 = vector.load %arg2[%c0_5, %c0_6] : memref<16x32xf32, #tpu.memory_space<vmem>>, vector<16x32xf32>
    %7 = arith.addf %5, %6 : vector<16x32xf32>
    %c0_7 = arith.constant 0 : index
    %c0_8 = arith.constant 0 : index
    %8 = vector.load %arg5[%c0_7, %c0_8] : memref<16x32xf32, #tpu.memory_space<vmem>>, vector<16x32xf32>
    tpu.vector_store %arg5[%c0_7, %c0_8], %7 {strides = array<i32>} : memref<16x32xf32, #tpu.memory_space<vmem>>, vector<16x32xf32>,
    return
  }
  func.func @transform_0(%arg0: i32) -> (i32, i32) {
    %c0_i32 = arith.constant 0 : i32
    %c0_i32_0 = arith.constant 0 : i32
    return %arg0, %c0_i32 : i32, i32
  }
  func.func @transform_1(%arg0: i32) -> (i32, i32) {
    %c0_i32 = arith.constant 0 : i32
    %c0_i32_0 = arith.constant 0 : i32
    return %arg0, %c0_i32 : i32, i32
  }
  func.func @transform_2(%arg0: i32) -> (i32, i32) {
    %c0_i32 = arith.constant 0 : i32
    %c0_i32_0 = arith.constant 0 : i32
    %c0_i32_1 = arith.constant 0 : i32
    return %c0_i32, %c0_i32_0 : i32, i32
  }
  func.func @transform_3(%arg0: i32) -> (i32, i32) {
    %c0_i32 = arith.constant 0 : i32
    %c0_i32_0 = arith.constant 0 : i32
    %c0_i32_1 = arith.constant 0 : i32
    return %c0_i32, %c0_i32_0 : i32, i32
  }
  func.func @transform_4(%arg0: i32) -> (i32, i32) {
    %c0_i32 = arith.constant 0 : i32
    %c0_i32_0 = arith.constant 0 : i32
    return %arg0, %c0_i32 : i32, i32
  }
}

module attributes {stable_mosaic.version = 11 : i64} {
  func.func @_linear_kernel(%arg0: i32, %arg1: memref<16x32xf32, #tpu.memory_space<vmem>>, %arg2: memref<32x32xf32, #tpu.memory_space<vmem>>, %arg3: memref<1x32xf32, #tpu.memory_space<vmem>>, %arg4: memref<16x32xf32, #tpu.memory_space<vmem>>) attributes {dimension_semantics = [#tpu.dimension_semantics<parallel>], iteration_bounds = array<i64: 1>, scalar_prefetch = 0 : i64, scratch_operands = 0 : i64, tpu.core_type = #tpu.core_type<tc>, window_params = [{transform_indices = @transform_0, window_bounds = array<i64: 16, 32>}, {pipeline_mode = #tpu.pipeline_mode<synchronous>, transform_indices = @transform_1, window_bounds = array<i64: 32, 32>}, {pipeline_mode = #tpu.pipeline_mode<synchronous>, transform_indices = @transform_2, window_bounds = array<i64: 1, 32>}, {transform_indices = @transform_3, window_bounds = array<i64: 16, 32>}]} {
    %c0 = arith.constant 0 : index
    %c0_0 = arith.constant 0 : index
    %0 = vector.load %arg1[%c0, %c0_0] : memref<16x32xf32, #tpu.memory_space<vmem>>, vector<16x32xf32>
    %c0_1 = arith.constant 0 : index
    %c0_2 = arith.constant 0 : index
    %1 = vector.load %arg2[%c0_1, %c0_2] : memref<32x32xf32, #tpu.memory_space<vmem>>, vector<32x32xf32>
    %cst = arith.constant dense<0.000000e+00> : vector<16x32xf32>
    %2 = tpu.matmul %0, %1, %cst {dimension_numbers = #tpu.dot_dimension_numbers<[1], [0], [0], [1], [0, 0, 1, 1], [], []>} : vector<16x32xf32>, vector<32x32xf32>, vector<16x32xf32> -> vector<16x32xf32>
    %c0_3 = arith.constant 0 : index
    %c0_4 = arith.constant 0 : index
    %3 = vector.load %arg3[%c0_3, %c0_4] : memref<1x32xf32, #tpu.memory_space<vmem>>, vector<1x32xf32>
    %4 = vector.broadcast %3 : vector<1x32xf32> to vector<16x32xf32>
    %5 = arith.addf %2, %4 : vector<16x32xf32>
    %c0_5 = arith.constant 0 : index
    %c0_6 = arith.constant 0 : index
    %6 = vector.load %arg4[%c0_5, %c0_6] : memref<16x32xf32, #tpu.memory_space<vmem>>, vector<16x32xf32>
    tpu.vector_store %arg4[%c0_5, %c0_6], %5 {strides = array<i32>} : memref<16x32xf32, #tpu.memory_space<vmem>>, vector<16x32xf32>,
    return
  }
  func.func @transform_0(%arg0: i32) -> (i32, i32) {
    %c0_i32 = arith.constant 0 : i32
    %c0_i32_0 = arith.constant 0 : i32
    return %arg0, %c0_i32 : i32, i32
  }
  func.func @transform_1(%arg0: i32) -> (i32, i32) {
    %c0_i32 = arith.constant 0 : i32
    %c0_i32_0 = arith.constant 0 : i32
    %c0_i32_1 = arith.constant 0 : i32
    return %c0_i32, %c0_i32_0 : i32, i32
  }
  func.func @transform_2(%arg0: i32) -> (i32, i32) {
    %c0_i32 = arith.constant 0 : i32
    %c0_i32_0 = arith.constant 0 : i32
    %c0_i32_1 = arith.constant 0 : i32
    return %c0_i32, %c0_i32_0 : i32, i32
  }
  func.func @transform_3(%arg0: i32) -> (i32, i32) {
    %c0_i32 = arith.constant 0 : i32
    %c0_i32_0 = arith.constant 0 : i32
    return %arg0, %c0_i32 : i32, i32
  }
}

module attributes {stable_mosaic.version = 11 : i64} {
  func.func @_attn_kernel(%arg0: i32, %arg1: memref<1x4x8x8xf32, #tpu.memory_space<vmem>>, %arg2: memref<1x4x8x8xf32, #tpu.memory_space<vmem>>, %arg3: memref<1x4x8x8xf32, #tpu.memory_space<vmem>>, %arg4: memref<1x4x8x8xf32, #tpu.memory_space<vmem>>) attributes {dimension_semantics = [#tpu.dimension_semantics<parallel>], iteration_bounds = array<i64: 2>, scalar_prefetch = 0 : i64, scratch_operands = 0 : i64, tpu.core_type = #tpu.core_type<tc>, window_params = [{transform_indices = @transform_0, window_bounds = array<i64: 1, 4, 8, 8>}, {transform_indices = @transform_1, window_bounds = array<i64: 1, 4, 8, 8>}, {transform_indices = @transform_2, window_bounds = array<i64: 1, 4, 8, 8>}, {transform_indices = @transform_3, window_bounds = array<i64: 1, 4, 8, 8>}]} {
    %c0 = arith.constant 0 : index
    %c0_0 = arith.constant 0 : index
    %c0_1 = arith.constant 0 : index
    %c0_2 = arith.constant 0 : index
    %0 = vector.load %arg1[%c0, %c0_0, %c0_1, %c0_2] : memref<1x4x8x8xf32, #tpu.memory_space<vmem>>, vector<1x4x8x8xf32>
    %1 = vector.shape_cast %0 : vector<1x4x8x8xf32> to vector<4x8x8xf32>
    %c0_3 = arith.constant 0 : index
    %c0_4 = arith.constant 0 : index
    %c0_5 = arith.constant 0 : index
    %c0_6 = arith.constant 0 : index
    %2 = vector.load %arg2[%c0_3, %c0_4, %c0_5, %c0_6] : memref<1x4x8x8xf32, #tpu.memory_space<vmem>>, vector<1x4x8x8xf32>
    %3 = vector.shape_cast %2 : vector<1x4x8x8xf32> to vector<4x8x8xf32>
    %c0_7 = arith.constant 0 : index
    %c0_8 = arith.constant 0 : index
    %c0_9 = arith.constant 0 : index
    %c0_10 = arith.constant 0 : index
    %4 = vector.load %arg3[%c0_7, %c0_8, %c0_9, %c0_10] : memref<1x4x8x8xf32, #tpu.memory_space<vmem>>, vector<1x4x8x8xf32>
    %5 = vector.shape_cast %4 : vector<1x4x8x8xf32> to vector<4x8x8xf32>
    "tpu.trace_start"() <{level = 10 : i32, message = "hqd,hkd->hqk"}> : () -> ()
    %cst = arith.constant dense<0.000000e+00> : vector<4x8x8xf32>
    %6 = tpu.matmul %1, %3, %cst {dimension_numbers = #tpu.dot_dimension_numbers<[2], [2], [1], [1], [0, 0, 0, 1, 1, 1], [0], [0]>} : vector<4x8x8xf32>, vector<4x8x8xf32>, vector<4x8x8xf32> -> vector<4x8x8xf32>
    "tpu.trace_stop"() : () -> ()
    %cst_11 = arith.constant dense<0xFF800000> : vector<4x8xf32>
    %7 = vector.multi_reduction <maximumf>, %6, %cst_11 [2] : vector<4x8x8xf32> to vector<4x8xf32>
    %8 = vector.shape_cast %7 : vector<4x8xf32> to vector<4x8x1xf32>
    %9 = vector.broadcast %8 : vector<4x8x1xf32> to vector<4x8x8xf32>
    %10 = arith.subf %6, %9 : vector<4x8x8xf32>
    %11 = math.exp %10 : vector<4x8x8xf32>
    %cst_12 = arith.constant dense<0.000000e+00> : vector<4x8xf32>
    %12 = vector.multi_reduction <add>, %11, %cst_12 [2] : vector<4x8x8xf32> to vector<4x8xf32>
    %13 = vector.shape_cast %12 : vector<4x8xf32> to vector<4x8x1xf32>
    %14 = tpu.reciprocal %13 {approx = true} : vector<4x8x1xf32> -> vector<4x8x1xf32>
    %15 = vector.broadcast %14 : vector<4x8x1xf32> to vector<4x8x8xf32>
    %16 = arith.mulf %11, %15 : vector<4x8x8xf32>
    "tpu.trace_start"() <{level = 10 : i32, message = "hqk,hkd->hqd"}> : () -> ()
    %cst_13 = arith.constant dense<0.000000e+00> : vector<4x8x8xf32>
    %17 = tpu.matmul %16, %5, %cst_13 {dimension_numbers = #tpu.dot_dimension_numbers<[2], [1], [1], [2], [0, 0, 0, 1, 1, 2], [0], [0]>} : vector<4x8x8xf32>, vector<4x8x8xf32>, vector<4x8x8xf32> -> vector<4x8x8xf32>
    "tpu.trace_stop"() : () -> ()
    %c0_14 = arith.constant 0 : index
    %c0_15 = arith.constant 0 : index
    %c0_16 = arith.constant 0 : index
    %c0_17 = arith.constant 0 : index
    %18 = vector.load %arg4[%c0_14, %c0_15, %c0_16, %c0_17] : memref<1x4x8x8xf32, #tpu.memory_space<vmem>>, vector<1x4x8x8xf32>
    %19 = vector.shape_cast %18 : vector<1x4x8x8xf32> to vector<4x8x8xf32>
    %20 = vector.shape_cast %17 : vector<4x8x8xf32> to vector<1x4x8x8xf32>
    tpu.vector_store %arg4[%c0_14, %c0_15, %c0_16, %c0_17], %20 {strides = array<i32>} : memref<1x4x8x8xf32, #tpu.memory_space<vmem>>, vector<1x4x8x8xf32>,
    return
  }
  func.func @transform_0(%arg0: i32) -> (i32, i32, i32, i32) {
    %c0_i32 = arith.constant 0 : i32
    %c0_i32_0 = arith.constant 0 : i32
    %c0_i32_1 = arith.constant 0 : i32
    %c0_i32_2 = arith.constant 0 : i32
    return %arg0, %c0_i32, %c0_i32_0, %c0_i32_1 : i32, i32, i32, i32
  }
  func.func @transform_1(%arg0: i32) -> (i32, i32, i32, i32) {
    %c0_i32 = arith.constant 0 : i32
    %c0_i32_0 = arith.constant 0 : i32
    %c0_i32_1 = arith.constant 0 : i32
    %c0_i32_2 = arith.constant 0 : i32
    return %arg0, %c0_i32, %c0_i32_0, %c0_i32_1 : i32, i32, i32, i32
  }
  func.func @transform_2(%arg0: i32) -> (i32, i32, i32, i32) {
    %c0_i32 = arith.constant 0 : i32
    %c0_i32_0 = arith.constant 0 : i32
    %c0_i32_1 = arith.constant 0 : i32
    %c0_i32_2 = arith.constant 0 : i32
    return %arg0, %c0_i32, %c0_i32_0, %c0_i32_1 : i32, i32, i32, i32
  }
  func.func @transform_3(%arg0: i32) -> (i32, i32, i32, i32) {
    %c0_i32 = arith.constant 0 : i32
    %c0_i32_0 = arith.constant 0 : i32
    %c0_i32_1 = arith.constant 0 : i32
    %c0_i32_2 = arith.constant 0 : i32
    return %arg0, %c0_i32, %c0_i32_0, %c0_i32_1 : i32, i32, i32, i32
  }
}

module attributes {stable_mosaic.version = 11 : i64} {
  func.func @_ffn_kernel(%arg0: i32, %arg1: memref<16x32xf32, #tpu.memory_space<vmem>>, %arg2: memref<1x32xf32, #tpu.memory_space<vmem>>, %arg3: memref<1x32xf32, #tpu.memory_space<vmem>>, %arg4: memref<32x64xf32, #tpu.memory_space<vmem>>, %arg5: memref<1x64xf32, #tpu.memory_space<vmem>>, %arg6: memref<64x32xf32, #tpu.memory_space<vmem>>, %arg7: memref<1x32xf32, #tpu.memory_space<vmem>>, %arg8: memref<16x32xf32, #tpu.memory_space<vmem>>) attributes {dimension_semantics = [#tpu.dimension_semantics<parallel>], iteration_bounds = array<i64: 1>, scalar_prefetch = 0 : i64, scratch_operands = 0 : i64, tpu.core_type = #tpu.core_type<tc>, window_params = [{transform_indices = @transform_0, window_bounds = array<i64: 16, 32>}, {pipeline_mode = #tpu.pipeline_mode<synchronous>, transform_indices = @transform_1, window_bounds = array<i64: 1, 32>}, {pipeline_mode = #tpu.pipeline_mode<synchronous>, transform_indices = @transform_2, window_bounds = array<i64: 1, 32>}, {pipeline_mode = #tpu.pipeline_mode<synchronous>, transform_indices = @transform_3, window_bounds = array<i64: 32, 64>}, {pipeline_mode = #tpu.pipeline_mode<synchronous>, transform_indices = @transform_4, window_bounds = array<i64: 1, 64>}, {pipeline_mode = #tpu.pipeline_mode<synchronous>, transform_indices = @transform_5, window_bounds = array<i64: 64, 32>}, {pipeline_mode = #tpu.pipeline_mode<synchronous>, transform_indices = @transform_6, window_bounds = array<i64: 1, 32>}, {transform_indices = @transform_7, window_bounds = array<i64: 16, 32>}]} {
    %c0 = arith.constant 0 : index
    %c0_0 = arith.constant 0 : index
    %0 = vector.load %arg1[%c0, %c0_0] : memref<16x32xf32, #tpu.memory_space<vmem>>, vector<16x32xf32>
    %c0_1 = arith.constant 0 : index
    %c0_2 = arith.constant 0 : index
    %1 = vector.load %arg2[%c0_1, %c0_2] : memref<1x32xf32, #tpu.memory_space<vmem>>, vector<1x32xf32>
    %c0_3 = arith.constant 0 : index
    %c0_4 = arith.constant 0 : index
    %2 = vector.load %arg3[%c0_3, %c0_4] : memref<1x32xf32, #tpu.memory_space<vmem>>, vector<1x32xf32>
    %cst = arith.constant dense<0.000000e+00> : vector<16xf32>
    %3 = vector.multi_reduction <add>, %0, %cst [1] : vector<16x32xf32> to vector<16xf32>
    %4 = vector.shape_cast %3 : vector<16xf32> to vector<16x1xf32>
    %cst_5 = arith.constant 3.200000e+01 : f32
    %5 = vector.broadcast %cst_5 : f32 to vector<16x1xf32>
    %6 = arith.divf %4, %5 : vector<16x1xf32>
    %7 = vector.broadcast %6 : vector<16x1xf32> to vector<16x32xf32>
    %8 = arith.subf %0, %7 : vector<16x32xf32>
    %9 = arith.mulf %8, %8 : vector<16x32xf32>
    %cst_6 = arith.constant dense<0.000000e+00> : vector<16xf32>
    %10 = vector.multi_reduction <add>, %9, %cst_6 [1] : vector<16x32xf32> to vector<16xf32>
    %11 = vector.shape_cast %10 : vector<16xf32> to vector<16x1xf32>
    %cst_7 = arith.constant 3.200000e+01 : f32
    %12 = vector.broadcast %cst_7 : f32 to vector<16x1xf32>
    %13 = arith.divf %11, %12 : vector<16x1xf32>
    %14 = vector.broadcast %6 : vector<16x1xf32> to vector<16x32xf32>
    %15 = arith.subf %0, %14 : vector<16x32xf32>
    %cst_8 = arith.constant 9.99999974E-6 : f32
    %16 = vector.broadcast %cst_8 : f32 to vector<16x1xf32>
    %17 = arith.addf %13, %16 : vector<16x1xf32>
    %18 = math.rsqrt %17 : vector<16x1xf32>
    %19 = vector.broadcast %18 : vector<16x1xf32> to vector<16x32xf32>
    %20 = arith.mulf %15, %19 : vector<16x32xf32>
    %21 = vector.broadcast %1 : vector<1x32xf32> to vector<16x32xf32>
    %22 = arith.mulf %20, %21 : vector<16x32xf32>
    %23 = vector.broadcast %2 : vector<1x32xf32> to vector<16x32xf32>
    %24 = arith.addf %22, %23 : vector<16x32xf32>
    %c0_9 = arith.constant 0 : index
    %c0_10 = arith.constant 0 : index
    %25 = vector.load %arg4[%c0_9, %c0_10] : memref<32x64xf32, #tpu.memory_space<vmem>>, vector<32x64xf32>
    %cst_11 = arith.constant dense<0.000000e+00> : vector<16x64xf32>
    %26 = tpu.matmul %24, %25, %cst_11 {dimension_numbers = #tpu.dot_dimension_numbers<[1], [0], [0], [1], [0, 0, 1, 1], [], []>} : vector<16x32xf32>, vector<32x64xf32>, vector<16x64xf32> -> vector<16x64xf32>
    %c0_12 = arith.constant 0 : index
    %c0_13 = arith.constant 0 : index
    %27 = vector.load %arg5[%c0_12, %c0_13] : memref<1x64xf32, #tpu.memory_space<vmem>>, vector<1x64xf32>
    %28 = vector.broadcast %27 : vector<1x64xf32> to vector<16x64xf32>
    %29 = arith.addf %26, %28 : vector<16x64xf32>
    %cst_14 = arith.constant 5.000000e-01 : f32
    %30 = vector.broadcast %cst_14 : f32 to vector<16x64xf32>
    %31 = arith.mulf %30, %29 : vector<16x64xf32>
    %cst_15 = arith.constant 4.471500e-02 : f32
    %32 = vector.broadcast %cst_15 : f32 to vector<16x64xf32>
    %33 = arith.mulf %32, %29 : vector<16x64xf32>
    %34 = arith.mulf %33, %29 : vector<16x64xf32>
    %35 = arith.mulf %34, %29 : vector<16x64xf32>
    %36 = arith.addf %29, %35 : vector<16x64xf32>
    %cst_16 = arith.constant 0.797884583 : f32
    %37 = vector.broadcast %cst_16 : f32 to vector<16x64xf32>
    %38 = arith.mulf %37, %36 : vector<16x64xf32>
    %39 = math.tanh %38 : vector<16x64xf32>
    %cst_17 = arith.constant 1.000000e+00 : f32
    %40 = vector.broadcast %cst_17 : f32 to vector<16x64xf32>
    %41 = arith.addf %40, %39 : vector<16x64xf32>
    %42 = arith.mulf %31, %41 : vector<16x64xf32>
    %c0_18 = arith.constant 0 : index
    %c0_19 = arith.constant 0 : index
    %43 = vector.load %arg6[%c0_18, %c0_19] : memref<64x32xf32, #tpu.memory_space<vmem>>, vector<64x32xf32>
    %cst_20 = arith.constant dense<0.000000e+00> : vector<16x32xf32>
    %44 = tpu.matmul %42, %43, %cst_20 {dimension_numbers = #tpu.dot_dimension_numbers<[1], [0], [0], [1], [0, 0, 1, 1], [], []>} : vector<16x64xf32>, vector<64x32xf32>, vector<16x32xf32> -> vector<16x32xf32>
    %c0_21 = arith.constant 0 : index
    %c0_22 = arith.constant 0 : index
    %45 = vector.load %arg7[%c0_21, %c0_22] : memref<1x32xf32, #tpu.memory_space<vmem>>, vector<1x32xf32>
    %46 = vector.broadcast %45 : vector<1x32xf32> to vector<16x32xf32>
    %47 = arith.addf %44, %46 : vector<16x32xf32>
    %48 = arith.addf %0, %47 : vector<16x32xf32>
    %c0_23 = arith.constant 0 : index
    %c0_24 = arith.constant 0 : index
    %49 = vector.load %arg8[%c0_23, %c0_24] : memref<16x32xf32, #tpu.memory_space<vmem>>, vector<16x32xf32>
    tpu.vector_store %arg8[%c0_23, %c0_24], %48 {strides = array<i32>} : memref<16x32xf32, #tpu.memory_space<vmem>>, vector<16x32xf32>,
    return
  }
  func.func @transform_0(%arg0: i32) -> (i32, i32) {
    %c0_i32 = arith.constant 0 : i32
    %c0_i32_0 = arith.constant 0 : i32
    return %arg0, %c0_i32 : i32, i32
  }
  func.func @transform_1(%arg0: i32) -> (i32, i32) {
    %c0_i32 = arith.constant 0 : i32
    %c0_i32_0 = arith.constant 0 : i32
    %c0_i32_1 = arith.constant 0 : i32
    return %c0_i32, %c0_i32_0 : i32, i32
  }
  func.func @transform_2(%arg0: i32) -> (i32, i32) {
    %c0_i32 = arith.constant 0 : i32
    %c0_i32_0 = arith.constant 0 : i32
    %c0_i32_1 = arith.constant 0 : i32
    return %c0_i32, %c0_i32_0 : i32, i32
  }
  func.func @transform_3(%arg0: i32) -> (i32, i32) {
    %c0_i32 = arith.constant 0 : i32
    %c0_i32_0 = arith.constant 0 : i32
    %c0_i32_1 = arith.constant 0 : i32
    return %c0_i32, %c0_i32_0 : i32, i32
  }
  func.func @transform_4(%arg0: i32) -> (i32, i32) {
    %c0_i32 = arith.constant 0 : i32
    %c0_i32_0 = arith.constant 0 : i32
    %c0_i32_1 = arith.constant 0 : i32
    return %c0_i32, %c0_i32_0 : i32, i32
  }
  func.func @transform_5(%arg0: i32) -> (i32, i32) {
    %c0_i32 = arith.constant 0 : i32
    %c0_i32_0 = arith.constant 0 : i32
    %c0_i32_1 = arith.constant 0 : i32
    return %c0_i32, %c0_i32_0 : i32, i32
  }
  func.func @transform_6(%arg0: i32) -> (i32, i32) {
    %c0_i32 = arith.constant 0 : i32
    %c0_i32_0 = arith.constant 0 : i32
    %c0_i32_1 = arith.constant 0 : i32
    return %c0_i32, %c0_i32_0 : i32, i32
  }
  func.func @transform_7(%arg0: i32) -> (i32, i32) {
    %c0_i32 = arith.constant 0 : i32
    %c0_i32_0 = arith.constant 0 : i32
    return %arg0, %c0_i32 : i32, i32
  }
}

</mosaic_0001>

<llo_original>
// kernel: decoder_layer.12
$region0: #{decoder_layer.12}
  #allocation0 [shape = 'u32[]', space=smem, size = 0x4, offset = 0x4, fixed_abs, tag = 'smem constant byte address 0x4 - core index']
  #allocation1 [shape = 'u32[144,128]{1,0:T(1,128)}', space=vmem, size = 0x12000, scoped, tag = 'internal scratch']
  %s0 = inlined_call_operand.vmem [shape: f32[16,32], index: 0, kind: input, shape index: {}]
  %s1 = inlined_call_operand.vmem [shape: f32[1,32], index: 1, kind: input, shape index: {}]
  %s2 = inlined_call_operand.vmem [shape: f32[1,32], index: 2, kind: input, shape index: {}]
  %s3 = inlined_call_operand.vmem [shape: f32[32,32], index: 3, kind: input, shape index: {}]
  %s4 = inlined_call_operand.vmem [shape: f32[1,32], index: 4, kind: input, shape index: {}]
  %s5 = inlined_call_operand.vmem [shape: f32[16,32], index: 5, kind: output, shape index: {}]
  %s6 = sld [smem:[#allocation0]]
  $region30: #{decoder_layer.12} parent=0
    _
  %s8 = ssub.s32 1, %s6
  %s9 = scalar_select 0, %s8, %s6
  // Predicated region
  $region2: #{decoder_layer.12} parent=0 // pred_check
    _
  $region3: #{decoder_layer.12} parent=0 // pred_check_branch
    %11 = sbr.rel (0) target = $region5
  $region4: #{decoder_layer.12} parent=0 // pred_region
    _
  $region5: #{decoder_layer.12} parent=0 // pred_fallthru
    _
  // Predicated region
  $region6: #{decoder_layer.12} parent=0 // pred_check
    _
  $region7: #{decoder_layer.12} parent=0 // pred_check_branch
    %13 = sbr.rel (0) target = $region9
  $region8: #{decoder_layer.12} parent=0 // pred_region
    _
  $region9: #{decoder_layer.12} parent=0 // pred_fallthru
    _
  // Predicated region
  $region10: #{decoder_layer.12} parent=0 // pred_check
    _
  $region11: #{decoder_layer.12} parent=0 // pred_check_branch
    %15 = sbr.rel (0) target = $region13
  $region12: #{decoder_layer.12} parent=0 // pred_region
    _
  $region13: #{decoder_layer.12} parent=0 // pred_fallthru
    _
  // Predicated region
  $region14: #{decoder_layer.12} parent=0 // pred_check
    _
  $region15: #{decoder_layer.12} parent=0 // pred_check_branch
    %17 = sbr.rel (0) target = $region17
  $region16: #{decoder_layer.12} parent=0 // pred_region
    _
  $region17: #{decoder_layer.12} parent=0 // pred_fallthru
    _
  // Predicated region
  $region18: #{decoder_layer.12} parent=0 // pred_check
    _
  $region19: #{decoder_layer.12} parent=0 // pred_check_branch
    %19 = sbr.rel (0) target = $region21
  $region20: #{decoder_layer.12} parent=0 // pred_region
    _
  $region21: #{decoder_layer.12} parent=0 // pred_fallthru
    _
  %v20 = vld [vmem:[%s0] sm:$0xff]
  %v21 = vld [vmem:[%s0 + $0x8] sm:$0xff]
  %v22 = vld [vmem:[%s1] sm:$0x1]
  %v23 = vld [vmem:[%s2] sm:$0x1]
  %vm24 = vcmask 261120
  %v25 = vsel %vm24, %v20, 0.0
  %26 = vadd.xlane.f32.xlu0 %v25
  %v27 = vpop.xlane.xlu0 %26
  %v28 = vsel %vm24, %v21, 0.0
  %29 = vadd.xlane.f32.xlu0 %v28
  %v30 = vpop.xlane.xlu0 %29
  %v31 = vrcp.pop 32.0
  %v32 = vmul.f32 %v27, %v31
  %v33 = vmul.f32 %v30, %v31
  %v34 = vsub.f32 %v20, %v32
  %v35 = vsub.f32 %v21, %v33
  %v36 = vmul.f32 %v34, %v34
  %v37 = vmul.f32 %v35, %v35
  %v38 = vsel %vm24, %v36, 0.0
  %39 = vadd.xlane.f32.xlu0 %v38
  %v40 = vpop.xlane.xlu0 %39
  %v41 = vsel %vm24, %v37, 0.0
  %42 = vadd.xlane.f32.xlu0 %v41
  %v43 = vpop.xlane.xlu0 %42
  %v44 = vmul.f32 %v40, %v31
  %v45 = vmul.f32 %v43, %v31
  %v46 = vadd.f32 %v44, 1e-05
  %v47 = vadd.f32 %v45, 1e-05
  %v48 = vrsqrt.pop %v46
  %v49 = vrsqrt.pop %v47
  %v50 = vmul.f32 %v34, %v48
  %v51 = vmul.f32 %v35, %v49
  %v53 = vlaneseq
  %v54 = vshrl.u32 %v53, 7
  %v55 = vsub.s32 0, %v54
  %v56 = vrot.slane %v22, %v55
  %v58 = vmul.f32 %v50, %v56
  %v59 = vmul.f32 %v51, %v56
  %v61 = vlaneseq
  %v62 = vshrl.u32 %v61, 7
  %v63 = vsub.s32 0, %v62
  %v64 = vrot.slane %v23, %v63
  %v66 = vadd.f32 %v58, %v64
  %v67 = vadd.f32 %v59, %v64
  %v68 = vld [vmem:[%s3] sm:$0xff]
  %v69 = vld [vmem:[%s3 + $0x8] sm:$0xff]
  %v70 = vld [vmem:[%s3 + $0x10] sm:$0xff]
  %v71 = vld [vmem:[%s3 + $0x18] sm:$0xff]
  %v72 = vld [vmem:[%s4] sm:$0x1]
  %v74 = vlaneseq
  %v75 = vshrl.u32 %v74, 7
  %v76 = vsub.s32 0, %v75
  %v77 = vrot.slane %v72, %v76
  %v80 = vsel %vm24, %v66, 0
  %v83 = vsel %vm24, %v67, 0
  %85 = vmatprep.subr.mxu0 0.0
  %86 = vmatpush1.msra.mxu0 %v68
  %87 = vmatprep.subr.mxu0 0.0
  %88 = vmatpush1.msra.mxu0 %v69
  %89 = vmatprep.subr.mxu0 0.0
  %90 = vmatpush1.msra.mxu0 %v70
  %91 = vmatprep.subr.mxu0 0.0
  %92 = vmatpush1.msra.mxu0 %v71
  %93 = vmatprep.subr.mxu0 0.0
  %94 = vmatpush1.msra.mxu0 0.0
  %95 = vmatprep.subr.mxu0 0.0
  %96 = vmatpush1.msra.mxu0 0.0
  %97 = vmatprep.subr.mxu0 0.0
  %98 = vmatpush1.msra.mxu0 0.0
  %99 = vmatprep.subr.mxu0 0.0
  %100 = vmatpush1.msra.mxu0 0.0
  %101 = vmatprep.subr.mxu0 0.0
  %102 = vmatpush1.msra.mxu0 0.0
  %103 = vmatprep.subr.mxu0 0.0
  %104 = vmatpush1.msra.mxu0 0.0
  %105 = vmatprep.subr.mxu0 0.0
  %106 = vmatpush1.msra.mxu0 0.0
  %107 = vmatprep.subr.mxu0 0.0
  %108 = vmatpush1.msra.mxu0 0.0
  %109 = vmatprep.subr.mxu0 0.0
  %110 = vmatpush1.msra.mxu0 0.0
  %111 = vmatprep.subr.mxu0 0.0
  %112 = vmatpush1.msra.mxu0 0.0
  %113 = vmatprep.subr.mxu0 0.0
  %114 = vmatpush1.msra.mxu0 0.0
  %115 = vmatprep.subr.mxu0 0.0
  %116 = vmatpush1.msra.mxu0 0.0
  %117 = vmatprep.subr.mxu0 0.0
  %118 = vmatpush1.msra.mxu0 0.0
  %119 = vmatprep.subr.mxu0 0.0
  %120 = vmatpush1.msra.mxu0 0.0
  %121 = vmatprep.subr.mxu0 0.0
  %122 = vmatpush1.msra.mxu0 0.0
  %123 = vmatprep.subr.mxu0 0.0
  %124 = vmatpush1.msra.mxu0 0.0
  %125 = vmatprep.subr.mxu0 0.0
  %126 = vmatpush1.msra.mxu0 0.0
  %127 = vmatprep.subr.mxu0 0.0
  %128 = vmatpush1.msra.mxu0 0.0
  %129 = vmatprep.subr.mxu0 0.0
  %130 = vmatpush1.msra.mxu0 0.0
  %131 = vmatprep.subr.mxu0 0.0
  %132 = vmatpush1.msra.mxu0 0.0
  %133 = vmatprep.subr.mxu0 0.0
  %134 = vmatpush1.msra.mxu0 0.0
  %135 = vmatprep.subr.mxu0 0.0
  %136 = vmatpush1.msra.mxu0 0.0
  %137 = vmatprep.subr.mxu0 0.0
  %138 = vmatpush1.msra.mxu0 0.0
  %139 = vmatprep.subr.mxu0 0.0
  %140 = vmatpush1.msra.mxu0 0.0
  %141 = vmatprep.subr.mxu0 0.0
  %142 = vmatpush1.msra.mxu0 0.0
  %143 = vmatprep.subr.mxu0 0.0
  %144 = vmatpush1.msra.mxu0 0.0
  %145 = vmatprep.subr.mxu0 0.0
  %146 = vmatpush1.msra.mxu0 0.0
  %147 = vmatprep.subr.mxu0 0.0
  %148 = vmatpush1.msra.mxu0 0.0
  %149 = vmatprep.mubr.f32.mxu0 0.0
  %150 = vmatmul.mubr.f32.gmra.mrb[0].mxu0 %v80
  %v151 = vpop.f32.mrb[0].mxu0
  %v152 = vadd.f32 %v77, %v151
  %v153 = vpop.f32.mrb[0].mxu0
  %154 = vmatprep.mubr.f32.mxu0 0.0
  %155 = vmatmul.mubr.f32.gmra.mrb[0].mxu0 %v83
  %v156 = vpop.f32.mrb[0].mxu0
  %v157 = vadd.f32 %v77, %v156
  %v158 = vpop.f32.mrb[0].mxu0
  %159 = vdwg.mxu0
  %v160 = vmul.f32 %v152, 0.35355338
  %v161 = vmul.f32 %v157, 0.35355338
  %162 = vst.msk [vmem:[%s5] sm:$0xff] %vm24, %v160
  %163 = vst.msk [vmem:[%s5 + $0x8] sm:$0xff] %vm24, %v161
  // Predicated region
  $region22: #{decoder_layer.12} parent=0 // pred_check
    _
  $region23: #{decoder_layer.12} parent=0 // pred_check_branch
    %165 = sbr.rel (0) target = $region25
  $region24: #{decoder_layer.12} parent=0 // pred_region
    _
  $region25: #{decoder_layer.12} parent=0 // pred_fallthru
    _
  // Predicated region
  $region26: #{decoder_layer.12} parent=0 // pred_check
    _
  $region27: #{decoder_layer.12} parent=0 // pred_check_branch
    %167 = sbr.rel (0) target = $region29
  $region28: #{decoder_layer.12} parent=0 // pred_region
    _
  $region29: #{decoder_layer.12} parent=0 // pred_fallthru
    _

// kernel: decoder_layer.9
$region0: #{decoder_layer.9}
  #allocation0 [shape = 'u32[]', space=smem, size = 0x4, offset = 0x4, fixed_abs, tag = 'smem constant byte address 0x4 - core index']
  #allocation1 [shape = 'u32[144,128]{1,0:T(1,128)}', space=vmem, size = 0x12000, scoped, tag = 'internal scratch']
  %s0 = inlined_call_operand.vmem [shape: f32[16,32], index: 0, kind: input, shape index: {}]
  %s1 = inlined_call_operand.vmem [shape: f32[1,32], index: 1, kind: input, shape index: {}]
  %s2 = inlined_call_operand.vmem [shape: f32[1,32], index: 2, kind: input, shape index: {}]
  %s3 = inlined_call_operand.vmem [shape: f32[32,32], index: 3, kind: input, shape index: {}]
  %s4 = inlined_call_operand.vmem [shape: f32[1,32], index: 4, kind: input, shape index: {}]
  %s5 = inlined_call_operand.vmem [shape: f32[32,32], index: 5, kind: input, shape index: {}]
  %s6 = inlined_call_operand.vmem [shape: f32[1,32], index: 6, kind: input, shape index: {}]
  %s7 = inlined_call_operand.hbm [shape: f32[32,32], index: 7, kind: input, shape index: {}]
  %s8 = inlined_call_operand.vmem [shape: f32[1,32], index: 8, kind: input, shape index: {}]
  %s9 = inlined_call_operand.vmem [shape: f32[16,32], index: 9, kind: output, shape index: {0}]
  %s10 = inlined_call_operand.vmem [shape: f32[16,32], index: 10, kind: output, shape index: {1}]
  %s11 = inlined_call_operand.vmem [shape: f32[16,32], index: 11, kind: output, shape index: {2}]
  %12 = xla_tuple %s9, %s10, %s11
  %s13 = sld [smem:[#allocation0]]
  $region66: #{decoder_layer.9} parent=0
    _
  %s15 = ssub.s32 1, %s13
  %s16 = scalar_select 0, %s15, %s13
  $region1: #{decoder_layer.9} parent=0
    #allocation2 [shape = 'u8[16384]{0}', space=vmem, size = 0x4000, scoped, tag = 'input window, operand 7, single buffered']
    #allocation3 [shape = 's32[1]{0}', space=sflag, size = 0x4, scoped, tag = 'scoped memory for decoder_layer.9']
    %17 = vsyncpa [#allocation3], 0
    // Predicated region
    $region2: #{decoder_layer.9} parent=1 // pred_check
      _
    $region3: #{decoder_layer.9} parent=1 // pred_check_branch
      %19 = sbr.rel (0) target = $region5
    $region4: #{decoder_layer.9} parent=1 // pred_region
      _
    $region5: #{decoder_layer.9} parent=1 // pred_fallthru
      _
    // Predicated region
    $region6: #{decoder_layer.9} parent=1 // pred_check
      _
    $region7: #{decoder_layer.9} parent=1 // pred_check_branch
      %21 = sbr.rel (0) target = $region9
    $region8: #{decoder_layer.9} parent=1 // pred_region
      _
    $region9: #{decoder_layer.9} parent=1 // pred_fallthru
      _
    // Predicated region
    $region10: #{decoder_layer.9} parent=1 // pred_check
      _
    $region11: #{decoder_layer.9} parent=1 // pred_check_branch
      %23 = sbr.rel (0) target = $region13
    $region12: #{decoder_layer.9} parent=1 // pred_region
      _
    $region13: #{decoder_layer.9} parent=1 // pred_fallthru
      _
    // Predicated region
    $region14: #{decoder_layer.9} parent=1 // pred_check
      _
    $region15: #{decoder_layer.9} parent=1 // pred_check_branch
      %25 = sbr.rel (0) target = $region17
    $region16: #{decoder_layer.9} parent=1 // pred_region
      _
    $region17: #{decoder_layer.9} parent=1 // pred_fallthru
      _
    // Predicated region
    $region18: #{decoder_layer.9} parent=1 // pred_check
      _
    $region19: #{decoder_layer.9} parent=1 // pred_check_branch
      %27 = sbr.rel (0) target = $region21
    $region20: #{decoder_layer.9} parent=1 // pred_region
      _
    $region21: #{decoder_layer.9} parent=1 // pred_fallthru
      _
    // Predicated region
    $region22: #{decoder_layer.9} parent=1 // pred_check
      _
    $region23: #{decoder_layer.9} parent=1 // pred_check_branch
      %29 = sbr.rel (0) target = $region25
    $region24: #{decoder_layer.9} parent=1 // pred_region
      _
    $region25: #{decoder_layer.9} parent=1 // pred_fallthru
      _
    // Predicated region
    $region26: #{decoder_layer.9} parent=1 // pred_check
      _
    $region27: #{decoder_layer.9} parent=1 // pred_check_branch
      %31 = sbr.rel (0) target = $region29
    $region28: #{decoder_layer.9} parent=1 // pred_region
      _
    $region29: #{decoder_layer.9} parent=1 // pred_fallthru
      _
    // Predicated region
    $region30: #{decoder_layer.9} parent=1 // pred_check
      _
    $region31: #{decoder_layer.9} parent=1 // pred_check_branch
      %33 = sbr.rel (0) target = $region33
    $region32: #{decoder_layer.9} parent=1 // pred_region
      %s35 = ssub.s32 512, 512
      %36 = vsyncadd [#allocation3], %s35
      %s37 = sshll.u32 [#allocation2], 4
      %s38 = int_to_ptr.vmem [resolvable:$true] %s37
      %43 = dma.hbm_to_vmem [thread:$0]  %s7, 512, %s38, [#allocation3], 128, 128, 8
    $region33: #{decoder_layer.9} parent=1 // pred_fallthru
      _
    // Predicated region
    $region34: #{decoder_layer.9} parent=1 // pred_check
      _
    $region35: #{decoder_layer.9} parent=1 // pred_check_branch
      %45 = sbr.rel (0) target = $region37
    $region36: #{decoder_layer.9} parent=1 // pred_region
      _
    $region37: #{decoder_layer.9} parent=1 // pred_fallthru
      _
    // Predicated region
    $region38: #{decoder_layer.9} parent=1 // pred_check
      _
    $region39: #{decoder_layer.9} parent=1 // pred_check_branch
      %47 = sbr.rel (0) target = $region41
    $region40: #{decoder_layer.9} parent=1 // pred_region
      %48 = dma.done [#allocation3], 512
    $region41: #{decoder_layer.9} parent=1 // pred_fallthru
      _
    %v49 = vld [vmem:[%s0] sm:$0xff]
    %v50 = vld [vmem:[%s0 + $0x8] sm:$0xff]
    %v51 = vld [vmem:[%s1] sm:$0x1]
    %v52 = vld [vmem:[%s2] sm:$0x1]
    %vm53 = vcmask 261120
    %v54 = vsel %vm53, %v49, 0.0
    %55 = vadd.xlane.f32.xlu0 %v54
    %v56 = vpop.xlane.xlu0 %55
    %v57 = vsel %vm53, %v50, 0.0
    %58 = vadd.xlane.f32.xlu0 %v57
    %v59 = vpop.xlane.xlu0 %58
    %v60 = vrcp.pop 32.0
    %v61 = vmul.f32 %v56, %v60
    %v62 = vmul.f32 %v59, %v60
    %v63 = vsub.f32 %v49, %v61
    %v64 = vsub.f32 %v50, %v62
    %v65 = vmul.f32 %v63, %v63
    %v66 = vmul.f32 %v64, %v64
    %v67 = vsel %vm53, %v65, 0.0
    %68 = vadd.xlane.f32.xlu0 %v67
    %v69 = vpop.xlane.xlu0 %68
    %v70 = vsel %vm53, %v66, 0.0
    %71 = vadd.xlane.f32.xlu0 %v70
    %v72 = vpop.xlane.xlu0 %71
    %v73 = vmul.f32 %v69, %v60
    %v74 = vmul.f32 %v72, %v60
    %v75 = vadd.f32 %v73, 1e-05
    %v76 = vadd.f32 %v74, 1e-05
    %v77 = vrsqrt.pop %v75
    %v78 = vrsqrt.pop %v76
    %v79 = vmul.f32 %v63, %v77
    %v80 = vmul.f32 %v64, %v78
    %v82 = vlaneseq
    %v83 = vshrl.u32 %v82, 7
    %v84 = vsub.s32 0, %v83
    %v85 = vrot.slane %v51, %v84
    %v87 = vmul.f32 %v79, %v85
    %v88 = vmul.f32 %v80, %v85
    %v90 = vlaneseq
    %v91 = vshrl.u32 %v90, 7
    %v92 = vsub.s32 0, %v91
    %v93 = vrot.slane %v52, %v92
    %v95 = vadd.f32 %v87, %v93
    %v96 = vadd.f32 %v88, %v93
    %v97 = vld [vmem:[%s3] sm:$0xff]
    %v98 = vld [vmem:[%s3 + $0x8] sm:$0xff]
    %v99 = vld [vmem:[%s3 + $0x10] sm:$0xff]
    %v100 = vld [vmem:[%s3 + $0x18] sm:$0xff]
    %v101 = vld [vmem:[%s4] sm:$0x1]
    %v103 = vlaneseq
    %v104 = vshrl.u32 %v103, 7
    %v105 = vsub.s32 0, %v104
    %v106 = vrot.slane %v101, %v105
    %v109 = vsel %vm53, %v95, 0
    %v112 = vsel %vm53, %v96, 0
    %114 = vmatprep.subr.mxu0 0.0
    %115 = vmatpush1.msra.mxu0 %v97
    %116 = vmatprep.subr.mxu0 0.0
    %117 = vmatpush1.msra.mxu0 %v98
    %118 = vmatprep.subr.mxu0 0.0
    %119 = vmatpush1.msra.mxu0 %v99
    %120 = vmatprep.subr.mxu0 0.0
    %121 = vmatpush1.msra.mxu0 %v100
    %122 = vmatprep.subr.mxu0 0.0
    %123 = vmatpush1.msra.mxu0 0.0
    %124 = vmatprep.subr.mxu0 0.0
    %125 = vmatpush1.msra.mxu0 0.0
    %126 = vmatprep.subr.mxu0 0.0
    %127 = vmatpush1.msra.mxu0 0.0
    %128 = vmatprep.subr.mxu0 0.0
    %129 = vmatpush1.msra.mxu0 0.0
    %130 = vmatprep.subr.mxu0 0.0
    %131 = vmatpush1.msra.mxu0 0.0
    %132 = vmatprep.subr.mxu0 0.0
    %133 = vmatpush1.msra.mxu0 0.0
    %134 = vmatprep.subr.mxu0 0.0
    %135 = vmatpush1.msra.mxu0 0.0
    %136 = vmatprep.subr.mxu0 0.0
    %137 = vmatpush1.msra.mxu0 0.0
    %138 = vmatprep.subr.mxu0 0.0
    %139 = vmatpush1.msra.mxu0 0.0
    %140 = vmatprep.subr.mxu0 0.0
    %141 = vmatpush1.msra.mxu0 0.0
    %142 = vmatprep.subr.mxu0 0.0
    %143 = vmatpush1.msra.mxu0 0.0
    %144 = vmatprep.subr.mxu0 0.0
    %145 = vmatpush1.msra.mxu0 0.0
    %146 = vmatprep.subr.mxu0 0.0
    %147 = vmatpush1.msra.mxu0 0.0
    %148 = vmatprep.subr.mxu0 0.0
    %149 = vmatpush1.msra.mxu0 0.0
    %150 = vmatprep.subr.mxu0 0.0
    %151 = vmatpush1.msra.mxu0 0.0
    %152 = vmatprep.subr.mxu0 0.0
    %153 = vmatpush1.msra.mxu0 0.0
    %154 = vmatprep.subr.mxu0 0.0
    %155 = vmatpush1.msra.mxu0 0.0
    %156 = vmatprep.subr.mxu0 0.0
    %157 = vmatpush1.msra.mxu0 0.0
    %158 = vmatprep.subr.mxu0 0.0
    %159 = vmatpush1.msra.mxu0 0.0
    %160 = vmatprep.subr.mxu0 0.0
    %161 = vmatpush1.msra.mxu0 0.0
    %162 = vmatprep.subr.mxu0 0.0
    %163 = vmatpush1.msra.mxu0 0.0
    %164 = vmatprep.subr.mxu0 0.0
    %165 = vmatpush1.msra.mxu0 0.0
    %166 = vmatprep.subr.mxu0 0.0
    %167 = vmatpush1.msra.mxu0 0.0
    %168 = vmatprep.subr.mxu0 0.0
    %169 = vmatpush1.msra.mxu0 0.0
    %170 = vmatprep.subr.mxu0 0.0
    %171 = vmatpush1.msra.mxu0 0.0
    %172 = vmatprep.subr.mxu0 0.0
    %173 = vmatpush1.msra.mxu0 0.0
    %174 = vmatprep.subr.mxu0 0.0
    %175 = vmatpush1.msra.mxu0 0.0
    %176 = vmatprep.subr.mxu0 0.0
    %177 = vmatpush1.msra.mxu0 0.0
    %178 = vmatprep.mubr.f32.mxu0 0.0
    %179 = vmatmul.mubr.f32.gmra.mrb[0].mxu0 %v109
    %v180 = vpop.f32.mrb[0].mxu0
    %v181 = vadd.f32 %v106, %v180
    %v182 = vpop.f32.mrb[0].mxu0
    %183 = vmatprep.mubr.f32.mxu0 0.0
    %184 = vmatmul.mubr.f32.gmra.mrb[0].mxu0 %v112
    %v185 = vpop.f32.mrb[0].mxu0
    %v186 = vadd.f32 %v106, %v185
    %v187 = vpop.f32.mrb[0].mxu0
    %188 = vdwg.mxu0
    %v189 = vmul.f32 %v181, 0.35355338
    %v190 = vmul.f32 %v186, 0.35355338
    %191 = vst.msk [vmem:[%s9] sm:$0xff] %vm53, %v189
    %192 = vst.msk [vmem:[%s9 + $0x8] sm:$0xff] %vm53, %v190
    %v193 = vld [vmem:[%s5] sm:$0xff]
    %v194 = vld [vmem:[%s5 + $0x8] sm:$0xff]
    %v195 = vld [vmem:[%s5 + $0x10] sm:$0xff]
    %v196 = vld [vmem:[%s5 + $0x18] sm:$0xff]
    %v197 = vld [vmem:[%s6] sm:$0x1]
    %v199 = vlaneseq
    %v200 = vshrl.u32 %v199, 7
    %v201 = vsub.s32 0, %v200
    %v202 = vrot.slane %v197, %v201
    %204 = vmatprep.subr.mxu0 0.0
    %205 = vmatpush1.msra.mxu0 %v193
    %206 = vmatprep.subr.mxu0 0.0
    %207 = vmatpush1.msra.mxu0 %v194
    %208 = vmatprep.subr.mxu0 0.0
    %209 = vmatpush1.msra.mxu0 %v195
    %210 = vmatprep.subr.mxu0 0.0
    %211 = vmatpush1.msra.mxu0 %v196
    %212 = vmatprep.subr.mxu0 0.0
    %213 = vmatpush1.msra.mxu0 0.0
    %214 = vmatprep.subr.mxu0 0.0
    %215 = vmatpush1.msra.mxu0 0.0
    %216 = vmatprep.subr.mxu0 0.0
    %217 = vmatpush1.msra.mxu0 0.0
    %218 = vmatprep.subr.mxu0 0.0
    %219 = vmatpush1.msra.mxu0 0.0
    %220 = vmatprep.subr.mxu0 0.0
    %221 = vmatpush1.msra.mxu0 0.0
    %222 = vmatprep.subr.mxu0 0.0
    %223 = vmatpush1.msra.mxu0 0.0
    %224 = vmatprep.subr.mxu0 0.0
    %225 = vmatpush1.msra.mxu0 0.0
    %226 = vmatprep.subr.mxu0 0.0
    %227 = vmatpush1.msra.mxu0 0.0
    %228 = vmatprep.subr.mxu0 0.0
    %229 = vmatpush1.msra.mxu0 0.0
    %230 = vmatprep.subr.mxu0 0.0
    %231 = vmatpush1.msra.mxu0 0.0
    %232 = vmatprep.subr.mxu0 0.0
    %233 = vmatpush1.msra.mxu0 0.0
    %234 = vmatprep.subr.mxu0 0.0
    %235 = vmatpush1.msra.mxu0 0.0
    %236 = vmatprep.subr.mxu0 0.0
    %237 = vmatpush1.msra.mxu0 0.0
    %238 = vmatprep.subr.mxu0 0.0
    %239 = vmatpush1.msra.mxu0 0.0
    %240 = vmatprep.subr.mxu0 0.0
    %241 = vmatpush1.msra.mxu0 0.0
    %242 = vmatprep.subr.mxu0 0.0
    %243 = vmatpush1.msra.mxu0 0.0
    %244 = vmatprep.subr.mxu0 0.0
    %245 = vmatpush1.msra.mxu0 0.0
    %246 = vmatprep.subr.mxu0 0.0
    %247 = vmatpush1.msra.mxu0 0.0
    %248 = vmatprep.subr.mxu0 0.0
    %249 = vmatpush1.msra.mxu0 0.0
    %250 = vmatprep.subr.mxu0 0.0
    %251 = vmatpush1.msra.mxu0 0.0
    %252 = vmatprep.subr.mxu0 0.0
    %253 = vmatpush1.msra.mxu0 0.0
    %254 = vmatprep.subr.mxu0 0.0
    %255 = vmatpush1.msra.mxu0 0.0
    %256 = vmatprep.subr.mxu0 0.0
    %257 = vmatpush1.msra.mxu0 0.0
    %258 = vmatprep.subr.mxu0 0.0
    %259 = vmatpush1.msra.mxu0 0.0
    %260 = vmatprep.subr.mxu0 0.0
    %261 = vmatpush1.msra.mxu0 0.0
    %262 = vmatprep.subr.mxu0 0.0
    %263 = vmatpush1.msra.mxu0 0.0
    %264 = vmatprep.subr.mxu0 0.0
    %265 = vmatpush1.msra.mxu0 0.0
    %266 = vmatprep.subr.mxu0 0.0
    %267 = vmatpush1.msra.mxu0 0.0
    %268 = vmatprep.mubr.f32.mxu0 0.0
    %269 = vmatmul.mubr.f32.gmra.mrb[0].mxu0 %v109
    %v270 = vpop.f32.mrb[0].mxu0
    %v271 = vadd.f32 %v202, %v270
    %v272 = vpop.f32.mrb[0].mxu0
    %273 = vmatprep.mubr.f32.mxu0 0.0
    %274 = vmatmul.mubr.f32.gmra.mrb[0].mxu0 %v112
    %v275 = vpop.f32.mrb[0].mxu0
    %v276 = vadd.f32 %v202, %v275
    %v277 = vpop.f32.mrb[0].mxu0
    %278 = vdwg.mxu0
    %279 = vst.msk [vmem:[%s10] sm:$0xff] %vm53, %v271
    %280 = vst.msk [vmem:[%s10 + $0x8] sm:$0xff] %vm53, %v276
    %v281 = vld [vmem:[#allocation2] sm:$0xff]
    %v282 = vld [vmem:[#allocation2 + $0x8] sm:$0xff]
    %v283 = vld [vmem:[#allocation2 + $0x10] sm:$0xff]
    %v284 = vld [vmem:[#allocation2 + $0x18] sm:$0xff]
    %v285 = vld [vmem:[%s8] sm:$0x1]
    %v287 = vlaneseq
    %v288 = vshrl.u32 %v287, 7
    %v289 = vsub.s32 0, %v288
    %v290 = vrot.slane %v285, %v289
    %292 = vmatprep.subr.mxu0 0.0
    %293 = vmatpush1.msra.mxu0 %v281
    %294 = vmatprep.subr.mxu0 0.0
    %295 = vmatpush1.msra.mxu0 %v282
    %296 = vmatprep.subr.mxu0 0.0
    %297 = vmatpush1.msra.mxu0 %v283
    %298 = vmatprep.subr.mxu0 0.0
    %299 = vmatpush1.msra.mxu0 %v284
    %300 = vmatprep.subr.mxu0 0.0
    %301 = vmatpush1.msra.mxu0 0.0
    %302 = vmatprep.subr.mxu0 0.0
    %303 = vmatpush1.msra.mxu0 0.0
    %304 = vmatprep.subr.mxu0 0.0
    %305 = vmatpush1.msra.mxu0 0.0
    %306 = vmatprep.subr.mxu0 0.0
    %307 = vmatpush1.msra.mxu0 0.0
    %308 = vmatprep.subr.mxu0 0.0
    %309 = vmatpush1.msra.mxu0 0.0
    %310 = vmatprep.subr.mxu0 0.0
    %311 = vmatpush1.msra.mxu0 0.0
    %312 = vmatprep.subr.mxu0 0.0
    %313 = vmatpush1.msra.mxu0 0.0
    %314 = vmatprep.subr.mxu0 0.0
    %315 = vmatpush1.msra.mxu0 0.0
    %316 = vmatprep.subr.mxu0 0.0
    %317 = vmatpush1.msra.mxu0 0.0
    %318 = vmatprep.subr.mxu0 0.0
    %319 = vmatpush1.msra.mxu0 0.0
    %320 = vmatprep.subr.mxu0 0.0
    %321 = vmatpush1.msra.mxu0 0.0
    %322 = vmatprep.subr.mxu0 0.0
    %323 = vmatpush1.msra.mxu0 0.0
    %324 = vmatprep.subr.mxu0 0.0
    %325 = vmatpush1.msra.mxu0 0.0
    %326 = vmatprep.subr.mxu0 0.0
    %327 = vmatpush1.msra.mxu0 0.0
    %328 = vmatprep.subr.mxu0 0.0
    %329 = vmatpush1.msra.mxu0 0.0
    %330 = vmatprep.subr.mxu0 0.0
    %331 = vmatpush1.msra.mxu0 0.0
    %332 = vmatprep.subr.mxu0 0.0
    %333 = vmatpush1.msra.mxu0 0.0
    %334 = vmatprep.subr.mxu0 0.0
    %335 = vmatpush1.msra.mxu0 0.0
    %336 = vmatprep.subr.mxu0 0.0
    %337 = vmatpush1.msra.mxu0 0.0
    %338 = vmatprep.subr.mxu0 0.0
    %339 = vmatpush1.msra.mxu0 0.0
    %340 = vmatprep.subr.mxu0 0.0
    %341 = vmatpush1.msra.mxu0 0.0
    %342 = vmatprep.subr.mxu0 0.0
    %343 = vmatpush1.msra.mxu0 0.0
    %344 = vmatprep.subr.mxu0 0.0
    %345 = vmatpush1.msra.mxu0 0.0
    %346 = vmatprep.subr.mxu0 0.0
    %347 = vmatpush1.msra.mxu0 0.0
    %348 = vmatprep.subr.mxu0 0.0
    %349 = vmatpush1.msra.mxu0 0.0
    %350 = vmatprep.subr.mxu0 0.0
    %351 = vmatpush1.msra.mxu0 0.0
    %352 = vmatprep.subr.mxu0 0.0
    %353 = vmatpush1.msra.mxu0 0.0
    %354 = vmatprep.subr.mxu0 0.0
    %355 = vmatpush1.msra.mxu0 0.0
    %356 = vmatprep.mubr.f32.mxu0 0.0
    %357 = vmatmul.mubr.f32.gmra.mrb[0].mxu0 %v109
    %v358 = vpop.f32.mrb[0].mxu0
    %v359 = vadd.f32 %v290, %v358
    %v360 = vpop.f32.mrb[0].mxu0
    %361 = vmatprep.mubr.f32.mxu0 0.0
    %362 = vmatmul.mubr.f32.gmra.mrb[0].mxu0 %v112
    %v363 = vpop.f32.mrb[0].mxu0
    %v364 = vadd.f32 %v290, %v363
    %v365 = vpop.f32.mrb[0].mxu0
    %366 = vdwg.mxu0
    %367 = vst.msk [vmem:[%s11] sm:$0xff] %vm53, %v359
    %368 = vst.msk [vmem:[%s11 + $0x8] sm:$0xff] %vm53, %v364
    // Predicated region
    $region42: #{decoder_layer.9} parent=1 // pred_check
      _
    $region43: #{decoder_layer.9} parent=1 // pred_check_branch
      %370 = sbr.rel (0) target = $region45
    $region44: #{decoder_layer.9} parent=1 // pred_region
      _
    $region45: #{decoder_layer.9} parent=1 // pred_fallthru
      _
    // Predicated region
    $region46: #{decoder_layer.9} parent=1 // pred_check
      _
    $region47: #{decoder_layer.9} parent=1 // pred_check_branch
      %372 = sbr.rel (0) target = $region49
    $region48: #{decoder_layer.9} parent=1 // pred_region
      _
    $region49: #{decoder_layer.9} parent=1 // pred_fallthru
      _
    // Predicated region
    $region50: #{decoder_layer.9} parent=1 // pred_check
      _
    $region51: #{decoder_layer.9} parent=1 // pred_check_branch
      %374 = sbr.rel (0) target = $region53
    $region52: #{decoder_layer.9} parent=1 // pred_region
      _
    $region53: #{decoder_layer.9} parent=1 // pred_fallthru
      _
    // Predicated region
    $region54: #{decoder_layer.9} parent=1 // pred_check
      _
    $region55: #{decoder_layer.9} parent=1 // pred_check_branch
      %376 = sbr.rel (0) target = $region57
    $region56: #{decoder_layer.9} parent=1 // pred_region
      _
    $region57: #{decoder_layer.9} parent=1 // pred_fallthru
      _
    // Predicated region
    $region58: #{decoder_layer.9} parent=1 // pred_check
      _
    $region59: #{decoder_layer.9} parent=1 // pred_check_branch
      %378 = sbr.rel (0) target = $region61
    $region60: #{decoder_layer.9} parent=1 // pred_region
      _
    $region61: #{decoder_layer.9} parent=1 // pred_fallthru
      _
    // Predicated region
    $region62: #{decoder_layer.9} parent=1 // pred_check
      _
    $region63: #{decoder_layer.9} parent=1 // pred_check_branch
      %380 = sbr.rel (0) target = $region65
    $region64: #{decoder_layer.9} parent=1 // pred_region
      _
    $region65: #{decoder_layer.9} parent=1 // pred_fallthru
      _
    %381 = vsyncpa [#allocation3], 1

// kernel: decoder_layer.11
$region0: #{decoder_layer.11}
  #allocation0 [shape = 'u32[]', space=smem, size = 0x4, offset = 0x4, fixed_abs, tag = 'smem constant byte address 0x4 - core index']
  #allocation1 [shape = 'u32[144,128]{1,0:T(1,128)}', space=vmem, size = 0x12000, scoped, tag = 'internal scratch']
  %s0 = inlined_call_operand.vmem [shape: f32[16,32], index: 0, kind: input, shape index: {}]
  %s1 = inlined_call_operand.vmem [shape: f32[16,32], index: 1, kind: input, shape index: {}]
  %s2 = inlined_call_operand.vmem [shape: f32[32,32], index: 2, kind: input, shape index: {}]
  %s3 = inlined_call_operand.vmem [shape: f32[1,32], index: 3, kind: input, shape index: {}]
  %s4 = inlined_call_operand.vmem [shape: f32[16,32], index: 4, kind: output, shape index: {}]
  %s5 = sld [smem:[#allocation0]]
  $region26: #{decoder_layer.11} parent=0
    _
  %s7 = ssub.s32 1, %s5
  %s8 = scalar_select 0, %s7, %s5
  // Predicated region
  $region2: #{decoder_layer.11} parent=0 // pred_check
    _
  $region3: #{decoder_layer.11} parent=0 // pred_check_branch
    %10 = sbr.rel (0) target = $region5
  $region4: #{decoder_layer.11} parent=0 // pred_region
    _
  $region5: #{decoder_layer.11} parent=0 // pred_fallthru
    _
  // Predicated region
  $region6: #{decoder_layer.11} parent=0 // pred_check
    _
  $region7: #{decoder_layer.11} parent=0 // pred_check_branch
    %12 = sbr.rel (0) target = $region9
  $region8: #{decoder_layer.11} parent=0 // pred_region
    _
  $region9: #{decoder_layer.11} parent=0 // pred_fallthru
    _
  // Predicated region
  $region10: #{decoder_layer.11} parent=0 // pred_check
    _
  $region11: #{decoder_layer.11} parent=0 // pred_check_branch
    %14 = sbr.rel (0) target = $region13
  $region12: #{decoder_layer.11} parent=0 // pred_region
    _
  $region13: #{decoder_layer.11} parent=0 // pred_fallthru
    _
  // Predicated region
  $region14: #{decoder_layer.11} parent=0 // pred_check
    _
  $region15: #{decoder_layer.11} parent=0 // pred_check_branch
    %16 = sbr.rel (0) target = $region17
  $region16: #{decoder_layer.11} parent=0 // pred_region
    _
  $region17: #{decoder_layer.11} parent=0 // pred_fallthru
    _
  %v17 = vld [vmem:[%s0] sm:$0xff]
  %v18 = vld [vmem:[%s0 + $0x8] sm:$0xff]
  %v19 = vld [vmem:[%s2] sm:$0xff]
  %v20 = vld [vmem:[%s2 + $0x8] sm:$0xff]
  %v21 = vld [vmem:[%s2 + $0x10] sm:$0xff]
  %v22 = vld [vmem:[%s2 + $0x18] sm:$0xff]
  %v23 = vld [vmem:[%s3] sm:$0x1]
  %v25 = vlaneseq
  %v26 = vshrl.u32 %v25, 7
  %v27 = vsub.s32 0, %v26
  %v28 = vrot.slane %v23, %v27
  %vm30 = vcmask 261120
  %v32 = vsel %vm30, %v17, 0
  %v35 = vsel %vm30, %v18, 0
  %37 = vmatprep.subr.mxu0 0.0
  %38 = vmatpush1.msra.mxu0 %v19
  %39 = vmatprep.subr.mxu0 0.0
  %40 = vmatpush1.msra.mxu0 %v20
  %41 = vmatprep.subr.mxu0 0.0
  %42 = vmatpush1.msra.mxu0 %v21
  %43 = vmatprep.subr.mxu0 0.0
  %44 = vmatpush1.msra.mxu0 %v22
  %45 = vmatprep.subr.mxu0 0.0
  %46 = vmatpush1.msra.mxu0 0.0
  %47 = vmatprep.subr.mxu0 0.0
  %48 = vmatpush1.msra.mxu0 0.0
  %49 = vmatprep.subr.mxu0 0.0
  %50 = vmatpush1.msra.mxu0 0.0
  %51 = vmatprep.subr.mxu0 0.0
  %52 = vmatpush1.msra.mxu0 0.0
  %53 = vmatprep.subr.mxu0 0.0
  %54 = vmatpush1.msra.mxu0 0.0
  %55 = vmatprep.subr.mxu0 0.0
  %56 = vmatpush1.msra.mxu0 0.0
  %57 = vmatprep.subr.mxu0 0.0
  %58 = vmatpush1.msra.mxu0 0.0
  %59 = vmatprep.subr.mxu0 0.0
  %60 = vmatpush1.msra.mxu0 0.0
  %61 = vmatprep.subr.mxu0 0.0
  %62 = vmatpush1.msra.mxu0 0.0
  %63 = vmatprep.subr.mxu0 0.0
  %64 = vmatpush1.msra.mxu0 0.0
  %65 = vmatprep.subr.mxu0 0.0
  %66 = vmatpush1.msra.mxu0 0.0
  %67 = vmatprep.subr.mxu0 0.0
  %68 = vmatpush1.msra.mxu0 0.0
  %69 = vmatprep.subr.mxu0 0.0
  %70 = vmatpush1.msra.mxu0 0.0
  %71 = vmatprep.subr.mxu0 0.0
  %72 = vmatpush1.msra.mxu0 0.0
  %73 = vmatprep.subr.mxu0 0.0
  %74 = vmatpush1.msra.mxu0 0.0
  %75 = vmatprep.subr.mxu0 0.0
  %76 = vmatpush1.msra.mxu0 0.0
  %77 = vmatprep.subr.mxu0 0.0
  %78 = vmatpush1.msra.mxu0 0.0
  %79 = vmatprep.subr.mxu0 0.0
  %80 = vmatpush1.msra.mxu0 0.0
  %81 = vmatprep.subr.mxu0 0.0
  %82 = vmatpush1.msra.mxu0 0.0
  %83 = vmatprep.subr.mxu0 0.0
  %84 = vmatpush1.msra.mxu0 0.0
  %85 = vmatprep.subr.mxu0 0.0
  %86 = vmatpush1.msra.mxu0 0.0
  %87 = vmatprep.subr.mxu0 0.0
  %88 = vmatpush1.msra.mxu0 0.0
  %89 = vmatprep.subr.mxu0 0.0
  %90 = vmatpush1.msra.mxu0 0.0
  %91 = vmatprep.subr.mxu0 0.0
  %92 = vmatpush1.msra.mxu0 0.0
  %93 = vmatprep.subr.mxu0 0.0
  %94 = vmatpush1.msra.mxu0 0.0
  %95 = vmatprep.subr.mxu0 0.0
  %96 = vmatpush1.msra.mxu0 0.0
  %97 = vmatprep.subr.mxu0 0.0
  %98 = vmatpush1.msra.mxu0 0.0
  %99 = vmatprep.subr.mxu0 0.0
  %100 = vmatpush1.msra.mxu0 0.0
  %101 = vmatprep.mubr.f32.mxu0 0.0
  %102 = vmatmul.mubr.f32.gmra.mrb[0].mxu0 %v32
  %v103 = vpop.f32.mrb[0].mxu0
  %v104 = vadd.f32 %v28, %v103
  %v105 = vpop.f32.mrb[0].mxu0
  %106 = vmatprep.mubr.f32.mxu0 0.0
  %107 = vmatmul.mubr.f32.gmra.mrb[0].mxu0 %v35
  %v108 = vpop.f32.mrb[0].mxu0
  %v109 = vadd.f32 %v28, %v108
  %v110 = vpop.f32.mrb[0].mxu0
  %111 = vdwg.mxu0
  %v112 = vld [vmem:[%s1] sm:$0xff]
  %v113 = vld [vmem:[%s1 + $0x8] sm:$0xff]
  %v114 = vadd.f32 %v104, %v112
  %v115 = vadd.f32 %v109, %v113
  %116 = vst.msk [vmem:[%s4] sm:$0xff] %vm30, %v114
  %117 = vst.msk [vmem:[%s4 + $0x8] sm:$0xff] %vm30, %v115
  // Predicated region
  $region18: #{decoder_layer.11} parent=0 // pred_check
    _
  $region19: #{decoder_layer.11} parent=0 // pred_check_branch
    %119 = sbr.rel (0) target = $region21
  $region20: #{decoder_layer.11} parent=0 // pred_region
    _
  $region21: #{decoder_layer.11} parent=0 // pred_fallthru
    _
  // Predicated region
  $region22: #{decoder_layer.11} parent=0 // pred_check
    _
  $region23: #{decoder_layer.11} parent=0 // pred_check_branch
    %121 = sbr.rel (0) target = $region25
  $region24: #{decoder_layer.11} parent=0 // pred_region
    _
  $region25: #{decoder_layer.11} parent=0 // pred_fallthru
    _

// kernel: decoder_layer.10
$region0: #{decoder_layer.10}
  #allocation0 [shape = 'u32[]', space=smem, size = 0x4, offset = 0x4, fixed_abs, tag = 'smem constant byte address 0x4 - core index']
  #allocation1 [shape = 'u32[144,128]{1,0:T(1,128)}', space=vmem, size = 0x12000, scoped, tag = 'internal scratch']
  %s0 = inlined_call_operand.vmem [shape: f32[2,4,8,8], index: 0, kind: input, shape index: {}]
  %s1 = inlined_call_operand.vmem [shape: f32[2,4,8,8], index: 1, kind: input, shape index: {}]
  %s2 = inlined_call_operand.vmem [shape: f32[2,4,8,8], index: 2, kind: input, shape index: {}]
  %s3 = inlined_call_operand.vmem [shape: f32[8,8], index: 3, kind: input, shape index: {}]
  %s4 = inlined_call_operand.vmem [shape: f32[2,4,8,8], index: 4, kind: output, shape index: {}]
  %s5 = sld [smem:[#allocation0]]
  $region49: #{decoder_layer.10} parent=0
    _
  %s7 = ssub.s32 1, %s5
  %s8 = scalar_select 0, %s7, %s5
  loop: start=0, step=1, limit=4
  $region2: #{decoder_layer.10} parent=0 // loop_pre_header
    _
  $region3: #{decoder_layer.10} parent=0 // loop_header
    %s10 = sphi 0, %s14
    %p11 = scmp.ge.s32.totalorder %s10, 4
    %s20 = sphi 0, %s22
    %s23 = sphi 0, %s20
    %s24 = sphi 0, %s23
    %s40 = sphi 0, %s24
    %s46 = sphi 0, %s48
    %s49 = sphi 0, %s46
    %s50 = sphi 0, %s49
    %s66 = sphi 0, %s50
    %s72 = sphi 0, %s74
    %s75 = sphi 0, %s72
    %s76 = sphi 0, %s75
    %s92 = sphi 0, %s76
    %s96 = sphi 0, %s96
    %s98 = sphi 0, %s96
    %s99 = sphi 0, %s98
    %s113 = sphi 0, %s99
    %s119 = sphi 0, %s121
    %s122 = sphi 0, %s119
    %s123 = sphi 0, %s122
    %s139 = sphi 0, %s123
  $region4: #{decoder_layer.10} parent=0 // loop_header_branch
    %13 = sbr.rel (%p11) target = $region8
  $region5: #{decoder_layer.10} parent=0 // loop_body
    %s15 = ssub.s32 %s10, 1
    %s16 = ssub.s32 %s10, 2
    %s17 = sadd.s32 %s10, 1
    %s18 = ssub.s32 %s10, %s17
    %p19 = scmp.eq.s32.totalorder %s18, 0
    %s21 = sadd.s32 %s20, 1
    %s22 = scalar_select %p19, %s20, %s21
    %p25 = pneg %p19
    %p26 = scmp.eq.s32.totalorder %s10, 1
    %p27 = por %p25, %p26
    %p28 = scmp.ne.s32.totalorder %s20, %s23
    %p29 = scmp.eq.s32.totalorder %s10, 0
    %p30 = por %p28, %p29
    %p31 = scmp.ne.s32.totalorder %s20, %s23
    %p32 = scmp.eq.s32.totalorder %s15, 1
    %p33 = por %p31, %p32
    %p34 = scmp.ne.s32.totalorder %s23, %s24
    %p35 = scmp.eq.s32.totalorder %s15, 0
    %p36 = por %p34, %p35
    %p37 = scmp.ne.s32.totalorder %s23, %s24
    %p38 = scmp.eq.s32.totalorder %s16, 1
    %p39 = por %p37, %p38
    %p41 = scmp.ne.s32.totalorder %s24, %s40
    %p42 = scmp.eq.s32.totalorder %s16, 0
    %p43 = por %p41, %p42
    %s44 = ssub.s32 %s10, %s17
    %p45 = scmp.eq.s32.totalorder %s44, 0
    %s47 = sadd.s32 %s46, 1
    %s48 = scalar_select %p45, %s46, %s47
    %p51 = pneg %p45
    %p52 = scmp.eq.s32.totalorder %s10, 1
    %p53 = por %p51, %p52
    %p54 = scmp.ne.s32.totalorder %s46, %s49
    %p55 = scmp.eq.s32.totalorder %s10, 0
    %p56 = por %p54, %p55
    %p57 = scmp.ne.s32.totalorder %s46, %s49
    %p58 = scmp.eq.s32.totalorder %s15, 1
    %p59 = por %p57, %p58
    %p60 = scmp.ne.s32.totalorder %s49, %s50
    %p61 = scmp.eq.s32.totalorder %s15, 0
    %p62 = por %p60, %p61
    %p63 = scmp.ne.s32.totalorder %s49, %s50
    %p64 = scmp.eq.s32.totalorder %s16, 1
    %p65 = por %p63, %p64
    %p67 = scmp.ne.s32.totalorder %s50, %s66
    %p68 = scmp.eq.s32.totalorder %s16, 0
    %p69 = por %p67, %p68
    %s70 = ssub.s32 %s10, %s17
    %p71 = scmp.eq.s32.totalorder %s70, 0
    %s73 = sadd.s32 %s72, 1
    %s74 = scalar_select %p71, %s72, %s73
    %p77 = pneg %p71
    %p78 = scmp.eq.s32.totalorder %s10, 1
    %p79 = por %p77, %p78
    %p80 = scmp.ne.s32.totalorder %s72, %s75
    %p81 = scmp.eq.s32.totalorder %s10, 0
    %p82 = por %p80, %p81
    %p83 = scmp.ne.s32.totalorder %s72, %s75
    %p84 = scmp.eq.s32.totalorder %s15, 1
    %p85 = por %p83, %p84
    %p86 = scmp.ne.s32.totalorder %s75, %s76
    %p87 = scmp.eq.s32.totalorder %s15, 0
    %p88 = por %p86, %p87
    %p89 = scmp.ne.s32.totalorder %s75, %s76
    %p90 = scmp.eq.s32.totalorder %s16, 1
    %p91 = por %p89, %p90
    %p93 = scmp.ne.s32.totalorder %s76, %s92
    %p94 = scmp.eq.s32.totalorder %s16, 0
    %p95 = por %p93, %p94
    %s97 = sadd.s32 %s96, 1
    %p100 = scmp.eq.s32.totalorder %s10, 1
    %p101 = scmp.ne.s32.totalorder %s96, %s98
    %p102 = scmp.eq.s32.totalorder %s10, 0
    %p103 = por %p101, %p102
    %p104 = scmp.ne.s32.totalorder %s96, %s98
    %p105 = scmp.eq.s32.totalorder %s15, 1
    %p106 = por %p104, %p105
    %p107 = scmp.ne.s32.totalorder %s98, %s99
    %p108 = scmp.eq.s32.totalorder %s15, 0
    %p109 = por %p107, %p108
    %p110 = scmp.ne.s32.totalorder %s98, %s99
    %p111 = scmp.eq.s32.totalorder %s16, 1
    %p112 = por %p110, %p111
    %p114 = scmp.ne.s32.totalorder %s99, %s113
    %p115 = scmp.eq.s32.totalorder %s16, 0
    %p116 = por %p114, %p115
    %s117 = ssub.s32 %s10, %s17
    %p118 = scmp.eq.s32.totalorder %s117, 0
    %s120 = sadd.s32 %s119, 1
    %s121 = scalar_select %p118, %s119, %s120
    %p124 = pneg %p118
    %p125 = scmp.eq.s32.totalorder %s10, 1
    %p126 = por %p124, %p125
    %p127 = scmp.ne.s32.totalorder %s119, %s122
    %p128 = scmp.eq.s32.totalorder %s10, 0
    %p129 = por %p127, %p128
    %p130 = scmp.ne.s32.totalorder %s119, %s122
    %p131 = scmp.eq.s32.totalorder %s15, 1
    %p132 = por %p130, %p131
    %p133 = scmp.ne.s32.totalorder %s122, %s123
    %p134 = scmp.eq.s32.totalorder %s15, 0
    %p135 = por %p133, %p134
    %p136 = scmp.ne.s32.totalorder %s122, %s123
    %p137 = scmp.eq.s32.totalorder %s16, 1
    %p138 = por %p136, %p137
    %p140 = scmp.ne.s32.totalorder %s123, %s139
    %p141 = scmp.eq.s32.totalorder %s16, 0
    %p142 = por %p140, %p141
    %p143 = scmp.le.s32.totalorder 1, %s10
    %p144 = scmp.lt.s32.totalorder %s10, 3
    %p145 = pnand %p143, %p144
    %p146 = pneg %p145
    // Predicated region
    $region9: #{decoder_layer.10} parent=5 // pred_check
      _
    $region10: #{decoder_layer.10} parent=5 // pred_check_branch
      %148 = sbr.rel (%p145) target = $region12
    $region11: #{decoder_layer.10} parent=5 // pred_region
      %s149 = ssub.s32 %s10, 1
      // Predicated region
      $region13: #{decoder_layer.10} parent=11 // pred_check
        %p150 = pneg %p109
      $region14: #{decoder_layer.10} parent=11 // pred_check_branch
        %152 = sbr.rel (%p150) target = $region16
      $region15: #{decoder_layer.10} parent=11 // pred_region
        _
      $region16: #{decoder_layer.10} parent=11 // pred_fallthru
        _
    $region12: #{decoder_layer.10} parent=5 // pred_fallthru
      _
    %p153 = scmp.lt.s32.totalorder %s10, 2
    // Predicated region
    $region17: #{decoder_layer.10} parent=5 // pred_check
      %p154 = pneg %p153
    $region18: #{decoder_layer.10} parent=5 // pred_check_branch
      %156 = sbr.rel (%p154) target = $region20
    $region19: #{decoder_layer.10} parent=5 // pred_region
      // Predicated region
      $region21: #{decoder_layer.10} parent=19 // pred_check
        %p157 = pneg %p30
      $region22: #{decoder_layer.10} parent=19 // pred_check_branch
        %159 = sbr.rel (%p157) target = $region24
      $region23: #{decoder_layer.10} parent=19 // pred_region
        %p160 = scmp.lt.s32.totalorder %s10, 1
        %s161 = scalar_select %p160, %s10, 1
        %s162 = smul.addr %s161, 4
        %s163 = smul.addr %s162, 8
        %s164 = scalar_lea.vmem %s0, %s163
      $region24: #{decoder_layer.10} parent=19 // pred_fallthru
        _
      // Predicated region
      $region25: #{decoder_layer.10} parent=19 // pred_check
        %p165 = pneg %p56
      $region26: #{decoder_layer.10} parent=19 // pred_check_branch
        %167 = sbr.rel (%p165) target = $region28
      $region27: #{decoder_layer.10} parent=19 // pred_region
        %p168 = scmp.lt.s32.totalorder %s10, 1
        %s169 = scalar_select %p168, %s10, 1
        %s170 = smul.addr %s169, 4
        %s171 = smul.addr %s170, 8
        %s172 = scalar_lea.vmem %s1, %s171
      $region28: #{decoder_layer.10} parent=19 // pred_fallthru
        _
      // Predicated region
      $region29: #{decoder_layer.10} parent=19 // pred_check
        %p173 = pneg %p82
      $region30: #{decoder_layer.10} parent=19 // pred_check_branch
        %175 = sbr.rel (%p173) target = $region32
      $region31: #{decoder_layer.10} parent=19 // pred_region
        %p176 = scmp.lt.s32.totalorder %s10, 1
        %s177 = scalar_select %p176, %s10, 1
        %s178 = smul.addr %s177, 4
        %s179 = smul.addr %s178, 8
        %s180 = scalar_lea.vmem %s2, %s179
      $region32: #{decoder_layer.10} parent=19 // pred_fallthru
        _
    $region20: #{decoder_layer.10} parent=5 // pred_fallthru
      _
    %p181 = scmp.le.s32.totalorder 1, %s10
    %p182 = scmp.lt.s32.totalorder %s10, 3
    %p183 = pnand %p181, %p182
    %p184 = pneg %p183
    // Predicated region
    $region33: #{decoder_layer.10} parent=5 // pred_check
      _
    $region34: #{decoder_layer.10} parent=5 // pred_check_branch
      %186 = sbr.rel (%p183) target = $region36
    $region35: #{decoder_layer.10} parent=5 // pred_region
      %s187 = ssub.s32 %s10, 1
      %p188 = scmp.lt.s32.totalorder %s15, 1
      %s189 = scalar_select %p188, %s15, 1
      %s190 = smul.addr %s189, 4
      %s191 = smul.addr %s190, 8
      %s192 = scalar_lea.vmem %s0, %s191
      %p193 = pneg %p36
      %p194 = pneg %p33
      %p195 = scmp.lt.s32.totalorder %s15, 1
      %s196 = scalar_select %p195, %s15, 1
      %s197 = smul.addr %s196, 4
      %s198 = smul.addr %s197, 8
      %s199 = scalar_lea.vmem %s1, %s198
      %p200 = pneg %p62
      %p201 = pneg %p59
      %p202 = scmp.lt.s32.totalorder %s15, 1
      %s203 = scalar_select %p202, %s15, 1
      %s204 = smul.addr %s203, 4
      %s205 = smul.addr %s204, 8
      %s206 = scalar_lea.vmem %s2, %s205
      %p207 = pneg %p88
      %p208 = pneg %p85
      %p209 = pneg %p109
      %p210 = pneg %p106
      %p211 = pneg %p135
      %p212 = pneg %p132
      %p213 = scmp.lt.s32.totalorder %s15, 1
      %s214 = scalar_select %p213, %s15, 1
      %s215 = smul.addr %s214, 4
      %s216 = smul.addr %s215, 8
      %s217 = scalar_lea.vmem %s4, %s216
      %p218 = scmp.lt.s32.totalorder %s15, 1
      %s219 = scalar_select %p218, %s15, 1
      %s220 = smul.addr %s219, 4
      %s221 = smul.addr %s220, 8
      %s222 = scalar_lea.vmem %s0, %s221
      %p223 = scmp.lt.s32.totalorder %s15, 1
      %s224 = scalar_select %p223, %s15, 1
      %s225 = smul.addr %s224, 4
      %s226 = smul.addr %s225, 8
      %s227 = scalar_lea.vmem %s1, %s226
      %p228 = scmp.lt.s32.totalorder %s15, 1
      %s229 = scalar_select %p228, %s15, 1
      %s230 = smul.addr %s229, 4
      %s231 = smul.addr %s230, 8
      %s232 = scalar_lea.vmem %s2, %s231
      %p233 = scmp.lt.s32.totalorder %s15, 1
      %s234 = scalar_select %p233, %s15, 1
      %s235 = smul.addr %s234, 4
      %s236 = smul.addr %s235, 8
      %s237 = scalar_lea.vmem %s4, %s236
      %v238 = vld [vmem:[%s222] sm:$0xff]
      %v239 = vld [vmem:[%s222 + $0x8] sm:$0xff]
      %v240 = vld [vmem:[%s222 + $0x10] sm:$0xff]
      %v241 = vld [vmem:[%s222 + $0x18] sm:$0xff]
      %v242 = vld [vmem:[%s227] sm:$0xff]
      %v243 = vld [vmem:[%s227 + $0x8] sm:$0xff]
      %v244 = vld [vmem:[%s227 + $0x10] sm:$0xff]
      %v245 = vld [vmem:[%s227 + $0x18] sm:$0xff]
      %v246 = vld [vmem:[%s232] sm:$0xff]
      %v247 = vld [vmem:[%s232 + $0x8] sm:$0xff]
      %v248 = vld [vmem:[%s232 + $0x10] sm:$0xff]
      %v249 = vld [vmem:[%s232 + $0x18] sm:$0xff]
      %v250 = vld [vmem:[%s3] sm:$0xff]
      %vm251 = vcmask 64512
      %v253 = vsel %vm251, %v238, 0
      %v256 = vsel %vm251, %v242, 0
      %258 = vmatprep.subr.mxu0 0.0
      %259 = vmatpush1.xpose.msra.mxu0 %v256
      %260 = vmatprep.subr.mxu0 0.0
      %261 = vmatpush1.xpose.msra.mxu0 0.0
      %262 = vmatprep.subr.mxu0 0.0
      %263 = vmatpush1.xpose.msra.mxu0 0.0
      %264 = vmatprep.subr.mxu0 0.0
      %265 = vmatpush1.xpose.msra.mxu0 0.0
      %266 = vmatprep.subr.mxu0 0.0
      %267 = vmatpush1.xpose.msra.mxu0 0.0
      %268 = vmatprep.subr.mxu0 0.0
      %269 = vmatpush1.xpose.msra.mxu0 0.0
      %270 = vmatprep.subr.mxu0 0.0
      %271 = vmatpush1.xpose.msra.mxu0 0.0
      %272 = vmatprep.subr.mxu0 0.0
      %273 = vmatpush1.xpose.msra.mxu0 0.0
      %274 = vmatprep.subr.mxu0 0.0
      %275 = vmatpush1.xpose.msra.mxu0 0.0
      %276 = vmatprep.subr.mxu0 0.0
      %277 = vmatpush1.xpose.msra.mxu0 0.0
      %278 = vmatprep.subr.mxu0 0.0
      %279 = vmatpush1.xpose.msra.mxu0 0.0
      %280 = vmatprep.subr.mxu0 0.0
      %281 = vmatpush1.xpose.msra.mxu0 0.0
      %282 = vmatprep.subr.mxu0 0.0
      %283 = vmatpush1.xpose.msra.mxu0 0.0
      %284 = vmatprep.subr.mxu0 0.0
      %285 = vmatpush1.xpose.msra.mxu0 0.0
      %286 = vmatprep.subr.mxu0 0.0
      %287 = vmatpush1.xpose.msra.mxu0 0.0
      %288 = vmatprep.subr.mxu0 0.0
      %289 = vmatpush1.xpose.msra.mxu0 0.0
      %290 = vmatprep.subr.mxu0 0.0
      %291 = vmatpush1.xpose.msra.mxu0 0.0
      %292 = vmatprep.subr.mxu0 0.0
      %293 = vmatpush1.xpose.msra.mxu0 0.0
      %294 = vmatprep.subr.mxu0 0.0
      %295 = vmatpush1.xpose.msra.mxu0 0.0
      %296 = vmatprep.subr.mxu0 0.0
      %297 = vmatpush1.xpose.msra.mxu0 0.0
      %298 = vmatprep.subr.mxu0 0.0
      %299 = vmatpush1.xpose.msra.mxu0 0.0
      %300 = vmatprep.subr.mxu0 0.0
      %301 = vmatpush1.xpose.msra.mxu0 0.0
      %302 = vmatprep.subr.mxu0 0.0
      %303 = vmatpush1.xpose.msra.mxu0 0.0
      %304 = vmatprep.subr.mxu0 0.0
      %305 = vmatpush1.xpose.msra.mxu0 0.0
      %306 = vmatprep.subr.mxu0 0.0
      %307 = vmatpush1.xpose.msra.mxu0 0.0
      %308 = vmatprep.subr.mxu0 0.0
      %309 = vmatpush1.xpose.msra.mxu0 0.0
      %310 = vmatprep.subr.mxu0 0.0
      %311 = vmatpush1.xpose.msra.mxu0 0.0
      %312 = vmatprep.subr.mxu0 0.0
      %313 = vmatpush1.xpose.msra.mxu0 0.0
      %314 = vmatprep.subr.mxu0 0.0
      %315 = vmatpush1.xpose.msra.mxu0 0.0
      %316 = vmatprep.subr.mxu0 0.0
      %317 = vmatpush1.xpose.msra.mxu0 0.0
      %318 = vmatprep.subr.mxu0 0.0
      %319 = vmatpush1.xpose.msra.mxu0 0.0
      %320 = vmatprep.subr.mxu0 0.0
      %321 = vmatpush1.xpose.msra.mxu0 0.0
      %322 = vmatprep.mubr.f32.mxu0 0.0
      %323 = vmatmul.mubr.f32.gmra.mrb[0].mxu0 %v253
      %v324 = vpop.f32.mrb[0].mxu0
      %v325 = vadd.f32 %v250, %v324
      %v326 = vpop.f32.mrb[0].mxu0
      %327 = vdwg.mxu0
      %v329 = vsel %vm251, %v239, 0
      %v332 = vsel %vm251, %v243, 0
      %334 = vmatprep.subr.mxu0 0.0
      %335 = vmatpush1.xpose.msra.mxu0 %v332
      %336 = vmatprep.subr.mxu0 0.0
      %337 = vmatpush1.xpose.msra.mxu0 0.0
      %338 = vmatprep.subr.mxu0 0.0
      %339 = vmatpush1.xpose.msra.mxu0 0.0
      %340 = vmatprep.subr.mxu0 0.0
      %341 = vmatpush1.xpose.msra.mxu0 0.0
      %342 = vmatprep.subr.mxu0 0.0
      %343 = vmatpush1.xpose.msra.mxu0 0.0
      %344 = vmatprep.subr.mxu0 0.0
      %345 = vmatpush1.xpose.msra.mxu0 0.0
      %346 = vmatprep.subr.mxu0 0.0
      %347 = vmatpush1.xpose.msra.mxu0 0.0
      %348 = vmatprep.subr.mxu0 0.0
      %349 = vmatpush1.xpose.msra.mxu0 0.0
      %350 = vmatprep.subr.mxu0 0.0
      %351 = vmatpush1.xpose.msra.mxu0 0.0
      %352 = vmatprep.subr.mxu0 0.0
      %353 = vmatpush1.xpose.msra.mxu0 0.0
      %354 = vmatprep.subr.mxu0 0.0
      %355 = vmatpush1.xpose.msra.mxu0 0.0
      %356 = vmatprep.subr.mxu0 0.0
      %357 = vmatpush1.xpose.msra.mxu0 0.0
      %358 = vmatprep.subr.mxu0 0.0
      %359 = vmatpush1.xpose.msra.mxu0 0.0
      %360 = vmatprep.subr.mxu0 0.0
      %361 = vmatpush1.xpose.msra.mxu0 0.0
      %362 = vmatprep.subr.mxu0 0.0
      %363 = vmatpush1.xpose.msra.mxu0 0.0
      %364 = vmatprep.subr.mxu0 0.0
      %365 = vmatpush1.xpose.msra.mxu0 0.0
      %366 = vmatprep.subr.mxu0 0.0
      %367 = vmatpush1.xpose.msra.mxu0 0.0
      %368 = vmatprep.subr.mxu0 0.0
      %369 = vmatpush1.xpose.msra.mxu0 0.0
      %370 = vmatprep.subr.mxu0 0.0
      %371 = vmatpush1.xpose.msra.mxu0 0.0
      %372 = vmatprep.subr.mxu0 0.0
      %373 = vmatpush1.xpose.msra.mxu0 0.0
      %374 = vmatprep.subr.mxu0 0.0
      %375 = vmatpush1.xpose.msra.mxu0 0.0
      %376 = vmatprep.subr.mxu0 0.0
      %377 = vmatpush1.xpose.msra.mxu0 0.0
      %378 = vmatprep.subr.mxu0 0.0
      %379 = vmatpush1.xpose.msra.mxu0 0.0
      %380 = vmatprep.subr.mxu0 0.0
      %381 = vmatpush1.xpose.msra.mxu0 0.0
      %382 = vmatprep.subr.mxu0 0.0
      %383 = vmatpush1.xpose.msra.mxu0 0.0
      %384 = vmatprep.subr.mxu0 0.0
      %385 = vmatpush1.xpose.msra.mxu0 0.0
      %386 = vmatprep.subr.mxu0 0.0
      %387 = vmatpush1.xpose.msra.mxu0 0.0
      %388 = vmatprep.subr.mxu0 0.0
      %389 = vmatpush1.xpose.msra.mxu0 0.0
      %390 = vmatprep.subr.mxu0 0.0
      %391 = vmatpush1.xpose.msra.mxu0 0.0
      %392 = vmatprep.subr.mxu0 0.0
      %393 = vmatpush1.xpose.msra.mxu0 0.0
      %394 = vmatprep.subr.mxu0 0.0
      %395 = vmatpush1.xpose.msra.mxu0 0.0
      %396 = vmatprep.subr.mxu0 0.0
      %397 = vmatpush1.xpose.msra.mxu0 0.0
      %398 = vmatprep.mubr.f32.mxu0 0.0
      %399 = vmatmul.mubr.f32.gmra.mrb[0].mxu0 %v329
      %v400 = vpop.f32.mrb[0].mxu0
      %v401 = vadd.f32 %v250, %v400
      %v402 = vpop.f32.mrb[0].mxu0
      %403 = vdwg.mxu0
      %v405 = vsel %vm251, %v240, 0
      %v408 = vsel %vm251, %v244, 0
      %410 = vmatprep.subr.mxu0 0.0
      %411 = vmatpush1.xpose.msra.mxu0 %v408
      %412 = vmatprep.subr.mxu0 0.0
      %413 = vmatpush1.xpose.msra.mxu0 0.0
      %414 = vmatprep.subr.mxu0 0.0
      %415 = vmatpush1.xpose.msra.mxu0 0.0
      %416 = vmatprep.subr.mxu0 0.0
      %417 = vmatpush1.xpose.msra.mxu0 0.0
      %418 = vmatprep.subr.mxu0 0.0
      %419 = vmatpush1.xpose.msra.mxu0 0.0
      %420 = vmatprep.subr.mxu0 0.0
      %421 = vmatpush1.xpose.msra.mxu0 0.0
      %422 = vmatprep.subr.mxu0 0.0
      %423 = vmatpush1.xpose.msra.mxu0 0.0
      %424 = vmatprep.subr.mxu0 0.0
      %425 = vmatpush1.xpose.msra.mxu0 0.0
      %426 = vmatprep.subr.mxu0 0.0
      %427 = vmatpush1.xpose.msra.mxu0 0.0
      %428 = vmatprep.subr.mxu0 0.0
      %429 = vmatpush1.xpose.msra.mxu0 0.0
      %430 = vmatprep.subr.mxu0 0.0
      %431 = vmatpush1.xpose.msra.mxu0 0.0
      %432 = vmatprep.subr.mxu0 0.0
      %433 = vmatpush1.xpose.msra.mxu0 0.0
      %434 = vmatprep.subr.mxu0 0.0
      %435 = vmatpush1.xpose.msra.mxu0 0.0
      %436 = vmatprep.subr.mxu0 0.0
      %437 = vmatpush1.xpose.msra.mxu0 0.0
      %438 = vmatprep.subr.mxu0 0.0
      %439 = vmatpush1.xpose.msra.mxu0 0.0
      %440 = vmatprep.subr.mxu0 0.0
      %441 = vmatpush1.xpose.msra.mxu0 0.0
      %442 = vmatprep.subr.mxu0 0.0
      %443 = vmatpush1.xpose.msra.mxu0 0.0
      %444 = vmatprep.subr.mxu0 0.0
      %445 = vmatpush1.xpose.msra.mxu0 0.0
      %446 = vmatprep.subr.mxu0 0.0
      %447 = vmatpush1.xpose.msra.mxu0 0.0
      %448 = vmatprep.subr.mxu0 0.0
      %449 = vmatpush1.xpose.msra.mxu0 0.0
      %450 = vmatprep.subr.mxu0 0.0
      %451 = vmatpush1.xpose.msra.mxu0 0.0
      %452 = vmatprep.subr.mxu0 0.0
      %453 = vmatpush1.xpose.msra.mxu0 0.0
      %454 = vmatprep.subr.mxu0 0.0
      %455 = vmatpush1.xpose.msra.mxu0 0.0
      %456 = vmatprep.subr.mxu0 0.0
      %457 = vmatpush1.xpose.msra.mxu0 0.0
      %458 = vmatprep.subr.mxu0 0.0
      %459 = vmatpush1.xpose.msra.mxu0 0.0
      %460 = vmatprep.subr.mxu0 0.0
      %461 = vmatpush1.xpose.msra.mxu0 0.0
      %462 = vmatprep.subr.mxu0 0.0
      %463 = vmatpush1.xpose.msra.mxu0 0.0
      %464 = vmatprep.subr.mxu0 0.0
      %465 = vmatpush1.xpose.msra.mxu0 0.0
      %466 = vmatprep.subr.mxu0 0.0
      %467 = vmatpush1.xpose.msra.mxu0 0.0
      %468 = vmatprep.subr.mxu0 0.0
      %469 = vmatpush1.xpose.msra.mxu0 0.0
      %470 = vmatprep.subr.mxu0 0.0
      %471 = vmatpush1.xpose.msra.mxu0 0.0
      %472 = vmatprep.subr.mxu0 0.0
      %473 = vmatpush1.xpose.msra.mxu0 0.0
      %474 = vmatprep.mubr.f32.mxu0 0.0
      %475 = vmatmul.mubr.f32.gmra.mrb[0].mxu0 %v405
      %v476 = vpop.f32.mrb[0].mxu0
      %v477 = vadd.f32 %v250, %v476
      %v478 = vpop.f32.mrb[0].mxu0
      %479 = vdwg.mxu0
      %v481 = vsel %vm251, %v241, 0
      %v484 = vsel %vm251, %v245, 0
      %486 = vmatprep.subr.mxu0 0.0
      %487 = vmatpush1.xpose.msra.mxu0 %v484
      %488 = vmatprep.subr.mxu0 0.0
      %489 = vmatpush1.xpose.msra.mxu0 0.0
      %490 = vmatprep.subr.mxu0 0.0
      %491 = vmatpush1.xpose.msra.mxu0 0.0
      %492 = vmatprep.subr.mxu0 0.0
      %493 = vmatpush1.xpose.msra.mxu0 0.0
      %494 = vmatprep.subr.mxu0 0.0
      %495 = vmatpush1.xpose.msra.mxu0 0.0
      %496 = vmatprep.subr.mxu0 0.0
      %497 = vmatpush1.xpose.msra.mxu0 0.0
      %498 = vmatprep.subr.mxu0 0.0
      %499 = vmatpush1.xpose.msra.mxu0 0.0
      %500 = vmatprep.subr.mxu0 0.0
      %501 = vmatpush1.xpose.msra.mxu0 0.0
      %502 = vmatprep.subr.mxu0 0.0
      %503 = vmatpush1.xpose.msra.mxu0 0.0
      %504 = vmatprep.subr.mxu0 0.0
      %505 = vmatpush1.xpose.msra.mxu0 0.0
      %506 = vmatprep.subr.mxu0 0.0
      %507 = vmatpush1.xpose.msra.mxu0 0.0
      %508 = vmatprep.subr.mxu0 0.0
      %509 = vmatpush1.xpose.msra.mxu0 0.0
      %510 = vmatprep.subr.mxu0 0.0
      %511 = vmatpush1.xpose.msra.mxu0 0.0
      %512 = vmatprep.subr.mxu0 0.0
      %513 = vmatpush1.xpose.msra.mxu0 0.0
      %514 = vmatprep.subr.mxu0 0.0
      %515 = vmatpush1.xpose.msra.mxu0 0.0
      %516 = vmatprep.subr.mxu0 0.0
      %517 = vmatpush1.xpose.msra.mxu0 0.0
      %518 = vmatprep.subr.mxu0 0.0
      %519 = vmatpush1.xpose.msra.mxu0 0.0
      %520 = vmatprep.subr.mxu0 0.0
      %521 = vmatpush1.xpose.msra.mxu0 0.0
      %522 = vmatprep.subr.mxu0 0.0
      %523 = vmatpush1.xpose.msra.mxu0 0.0
      %524 = vmatprep.subr.mxu0 0.0
      %525 = vmatpush1.xpose.msra.mxu0 0.0
      %526 = vmatprep.subr.mxu0 0.0
      %527 = vmatpush1.xpose.msra.mxu0 0.0
      %528 = vmatprep.subr.mxu0 0.0
      %529 = vmatpush1.xpose.msra.mxu0 0.0
      %530 = vmatprep.subr.mxu0 0.0
      %531 = vmatpush1.xpose.msra.mxu0 0.0
      %532 = vmatprep.subr.mxu0 0.0
      %533 = vmatpush1.xpose.msra.mxu0 0.0
      %534 = vmatprep.subr.mxu0 0.0
      %535 = vmatpush1.xpose.msra.mxu0 0.0
      %536 = vmatprep.subr.mxu0 0.0
      %537 = vmatpush1.xpose.msra.mxu0 0.0
      %538 = vmatprep.subr.mxu0 0.0
      %539 = vmatpush1.xpose.msra.mxu0 0.0
      %540 = vmatprep.subr.mxu0 0.0
      %541 = vmatpush1.xpose.msra.mxu0 0.0
      %542 = vmatprep.subr.mxu0 0.0
      %543 = vmatpush1.xpose.msra.mxu0 0.0
      %544 = vmatprep.subr.mxu0 0.0
      %545 = vmatpush1.xpose.msra.mxu0 0.0
      %546 = vmatprep.subr.mxu0 0.0
      %547 = vmatpush1.xpose.msra.mxu0 0.0
      %548 = vmatprep.subr.mxu0 0.0
      %549 = vmatpush1.xpose.msra.mxu0 0.0
      %550 = vmatprep.mubr.f32.mxu0 0.0
      %551 = vmatmul.mubr.f32.gmra.mrb[0].mxu0 %v481
      %v552 = vpop.f32.mrb[0].mxu0
      %v553 = vadd.f32 %v250, %v552
      %v554 = vpop.f32.mrb[0].mxu0
      %555 = vdwg.mxu0
      %v556 = vsel %vm251, %v325, -inf
      %557 = vmax.xlane.f32.xlu0 %v556
      %v558 = vpop.xlane.xlu0 %557
      %v559 = vsel %vm251, %v401, -inf
      %560 = vmax.xlane.f32.xlu0 %v559
      %v561 = vpop.xlane.xlu0 %560
      %v562 = vsel %vm251, %v477, -inf
      %563 = vmax.xlane.f32.xlu0 %v562
      %v564 = vpop.xlane.xlu0 %563
      %v565 = vsel %vm251, %v553, -inf
      %566 = vmax.xlane.f32.xlu0 %v565
      %v567 = vpop.xlane.xlu0 %566
      %v568 = vsub.f32 %v325, %v558
      %v569 = vsub.f32 %v401, %v561
      %v570 = vsub.f32 %v477, %v564
      %v571 = vsub.f32 %v553, %v567
      %v572 = vmul.f32 %v568, 1.442695
      %v573 = vpow.pop %v572
      %v574 = vmul.f32 %v569, 1.442695
      %v575 = vpow.pop %v574
      %v576 = vmul.f32 %v570, 1.442695
      %v577 = vpow.pop %v576
      %v578 = vmul.f32 %v571, 1.442695
      %v579 = vpow.pop %v578
      %v580 = vsel %vm251, %v573, 0.0
      %581 = vadd.xlane.f32.xlu0 %v580
      %v582 = vpop.xlane.xlu0 %581
      %v583 = vsel %vm251, %v575, 0.0
      %584 = vadd.xlane.f32.xlu0 %v583
      %v585 = vpop.xlane.xlu0 %584
      %v586 = vsel %vm251, %v577, 0.0
      %587 = vadd.xlane.f32.xlu0 %v586
      %v588 = vpop.xlane.xlu0 %587
      %v589 = vsel %vm251, %v579, 0.0
      %590 = vadd.xlane.f32.xlu0 %v589
      %v591 = vpop.xlane.xlu0 %590
      %v592 = vrcp.pop %v582
      %v593 = vrcp.pop %v585
      %v594 = vrcp.pop %v588
      %v595 = vrcp.pop %v591
      %v596 = vmul.f32 %v573, %v592
      %v597 = vmul.f32 %v575, %v593
      %v598 = vmul.f32 %v577, %v594
      %v599 = vmul.f32 %v579, %v595
      %v601 = vsel %vm251, %v596, 0
      %603 = vmatprep.subr.mxu0 0.0
      %604 = vmatpush1.msra.mxu0 %v246
      %605 = vmatprep.subr.mxu0 0.0
      %606 = vmatpush1.msra.mxu0 0.0
      %607 = vmatprep.subr.mxu0 0.0
      %608 = vmatpush1.msra.mxu0 0.0
      %609 = vmatprep.subr.mxu0 0.0
      %610 = vmatpush1.msra.mxu0 0.0
      %611 = vmatprep.subr.mxu0 0.0
      %612 = vmatpush1.msra.mxu0 0.0
      %613 = vmatprep.subr.mxu0 0.0
      %614 = vmatpush1.msra.mxu0 0.0
      %615 = vmatprep.subr.mxu0 0.0
      %616 = vmatpush1.msra.mxu0 0.0
      %617 = vmatprep.subr.mxu0 0.0
      %618 = vmatpush1.msra.mxu0 0.0
      %619 = vmatprep.subr.mxu0 0.0
      %620 = vmatpush1.msra.mxu0 0.0
      %621 = vmatprep.subr.mxu0 0.0
      %622 = vmatpush1.msra.mxu0 0.0
      %623 = vmatprep.subr.mxu0 0.0
      %624 = vmatpush1.msra.mxu0 0.0
      %625 = vmatprep.subr.mxu0 0.0
      %626 = vmatpush1.msra.mxu0 0.0
      %627 = vmatprep.subr.mxu0 0.0
      %628 = vmatpush1.msra.mxu0 0.0
      %629 = vmatprep.subr.mxu0 0.0
      %630 = vmatpush1.msra.mxu0 0.0
      %631 = vmatprep.subr.mxu0 0.0
      %632 = vmatpush1.msra.mxu0 0.0
      %633 = vmatprep.subr.mxu0 0.0
      %634 = vmatpush1.msra.mxu0 0.0
      %635 = vmatprep.subr.mxu0 0.0
      %636 = vmatpush1.msra.mxu0 0.0
      %637 = vmatprep.subr.mxu0 0.0
      %638 = vmatpush1.msra.mxu0 0.0
      %639 = vmatprep.subr.mxu0 0.0
      %640 = vmatpush1.msra.mxu0 0.0
      %641 = vmatprep.subr.mxu0 0.0
      %642 = vmatpush1.msra.mxu0 0.0
      %643 = vmatprep.subr.mxu0 0.0
      %644 = vmatpush1.msra.mxu0 0.0
      %645 = vmatprep.subr.mxu0 0.0
      %646 = vmatpush1.msra.mxu0 0.0
      %647 = vmatprep.subr.mxu0 0.0
      %648 = vmatpush1.msra.mxu0 0.0
      %649 = vmatprep.subr.mxu0 0.0
      %650 = vmatpush1.msra.mxu0 0.0
      %651 = vmatprep.subr.mxu0 0.0
      %652 = vmatpush1.msra.mxu0 0.0
      %653 = vmatprep.subr.mxu0 0.0
      %654 = vmatpush1.msra.mxu0 0.0
      %655 = vmatprep.subr.mxu0 0.0
      %656 = vmatpush1.msra.mxu0 0.0
      %657 = vmatprep.subr.mxu0 0.0
      %658 = vmatpush1.msra.mxu0 0.0
      %659 = vmatprep.subr.mxu0 0.0
      %660 = vmatpush1.msra.mxu0 0.0
      %661 = vmatprep.subr.mxu0 0.0
      %662 = vmatpush1.msra.mxu0 0.0
      %663 = vmatprep.subr.mxu0 0.0
      %664 = vmatpush1.msra.mxu0 0.0
      %665 = vmatprep.subr.mxu0 0.0
      %666 = vmatpush1.msra.mxu0 0.0
      %667 = vmatprep.mubr.f32.mxu0 0.0
      %668 = vmatmul.mubr.f32.gmra.mrb[0].mxu0 %v601
      %v669 = vpop.f32.mrb[0].mxu0
      %v670 = vadd.f32 0.0, %v669
      %v671 = vpop.f32.mrb[0].mxu0
      %672 = vdwg.mxu0
      %v674 = vsel %vm251, %v597, 0
      %676 = vmatprep.subr.mxu0 0.0
      %677 = vmatpush1.msra.mxu0 %v247
      %678 = vmatprep.subr.mxu0 0.0
      %679 = vmatpush1.msra.mxu0 0.0
      %680 = vmatprep.subr.mxu0 0.0
      %681 = vmatpush1.msra.mxu0 0.0
      %682 = vmatprep.subr.mxu0 0.0
      %683 = vmatpush1.msra.mxu0 0.0
      %684 = vmatprep.subr.mxu0 0.0
      %685 = vmatpush1.msra.mxu0 0.0
      %686 = vmatprep.subr.mxu0 0.0
      %687 = vmatpush1.msra.mxu0 0.0
      %688 = vmatprep.subr.mxu0 0.0
      %689 = vmatpush1.msra.mxu0 0.0
      %690 = vmatprep.subr.mxu0 0.0
      %691 = vmatpush1.msra.mxu0 0.0
      %692 = vmatprep.subr.mxu0 0.0
      %693 = vmatpush1.msra.mxu0 0.0
      %694 = vmatprep.subr.mxu0 0.0
      %695 = vmatpush1.msra.mxu0 0.0
      %696 = vmatprep.subr.mxu0 0.0
      %697 = vmatpush1.msra.mxu0 0.0
      %698 = vmatprep.subr.mxu0 0.0
      %699 = vmatpush1.msra.mxu0 0.0
      %700 = vmatprep.subr.mxu0 0.0
      %701 = vmatpush1.msra.mxu0 0.0
      %702 = vmatprep.subr.mxu0 0.0
      %703 = vmatpush1.msra.mxu0 0.0
      %704 = vmatprep.subr.mxu0 0.0
      %705 = vmatpush1.msra.mxu0 0.0
      %706 = vmatprep.subr.mxu0 0.0
      %707 = vmatpush1.msra.mxu0 0.0
      %708 = vmatprep.subr.mxu0 0.0
      %709 = vmatpush1.msra.mxu0 0.0
      %710 = vmatprep.subr.mxu0 0.0
      %711 = vmatpush1.msra.mxu0 0.0
      %712 = vmatprep.subr.mxu0 0.0
      %713 = vmatpush1.msra.mxu0 0.0
      %714 = vmatprep.subr.mxu0 0.0
      %715 = vmatpush1.msra.mxu0 0.0
      %716 = vmatprep.subr.mxu0 0.0
      %717 = vmatpush1.msra.mxu0 0.0
      %718 = vmatprep.subr.mxu0 0.0
      %719 = vmatpush1.msra.mxu0 0.0
      %720 = vmatprep.subr.mxu0 0.0
      %721 = vmatpush1.msra.mxu0 0.0
      %722 = vmatprep.subr.mxu0 0.0
      %723 = vmatpush1.msra.mxu0 0.0
      %724 = vmatprep.subr.mxu0 0.0
      %725 = vmatpush1.msra.mxu0 0.0
      %726 = vmatprep.subr.mxu0 0.0
      %727 = vmatpush1.msra.mxu0 0.0
      %728 = vmatprep.subr.mxu0 0.0
      %729 = vmatpush1.msra.mxu0 0.0
      %730 = vmatprep.subr.mxu0 0.0
      %731 = vmatpush1.msra.mxu0 0.0
      %732 = vmatprep.subr.mxu0 0.0
      %733 = vmatpush1.msra.mxu0 0.0
      %734 = vmatprep.subr.mxu0 0.0
      %735 = vmatpush1.msra.mxu0 0.0
      %736 = vmatprep.subr.mxu0 0.0
      %737 = vmatpush1.msra.mxu0 0.0
      %738 = vmatprep.subr.mxu0 0.0
      %739 = vmatpush1.msra.mxu0 0.0
      %740 = vmatprep.mubr.f32.mxu0 0.0
      %741 = vmatmul.mubr.f32.gmra.mrb[0].mxu0 %v674
      %v742 = vpop.f32.mrb[0].mxu0
      %v743 = vadd.f32 0.0, %v742
      %v744 = vpop.f32.mrb[0].mxu0
      %745 = vdwg.mxu0
      %v747 = vsel %vm251, %v598, 0
      %749 = vmatprep.subr.mxu0 0.0
      %750 = vmatpush1.msra.mxu0 %v248
      %751 = vmatprep.subr.mxu0 0.0
      %752 = vmatpush1.msra.mxu0 0.0
      %753 = vmatprep.subr.mxu0 0.0
      %754 = vmatpush1.msra.mxu0 0.0
      %755 = vmatprep.subr.mxu0 0.0
      %756 = vmatpush1.msra.mxu0 0.0
      %757 = vmatprep.subr.mxu0 0.0
      %758 = vmatpush1.msra.mxu0 0.0
      %759 = vmatprep.subr.mxu0 0.0
      %760 = vmatpush1.msra.mxu0 0.0
      %761 = vmatprep.subr.mxu0 0.0
      %762 = vmatpush1.msra.mxu0 0.0
      %763 = vmatprep.subr.mxu0 0.0
      %764 = vmatpush1.msra.mxu0 0.0
      %765 = vmatprep.subr.mxu0 0.0
      %766 = vmatpush1.msra.mxu0 0.0
      %767 = vmatprep.subr.mxu0 0.0
      %768 = vmatpush1.msra.mxu0 0.0
      %769 = vmatprep.subr.mxu0 0.0
      %770 = vmatpush1.msra.mxu0 0.0
      %771 = vmatprep.subr.mxu0 0.0
      %772 = vmatpush1.msra.mxu0 0.0
      %773 = vmatprep.subr.mxu0 0.0
      %774 = vmatpush1.msra.mxu0 0.0
      %775 = vmatprep.subr.mxu0 0.0
      %776 = vmatpush1.msra.mxu0 0.0
      %777 = vmatprep.subr.mxu0 0.0
      %778 = vmatpush1.msra.mxu0 0.0
      %779 = vmatprep.subr.mxu0 0.0
      %780 = vmatpush1.msra.mxu0 0.0
      %781 = vmatprep.subr.mxu0 0.0
      %782 = vmatpush1.msra.mxu0 0.0
      %783 = vmatprep.subr.mxu0 0.0
      %784 = vmatpush1.msra.mxu0 0.0
      %785 = vmatprep.subr.mxu0 0.0
      %786 = vmatpush1.msra.mxu0 0.0
      %787 = vmatprep.subr.mxu0 0.0
      %788 = vmatpush1.msra.mxu0 0.0
      %789 = vmatprep.subr.mxu0 0.0
      %790 = vmatpush1.msra.mxu0 0.0
      %791 = vmatprep.subr.mxu0 0.0
      %792 = vmatpush1.msra.mxu0 0.0
      %793 = vmatprep.subr.mxu0 0.0
      %794 = vmatpush1.msra.mxu0 0.0
      %795 = vmatprep.subr.mxu0 0.0
      %796 = vmatpush1.msra.mxu0 0.0
      %797 = vmatprep.subr.mxu0 0.0
      %798 = vmatpush1.msra.mxu0 0.0
      %799 = vmatprep.subr.mxu0 0.0
      %800 = vmatpush1.msra.mxu0 0.0
      %801 = vmatprep.subr.mxu0 0.0
      %802 = vmatpush1.msra.mxu0 0.0
      %803 = vmatprep.subr.mxu0 0.0
      %804 = vmatpush1.msra.mxu0 0.0
      %805 = vmatprep.subr.mxu0 0.0
      %806 = vmatpush1.msra.mxu0 0.0
      %807 = vmatprep.subr.mxu0 0.0
      %808 = vmatpush1.msra.mxu0 0.0
      %809 = vmatprep.subr.mxu0 0.0
      %810 = vmatpush1.msra.mxu0 0.0
      %811 = vmatprep.subr.mxu0 0.0
      %812 = vmatpush1.msra.mxu0 0.0
      %813 = vmatprep.mubr.f32.mxu0 0.0
      %814 = vmatmul.mubr.f32.gmra.mrb[0].mxu0 %v747
      %v815 = vpop.f32.mrb[0].mxu0
      %v816 = vadd.f32 0.0, %v815
      %v817 = vpop.f32.mrb[0].mxu0
      %818 = vdwg.mxu0
      %v820 = vsel %vm251, %v599, 0
      %822 = vmatprep.subr.mxu0 0.0
      %823 = vmatpush1.msra.mxu0 %v249
      %824 = vmatprep.subr.mxu0 0.0
      %825 = vmatpush1.msra.mxu0 0.0
      %826 = vmatprep.subr.mxu0 0.0
      %827 = vmatpush1.msra.mxu0 0.0
      %828 = vmatprep.subr.mxu0 0.0
      %829 = vmatpush1.msra.mxu0 0.0
      %830 = vmatprep.subr.mxu0 0.0
      %831 = vmatpush1.msra.mxu0 0.0
      %832 = vmatprep.subr.mxu0 0.0
      %833 = vmatpush1.msra.mxu0 0.0
      %834 = vmatprep.subr.mxu0 0.0
      %835 = vmatpush1.msra.mxu0 0.0
      %836 = vmatprep.subr.mxu0 0.0
      %837 = vmatpush1.msra.mxu0 0.0
      %838 = vmatprep.subr.mxu0 0.0
      %839 = vmatpush1.msra.mxu0 0.0
      %840 = vmatprep.subr.mxu0 0.0
      %841 = vmatpush1.msra.mxu0 0.0
      %842 = vmatprep.subr.mxu0 0.0
      %843 = vmatpush1.msra.mxu0 0.0
      %844 = vmatprep.subr.mxu0 0.0
      %845 = vmatpush1.msra.mxu0 0.0
      %846 = vmatprep.subr.mxu0 0.0
      %847 = vmatpush1.msra.mxu0 0.0
      %848 = vmatprep.subr.mxu0 0.0
      %849 = vmatpush1.msra.mxu0 0.0
      %850 = vmatprep.subr.mxu0 0.0
      %851 = vmatpush1.msra.mxu0 0.0
      %852 = vmatprep.subr.mxu0 0.0
      %853 = vmatpush1.msra.mxu0 0.0
      %854 = vmatprep.subr.mxu0 0.0
      %855 = vmatpush1.msra.mxu0 0.0
      %856 = vmatprep.subr.mxu0 0.0
      %857 = vmatpush1.msra.mxu0 0.0
      %858 = vmatprep.subr.mxu0 0.0
      %859 = vmatpush1.msra.mxu0 0.0
      %860 = vmatprep.subr.mxu0 0.0
      %861 = vmatpush1.msra.mxu0 0.0
      %862 = vmatprep.subr.mxu0 0.0
      %863 = vmatpush1.msra.mxu0 0.0
      %864 = vmatprep.subr.mxu0 0.0
      %865 = vmatpush1.msra.mxu0 0.0
      %866 = vmatprep.subr.mxu0 0.0
      %867 = vmatpush1.msra.mxu0 0.0
      %868 = vmatprep.subr.mxu0 0.0
      %869 = vmatpush1.msra.mxu0 0.0
      %870 = vmatprep.subr.mxu0 0.0
      %871 = vmatpush1.msra.mxu0 0.0
      %872 = vmatprep.subr.mxu0 0.0
      %873 = vmatpush1.msra.mxu0 0.0
      %874 = vmatprep.subr.mxu0 0.0
      %875 = vmatpush1.msra.mxu0 0.0
      %876 = vmatprep.subr.mxu0 0.0
      %877 = vmatpush1.msra.mxu0 0.0
      %878 = vmatprep.subr.mxu0 0.0
      %879 = vmatpush1.msra.mxu0 0.0
      %880 = vmatprep.subr.mxu0 0.0
      %881 = vmatpush1.msra.mxu0 0.0
      %882 = vmatprep.subr.mxu0 0.0
      %883 = vmatpush1.msra.mxu0 0.0
      %884 = vmatprep.subr.mxu0 0.0
      %885 = vmatpush1.msra.mxu0 0.0
      %886 = vmatprep.mubr.f32.mxu0 0.0
      %887 = vmatmul.mubr.f32.gmra.mrb[0].mxu0 %v820
      %v888 = vpop.f32.mrb[0].mxu0
      %v889 = vadd.f32 0.0, %v888
      %v890 = vpop.f32.mrb[0].mxu0
      %891 = vdwg.mxu0
      %892 = vst.msk [vmem:[%s237] sm:$0xff] %vm251, %v670
      %893 = vst.msk [vmem:[%s237 + $0x8] sm:$0xff] %vm251, %v743
      %894 = vst.msk [vmem:[%s237 + $0x10] sm:$0xff] %vm251, %v816
      %895 = vst.msk [vmem:[%s237 + $0x18] sm:$0xff] %vm251, %v889
      %p896 = scmp.lt.s32.totalorder %s15, 1
      %s897 = scalar_select %p896, %s15, 1
      %s898 = smul.addr %s897, 4
      %s899 = smul.addr %s898, 8
      %s900 = scalar_lea.vmem %s4, %s899
      // Predicated region
      $region37: #{decoder_layer.10} parent=35 // pred_check
        %p901 = pneg %p132
      $region38: #{decoder_layer.10} parent=35 // pred_check_branch
        %903 = sbr.rel (%p901) target = $region40
      $region39: #{decoder_layer.10} parent=35 // pred_region
        _
      $region40: #{decoder_layer.10} parent=35 // pred_fallthru
        _
    $region36: #{decoder_layer.10} parent=5 // pred_fallthru
      _
    %p904 = scmp.le.s32.totalorder 2, %s10
    // Predicated region
    $region41: #{decoder_layer.10} parent=5 // pred_check
      %p905 = pneg %p904
    $region42: #{decoder_layer.10} parent=5 // pred_check_branch
      %907 = sbr.rel (%p905) target = $region44
    $region43: #{decoder_layer.10} parent=5 // pred_region
      %s908 = ssub.s32 %s10, 2
      // Predicated region
      $region45: #{decoder_layer.10} parent=43 // pred_check
        %p909 = pneg %p138
      $region46: #{decoder_layer.10} parent=43 // pred_check_branch
        %911 = sbr.rel (%p909) target = $region48
      $region47: #{decoder_layer.10} parent=43 // pred_region
        %p912 = scmp.lt.s32.totalorder %s16, 1
        %s913 = scalar_select %p912, %s16, 1
        %s914 = smul.addr %s913, 4
        %s915 = smul.addr %s914, 8
        %s916 = scalar_lea.vmem %s4, %s915
      $region48: #{decoder_layer.10} parent=43 // pred_fallthru
        _
    $region44: #{decoder_layer.10} parent=5 // pred_fallthru
      _
  $region6: #{decoder_layer.10} parent=0 // loop_footer
    %s14 = sadd.s32 1, %s10
  $region7: #{decoder_layer.10} parent=0 // loop_footer_branch
    %9 = sbr.rel target = $region3
  $region8: #{decoder_layer.10} parent=0 // loop_exit
    _

// kernel: decoder_layer.13
$region0: #{decoder_layer.13}
  #allocation0 [shape = 'u32[]', space=smem, size = 0x4, offset = 0x4, fixed_abs, tag = 'smem constant byte address 0x4 - core index']
  #allocation1 [shape = 'u32[144,128]{1,0:T(1,128)}', space=vmem, size = 0x12000, scoped, tag = 'internal scratch']
  %s0 = inlined_call_operand.vmem [shape: f32[16,32], index: 0, kind: input, shape index: {}]
  %s1 = inlined_call_operand.vmem [shape: f32[32,32], index: 1, kind: input, shape index: {}]
  %s2 = inlined_call_operand.vmem [shape: f32[1,32], index: 2, kind: input, shape index: {}]
  %s3 = inlined_call_operand.vmem [shape: f32[16,32], index: 3, kind: output, shape index: {}]
  %s4 = sld [smem:[#allocation0]]
  $region22: #{decoder_layer.13} parent=0
    _
  %s6 = ssub.s32 1, %s4
  %s7 = scalar_select 0, %s6, %s4
  // Predicated region
  $region2: #{decoder_layer.13} parent=0 // pred_check
    _
  $region3: #{decoder_layer.13} parent=0 // pred_check_branch
    %9 = sbr.rel (0) target = $region5
  $region4: #{decoder_layer.13} parent=0 // pred_region
    _
  $region5: #{decoder_layer.13} parent=0 // pred_fallthru
    _
  // Predicated region
  $region6: #{decoder_layer.13} parent=0 // pred_check
    _
  $region7: #{decoder_layer.13} parent=0 // pred_check_branch
    %11 = sbr.rel (0) target = $region9
  $region8: #{decoder_layer.13} parent=0 // pred_region
    _
  $region9: #{decoder_layer.13} parent=0 // pred_fallthru
    _
  // Predicated region
  $region10: #{decoder_layer.13} parent=0 // pred_check
    _
  $region11: #{decoder_layer.13} parent=0 // pred_check_branch
    %13 = sbr.rel (0) target = $region13
  $region12: #{decoder_layer.13} parent=0 // pred_region
    _
  $region13: #{decoder_layer.13} parent=0 // pred_fallthru
    _
  %v14 = vld [vmem:[%s0] sm:$0xff]
  %v15 = vld [vmem:[%s0 + $0x8] sm:$0xff]
  %v16 = vld [vmem:[%s1] sm:$0xff]
  %v17 = vld [vmem:[%s1 + $0x8] sm:$0xff]
  %v18 = vld [vmem:[%s1 + $0x10] sm:$0xff]
  %v19 = vld [vmem:[%s1 + $0x18] sm:$0xff]
  %v20 = vld [vmem:[%s2] sm:$0x1]
  %v22 = vlaneseq
  %v23 = vshrl.u32 %v22, 7
  %v24 = vsub.s32 0, %v23
  %v25 = vrot.slane %v20, %v24
  %vm27 = vcmask 261120
  %v29 = vsel %vm27, %v14, 0
  %v32 = vsel %vm27, %v15, 0
  %34 = vmatprep.subr.mxu0 0.0
  %35 = vmatpush1.msra.mxu0 %v16
  %36 = vmatprep.subr.mxu0 0.0
  %37 = vmatpush1.msra.mxu0 %v17
  %38 = vmatprep.subr.mxu0 0.0
  %39 = vmatpush1.msra.mxu0 %v18
  %40 = vmatprep.subr.mxu0 0.0
  %41 = vmatpush1.msra.mxu0 %v19
  %42 = vmatprep.subr.mxu0 0.0
  %43 = vmatpush1.msra.mxu0 0.0
  %44 = vmatprep.subr.mxu0 0.0
  %45 = vmatpush1.msra.mxu0 0.0
  %46 = vmatprep.subr.mxu0 0.0
  %47 = vmatpush1.msra.mxu0 0.0
  %48 = vmatprep.subr.mxu0 0.0
  %49 = vmatpush1.msra.mxu0 0.0
  %50 = vmatprep.subr.mxu0 0.0
  %51 = vmatpush1.msra.mxu0 0.0
  %52 = vmatprep.subr.mxu0 0.0
  %53 = vmatpush1.msra.mxu0 0.0
  %54 = vmatprep.subr.mxu0 0.0
  %55 = vmatpush1.msra.mxu0 0.0
  %56 = vmatprep.subr.mxu0 0.0
  %57 = vmatpush1.msra.mxu0 0.0
  %58 = vmatprep.subr.mxu0 0.0
  %59 = vmatpush1.msra.mxu0 0.0
  %60 = vmatprep.subr.mxu0 0.0
  %61 = vmatpush1.msra.mxu0 0.0
  %62 = vmatprep.subr.mxu0 0.0
  %63 = vmatpush1.msra.mxu0 0.0
  %64 = vmatprep.subr.mxu0 0.0
  %65 = vmatpush1.msra.mxu0 0.0
  %66 = vmatprep.subr.mxu0 0.0
  %67 = vmatpush1.msra.mxu0 0.0
  %68 = vmatprep.subr.mxu0 0.0
  %69 = vmatpush1.msra.mxu0 0.0
  %70 = vmatprep.subr.mxu0 0.0
  %71 = vmatpush1.msra.mxu0 0.0
  %72 = vmatprep.subr.mxu0 0.0
  %73 = vmatpush1.msra.mxu0 0.0
  %74 = vmatprep.subr.mxu0 0.0
  %75 = vmatpush1.msra.mxu0 0.0
  %76 = vmatprep.subr.mxu0 0.0
  %77 = vmatpush1.msra.mxu0 0.0
  %78 = vmatprep.subr.mxu0 0.0
  %79 = vmatpush1.msra.mxu0 0.0
  %80 = vmatprep.subr.mxu0 0.0
  %81 = vmatpush1.msra.mxu0 0.0
  %82 = vmatprep.subr.mxu0 0.0
  %83 = vmatpush1.msra.mxu0 0.0
  %84 = vmatprep.subr.mxu0 0.0
  %85 = vmatpush1.msra.mxu0 0.0
  %86 = vmatprep.subr.mxu0 0.0
  %87 = vmatpush1.msra.mxu0 0.0
  %88 = vmatprep.subr.mxu0 0.0
  %89 = vmatpush1.msra.mxu0 0.0
  %90 = vmatprep.subr.mxu0 0.0
  %91 = vmatpush1.msra.mxu0 0.0
  %92 = vmatprep.subr.mxu0 0.0
  %93 = vmatpush1.msra.mxu0 0.0
  %94 = vmatprep.subr.mxu0 0.0
  %95 = vmatpush1.msra.mxu0 0.0
  %96 = vmatprep.subr.mxu0 0.0
  %97 = vmatpush1.msra.mxu0 0.0
  %98 = vmatprep.mubr.f32.mxu0 0.0
  %99 = vmatmul.mubr.f32.gmra.mrb[0].mxu0 %v29
  %v100 = vpop.f32.mrb[0].mxu0
  %v101 = vadd.f32 %v25, %v100
  %v102 = vpop.f32.mrb[0].mxu0
  %103 = vmatprep.mubr.f32.mxu0 0.0
  %104 = vmatmul.mubr.f32.gmra.mrb[0].mxu0 %v32
  %v105 = vpop.f32.mrb[0].mxu0
  %v106 = vadd.f32 %v25, %v105
  %v107 = vpop.f32.mrb[0].mxu0
  %108 = vdwg.mxu0
  %109 = vst.msk [vmem:[%s3] sm:$0xff] %vm27, %v101
  %110 = vst.msk [vmem:[%s3 + $0x8] sm:$0xff] %vm27, %v106
  // Predicated region
  $region14: #{decoder_layer.13} parent=0 // pred_check
    _
  $region15: #{decoder_layer.13} parent=0 // pred_check_branch
    %112 = sbr.rel (0) target = $region17
  $region16: #{decoder_layer.13} parent=0 // pred_region
    _
  $region17: #{decoder_layer.13} parent=0 // pred_fallthru
    _
  // Predicated region
  $region18: #{decoder_layer.13} parent=0 // pred_check
    _
  $region19: #{decoder_layer.13} parent=0 // pred_check_branch
    %114 = sbr.rel (0) target = $region21
  $region20: #{decoder_layer.13} parent=0 // pred_region
    _
  $region21: #{decoder_layer.13} parent=0 // pred_fallthru
    _

// kernel: decoder_layer.17
$region0: #{decoder_layer.17}
  #allocation0 [shape = 'u32[]', space=smem, size = 0x4, offset = 0x4, fixed_abs, tag = 'smem constant byte address 0x4 - core index']
  #allocation1 [shape = 'u32[144,128]{1,0:T(1,128)}', space=vmem, size = 0x12000, scoped, tag = 'internal scratch']
  %s0 = inlined_call_operand.vmem [shape: f32[16,32], index: 0, kind: input, shape index: {}]
  %s1 = inlined_call_operand.vmem [shape: f32[1,32], index: 1, kind: input, shape index: {}]
  %s2 = inlined_call_operand.vmem [shape: f32[1,32], index: 2, kind: input, shape index: {}]
  %s3 = inlined_call_operand.vmem [shape: f32[32,64], index: 3, kind: input, shape index: {}]
  %s4 = inlined_call_operand.vmem [shape: f32[1,64], index: 4, kind: input, shape index: {}]
  %s5 = inlined_call_operand.vmem [shape: f32[64,32], index: 5, kind: input, shape index: {}]
  %s6 = inlined_call_operand.vmem [shape: f32[1,32], index: 6, kind: input, shape index: {}]
  %s7 = inlined_call_operand.hbm [shape: f32[16,32], index: 7, kind: output, shape index: {}]
  %s8 = sld [smem:[#allocation0]]
  $region38: #{decoder_layer.17} parent=0
    _
  %s10 = ssub.s32 1, %s8
  %s11 = scalar_select 0, %s10, %s8
  $region1: #{decoder_layer.17} parent=0
    #allocation2 [shape = 'u8[8192]{0}', space=vmem, size = 0x2000, scoped, tag = 'output window, operand 0, single buffered']
    #allocation3 [shape = 's32[1]{0}', space=sflag, size = 0x4, scoped, tag = 'scoped memory for decoder_layer.17']
    %12 = vsyncpa [#allocation3], 0
    // Predicated region
    $region2: #{decoder_layer.17} parent=1 // pred_check
      _
    $region3: #{decoder_layer.17} parent=1 // pred_check_branch
      %14 = sbr.rel (0) target = $region5
    $region4: #{decoder_layer.17} parent=1 // pred_region
      _
    $region5: #{decoder_layer.17} parent=1 // pred_fallthru
      _
    // Predicated region
    $region6: #{decoder_layer.17} parent=1 // pred_check
      _
    $region7: #{decoder_layer.17} parent=1 // pred_check_branch
      %16 = sbr.rel (0) target = $region9
    $region8: #{decoder_layer.17} parent=1 // pred_region
      _
    $region9: #{decoder_layer.17} parent=1 // pred_fallthru
      _
    // Predicated region
    $region10: #{decoder_layer.17} parent=1 // pred_check
      _
    $region11: #{decoder_layer.17} parent=1 // pred_check_branch
      %18 = sbr.rel (0) target = $region13
    $region12: #{decoder_layer.17} parent=1 // pred_region
      _
    $region13: #{decoder_layer.17} parent=1 // pred_fallthru
      _
    // Predicated region
    $region14: #{decoder_layer.17} parent=1 // pred_check
      _
    $region15: #{decoder_layer.17} parent=1 // pred_check_branch
      %20 = sbr.rel (0) target = $region17
    $region16: #{decoder_layer.17} parent=1 // pred_region
      _
    $region17: #{decoder_layer.17} parent=1 // pred_fallthru
      _
    // Predicated region
    $region18: #{decoder_layer.17} parent=1 // pred_check
      _
    $region19: #{decoder_layer.17} parent=1 // pred_check_branch
      %22 = sbr.rel (0) target = $region21
    $region20: #{decoder_layer.17} parent=1 // pred_region
      _
    $region21: #{decoder_layer.17} parent=1 // pred_fallthru
      _
    // Predicated region
    $region22: #{decoder_layer.17} parent=1 // pred_check
      _
    $region23: #{decoder_layer.17} parent=1 // pred_check_branch
      %24 = sbr.rel (0) target = $region25
    $region24: #{decoder_layer.17} parent=1 // pred_region
      _
    $region25: #{decoder_layer.17} parent=1 // pred_fallthru
      _
    // Predicated region
    $region26: #{decoder_layer.17} parent=1 // pred_check
      _
    $region27: #{decoder_layer.17} parent=1 // pred_check_branch
      %26 = sbr.rel (0) target = $region29
    $region28: #{decoder_layer.17} parent=1 // pred_region
      _
    $region29: #{decoder_layer.17} parent=1 // pred_fallthru
      _
    %v27 = vld [vmem:[%s0] sm:$0xff]
    %v28 = vld [vmem:[%s0 + $0x8] sm:$0xff]
    %v29 = vld [vmem:[%s1] sm:$0x1]
    %v30 = vld [vmem:[%s2] sm:$0x1]
    %vm31 = vcmask 261120
    %v32 = vsel %vm31, %v27, 0.0
    %33 = vadd.xlane.f32.xlu0 %v32
    %v34 = vpop.xlane.xlu0 %33
    %v35 = vsel %vm31, %v28, 0.0
    %36 = vadd.xlane.f32.xlu0 %v35
    %v37 = vpop.xlane.xlu0 %36
    %v38 = vrcp.pop 32.0
    %v39 = vmul.f32 %v34, %v38
    %v40 = vmul.f32 %v37, %v38
    %v41 = vsub.f32 %v27, %v39
    %v42 = vsub.f32 %v28, %v40
    %v43 = vmul.f32 %v41, %v41
    %v44 = vmul.f32 %v42, %v42
    %v45 = vsel %vm31, %v43, 0.0
    %46 = vadd.xlane.f32.xlu0 %v45
    %v47 = vpop.xlane.xlu0 %46
    %v48 = vsel %vm31, %v44, 0.0
    %49 = vadd.xlane.f32.xlu0 %v48
    %v50 = vpop.xlane.xlu0 %49
    %v51 = vmul.f32 %v47, %v38
    %v52 = vmul.f32 %v50, %v38
    %v53 = vadd.f32 %v51, 1e-05
    %v54 = vadd.f32 %v52, 1e-05
    %v55 = vrsqrt.pop %v53
    %v56 = vrsqrt.pop %v54
    %v57 = vmul.f32 %v41, %v55
    %v58 = vmul.f32 %v42, %v56
    %v60 = vlaneseq
    %v61 = vshrl.u32 %v60, 7
    %v62 = vsub.s32 0, %v61
    %v63 = vrot.slane %v29, %v62
    %v65 = vmul.f32 %v57, %v63
    %v66 = vmul.f32 %v58, %v63
    %v68 = vlaneseq
    %v69 = vshrl.u32 %v68, 7
    %v70 = vsub.s32 0, %v69
    %v71 = vrot.slane %v30, %v70
    %v73 = vadd.f32 %v65, %v71
    %v74 = vadd.f32 %v66, %v71
    %v75 = vld [vmem:[%s3] sm:$0xff]
    %v76 = vld [vmem:[%s3 + $0x8] sm:$0xff]
    %v77 = vld [vmem:[%s3 + $0x10] sm:$0xff]
    %v78 = vld [vmem:[%s3 + $0x18] sm:$0xff]
    %v79 = vld [vmem:[%s4] sm:$0x1]
    %v81 = vlaneseq
    %v82 = vshrl.u32 %v81, 7
    %v83 = vsub.s32 0, %v82
    %v84 = vrot.slane %v79, %v83
    %v87 = vsel %vm31, %v73, 0
    %v90 = vsel %vm31, %v74, 0
    %92 = vmatprep.subr.mxu0 0.0
    %93 = vmatpush1.msra.mxu0 %v75
    %94 = vmatprep.subr.mxu0 0.0
    %95 = vmatpush1.msra.mxu0 %v76
    %96 = vmatprep.subr.mxu0 0.0
    %97 = vmatpush1.msra.mxu0 %v77
    %98 = vmatprep.subr.mxu0 0.0
    %99 = vmatpush1.msra.mxu0 %v78
    %100 = vmatprep.subr.mxu0 0.0
    %101 = vmatpush1.msra.mxu0 0.0
    %102 = vmatprep.subr.mxu0 0.0
    %103 = vmatpush1.msra.mxu0 0.0
    %104 = vmatprep.subr.mxu0 0.0
    %105 = vmatpush1.msra.mxu0 0.0
    %106 = vmatprep.subr.mxu0 0.0
    %107 = vmatpush1.msra.mxu0 0.0
    %108 = vmatprep.subr.mxu0 0.0
    %109 = vmatpush1.msra.mxu0 0.0
    %110 = vmatprep.subr.mxu0 0.0
    %111 = vmatpush1.msra.mxu0 0.0
    %112 = vmatprep.subr.mxu0 0.0
    %113 = vmatpush1.msra.mxu0 0.0
    %114 = vmatprep.subr.mxu0 0.0
    %115 = vmatpush1.msra.mxu0 0.0
    %116 = vmatprep.subr.mxu0 0.0
    %117 = vmatpush1.msra.mxu0 0.0
    %118 = vmatprep.subr.mxu0 0.0
    %119 = vmatpush1.msra.mxu0 0.0
    %120 = vmatprep.subr.mxu0 0.0
    %121 = vmatpush1.msra.mxu0 0.0
    %122 = vmatprep.subr.mxu0 0.0
    %123 = vmatpush1.msra.mxu0 0.0
    %124 = vmatprep.subr.mxu0 0.0
    %125 = vmatpush1.msra.mxu0 0.0
    %126 = vmatprep.subr.mxu0 0.0
    %127 = vmatpush1.msra.mxu0 0.0
    %128 = vmatprep.subr.mxu0 0.0
    %129 = vmatpush1.msra.mxu0 0.0
    %130 = vmatprep.subr.mxu0 0.0
    %131 = vmatpush1.msra.mxu0 0.0
    %132 = vmatprep.subr.mxu0 0.0
    %133 = vmatpush1.msra.mxu0 0.0
    %134 = vmatprep.subr.mxu0 0.0
    %135 = vmatpush1.msra.mxu0 0.0
    %136 = vmatprep.subr.mxu0 0.0
    %137 = vmatpush1.msra.mxu0 0.0
    %138 = vmatprep.subr.mxu0 0.0
    %139 = vmatpush1.msra.mxu0 0.0
    %140 = vmatprep.subr.mxu0 0.0
    %141 = vmatpush1.msra.mxu0 0.0
    %142 = vmatprep.subr.mxu0 0.0
    %143 = vmatpush1.msra.mxu0 0.0
    %144 = vmatprep.subr.mxu0 0.0
    %145 = vmatpush1.msra.mxu0 0.0
    %146 = vmatprep.subr.mxu0 0.0
    %147 = vmatpush1.msra.mxu0 0.0
    %148 = vmatprep.subr.mxu0 0.0
    %149 = vmatpush1.msra.mxu0 0.0
    %150 = vmatprep.subr.mxu0 0.0
    %151 = vmatpush1.msra.mxu0 0.0
    %152 = vmatprep.subr.mxu0 0.0
    %153 = vmatpush1.msra.mxu0 0.0
    %154 = vmatprep.subr.mxu0 0.0
    %155 = vmatpush1.msra.mxu0 0.0
    %156 = vmatprep.mubr.f32.mxu0 0.0
    %157 = vmatmul.mubr.f32.gmra.mrb[0].mxu0 %v87
    %v158 = vpop.f32.mrb[0].mxu0
    %v159 = vadd.f32 %v84, %v158
    %v160 = vpop.f32.mrb[0].mxu0
    %161 = vmatprep.mubr.f32.mxu0 0.0
    %162 = vmatmul.mubr.f32.gmra.mrb[0].mxu0 %v90
    %v163 = vpop.f32.mrb[0].mxu0
    %v164 = vadd.f32 %v84, %v163
    %v165 = vpop.f32.mrb[0].mxu0
    %166 = vdwg.mxu0
    %v167 = vmul.f32 %v159, 0.5
    %v168 = vmul.f32 %v164, 0.5
    %v169 = vmul.f32 %v159, 0.044715
    %v170 = vmul.f32 %v164, 0.044715
    %v171 = vmul.f32 %v169, %v159
    %v172 = vmul.f32 %v170, %v164
    %v173 = vmul.f32 %v171, %v159
    %v174 = vmul.f32 %v172, %v164
    %v175 = vadd.f32 %v159, %v173
    %v176 = vadd.f32 %v164, %v174
    %v177 = vmul.f32 %v175, 0.7978846
    %v178 = vmul.f32 %v176, 0.7978846
    %v179 = vtanh.pop %v177
    %v180 = vtanh.pop %v178
    %v181 = vadd.f32 %v179, 1.0
    %v182 = vadd.f32 %v180, 1.0
    %v183 = vmul.f32 %v167, %v181
    %v184 = vmul.f32 %v168, %v182
    %v185 = vld [vmem:[%s5] sm:$0xff]
    %v186 = vld [vmem:[%s5 + $0x8] sm:$0xff]
    %v187 = vld [vmem:[%s5 + $0x10] sm:$0xff]
    %v188 = vld [vmem:[%s5 + $0x18] sm:$0xff]
    %v189 = vld [vmem:[%s5 + $0x20] sm:$0xff]
    %v190 = vld [vmem:[%s5 + $0x28] sm:$0xff]
    %v191 = vld [vmem:[%s5 + $0x30] sm:$0xff]
    %v192 = vld [vmem:[%s5 + $0x38] sm:$0xff]
    %v193 = vld [vmem:[%s6] sm:$0x1]
    %v195 = vlaneseq
    %v196 = vshrl.u32 %v195, 7
    %v197 = vsub.s32 0, %v196
    %v198 = vrot.slane %v193, %v197
    %vm200 = vcmask 523264
    %v202 = vsel %vm200, %v183, 0
    %v205 = vsel %vm200, %v184, 0
    %207 = vmatprep.subr.mxu0 0.0
    %208 = vmatpush1.msra.mxu0 %v185
    %209 = vmatprep.subr.mxu0 0.0
    %210 = vmatpush1.msra.mxu0 %v186
    %211 = vmatprep.subr.mxu0 0.0
    %212 = vmatpush1.msra.mxu0 %v187
    %213 = vmatprep.subr.mxu0 0.0
    %214 = vmatpush1.msra.mxu0 %v188
    %215 = vmatprep.subr.mxu0 0.0
    %216 = vmatpush1.msra.mxu0 %v189
    %217 = vmatprep.subr.mxu0 0.0
    %218 = vmatpush1.msra.mxu0 %v190
    %219 = vmatprep.subr.mxu0 0.0
    %220 = vmatpush1.msra.mxu0 %v191
    %221 = vmatprep.subr.mxu0 0.0
    %222 = vmatpush1.msra.mxu0 %v192
    %223 = vmatprep.subr.mxu0 0.0
    %224 = vmatpush1.msra.mxu0 0.0
    %225 = vmatprep.subr.mxu0 0.0
    %226 = vmatpush1.msra.mxu0 0.0
    %227 = vmatprep.subr.mxu0 0.0
    %228 = vmatpush1.msra.mxu0 0.0
    %229 = vmatprep.subr.mxu0 0.0
    %230 = vmatpush1.msra.mxu0 0.0
    %231 = vmatprep.subr.mxu0 0.0
    %232 = vmatpush1.msra.mxu0 0.0
    %233 = vmatprep.subr.mxu0 0.0
    %234 = vmatpush1.msra.mxu0 0.0
    %235 = vmatprep.subr.mxu0 0.0
    %236 = vmatpush1.msra.mxu0 0.0
    %237 = vmatprep.subr.mxu0 0.0
    %238 = vmatpush1.msra.mxu0 0.0
    %239 = vmatprep.subr.mxu0 0.0
    %240 = vmatpush1.msra.mxu0 0.0
    %241 = vmatprep.subr.mxu0 0.0
    %242 = vmatpush1.msra.mxu0 0.0
    %243 = vmatprep.subr.mxu0 0.0
    %244 = vmatpush1.msra.mxu0 0.0
    %245 = vmatprep.subr.mxu0 0.0
    %246 = vmatpush1.msra.mxu0 0.0
    %247 = vmatprep.subr.mxu0 0.0
    %248 = vmatpush1.msra.mxu0 0.0
    %249 = vmatprep.subr.mxu0 0.0
    %250 = vmatpush1.msra.mxu0 0.0
    %251 = vmatprep.subr.mxu0 0.0
    %252 = vmatpush1.msra.mxu0 0.0
    %253 = vmatprep.subr.mxu0 0.0
    %254 = vmatpush1.msra.mxu0 0.0
    %255 = vmatprep.subr.mxu0 0.0
    %256 = vmatpush1.msra.mxu0 0.0
    %257 = vmatprep.subr.mxu0 0.0
    %258 = vmatpush1.msra.mxu0 0.0
    %259 = vmatprep.subr.mxu0 0.0
    %260 = vmatpush1.msra.mxu0 0.0
    %261 = vmatprep.subr.mxu0 0.0
    %262 = vmatpush1.msra.mxu0 0.0
    %263 = vmatprep.subr.mxu0 0.0
    %264 = vmatpush1.msra.mxu0 0.0
    %265 = vmatprep.subr.mxu0 0.0
    %266 = vmatpush1.msra.mxu0 0.0
    %267 = vmatprep.subr.mxu0 0.0
    %268 = vmatpush1.msra.mxu0 0.0
    %269 = vmatprep.subr.mxu0 0.0
    %270 = vmatpush1.msra.mxu0 0.0
    %271 = vmatprep.mubr.f32.mxu0 0.0
    %272 = vmatmul.mubr.f32.gmra.mrb[0].mxu0 %v202
    %v273 = vpop.f32.mrb[0].mxu0
    %v274 = vadd.f32 %v198, %v273
    %v275 = vpop.f32.mrb[0].mxu0
    %276 = vmatprep.mubr.f32.mxu0 0.0
    %277 = vmatmul.mubr.f32.gmra.mrb[0].mxu0 %v205
    %v278 = vpop.f32.mrb[0].mxu0
    %v279 = vadd.f32 %v198, %v278
    %v280 = vpop.f32.mrb[0].mxu0
    %281 = vdwg.mxu0
    %v282 = vadd.f32 %v27, %v274
    %v283 = vadd.f32 %v28, %v279
    %284 = vst.msk [vmem:[#allocation2] sm:$0xff] %vm31, %v282
    %285 = vst.msk [vmem:[#allocation2 + $0x8] sm:$0xff] %vm31, %v283
    // Predicated region
    $region30: #{decoder_layer.17} parent=1 // pred_check
      _
    $region31: #{decoder_layer.17} parent=1 // pred_check_branch
      %287 = sbr.rel (0) target = $region33
    $region32: #{decoder_layer.17} parent=1 // pred_region
      %s289 = ssub.s32 256, 256
      %290 = vsyncadd [#allocation3], %s289
      %s291 = sshll.u32 [#allocation2], 4
      %s292 = int_to_ptr.vmem [resolvable:$true] %s291
      %297 = dma.vmem_to_hbm [thread:$0]  %s292, 256, %s7, [#allocation3], 128, 128, 8
    $region33: #{decoder_layer.17} parent=1 // pred_fallthru
      _
    // Predicated region
    $region34: #{decoder_layer.17} parent=1 // pred_check
      _
    $region35: #{decoder_layer.17} parent=1 // pred_check_branch
      %299 = sbr.rel (0) target = $region37
    $region36: #{decoder_layer.17} parent=1 // pred_region
      %300 = dma.done [#allocation3], 256
    $region37: #{decoder_layer.17} parent=1 // pred_fallthru
      _
    %301 = vsyncpa [#allocation3], 1

// kernel: decoder_layer.15
$region0: #{decoder_layer.15}
  #allocation0 [shape = 'u32[]', space=smem, size = 0x4, offset = 0x4, fixed_abs, tag = 'smem constant byte address 0x4 - core index']
  #allocation1 [shape = 'u32[144,128]{1,0:T(1,128)}', space=vmem, size = 0x12000, scoped, tag = 'internal scratch']
  %s0 = inlined_call_operand.vmem [shape: f32[2,4,8,8], index: 0, kind: input, shape index: {}]
  %s1 = inlined_call_operand.vmem [shape: f32[2,4,8,8], index: 1, kind: input, shape index: {}]
  %s2 = inlined_call_operand.vmem [shape: f32[2,4,8,8], index: 2, kind: input, shape index: {}]
  %s3 = inlined_call_operand.vmem [shape: f32[2,4,8,8], index: 3, kind: output, shape index: {}]
  %s4 = sld [smem:[#allocation0]]
  $region45: #{decoder_layer.15} parent=0
    _
  %s6 = ssub.s32 1, %s4
  %s7 = scalar_select 0, %s6, %s4
  loop: start=0, step=1, limit=4
  $region2: #{decoder_layer.15} parent=0 // loop_pre_header
    _
  $region3: #{decoder_layer.15} parent=0 // loop_header
    %s9 = sphi 0, %s13
    %p10 = scmp.ge.s32.totalorder %s9, 4
    %s19 = sphi 0, %s21
    %s22 = sphi 0, %s19
    %s23 = sphi 0, %s22
    %s39 = sphi 0, %s23
    %s45 = sphi 0, %s47
    %s48 = sphi 0, %s45
    %s49 = sphi 0, %s48
    %s65 = sphi 0, %s49
    %s71 = sphi 0, %s73
    %s74 = sphi 0, %s71
    %s75 = sphi 0, %s74
    %s91 = sphi 0, %s75
    %s97 = sphi 0, %s99
    %s100 = sphi 0, %s97
    %s101 = sphi 0, %s100
    %s117 = sphi 0, %s101
  $region4: #{decoder_layer.15} parent=0 // loop_header_branch
    %12 = sbr.rel (%p10) target = $region8
  $region5: #{decoder_layer.15} parent=0 // loop_body
    %s14 = ssub.s32 %s9, 1
    %s15 = ssub.s32 %s9, 2
    %s16 = sadd.s32 %s9, 1
    %s17 = ssub.s32 %s9, %s16
    %p18 = scmp.eq.s32.totalorder %s17, 0
    %s20 = sadd.s32 %s19, 1
    %s21 = scalar_select %p18, %s19, %s20
    %p24 = pneg %p18
    %p25 = scmp.eq.s32.totalorder %s9, 1
    %p26 = por %p24, %p25
    %p27 = scmp.ne.s32.totalorder %s19, %s22
    %p28 = scmp.eq.s32.totalorder %s9, 0
    %p29 = por %p27, %p28
    %p30 = scmp.ne.s32.totalorder %s19, %s22
    %p31 = scmp.eq.s32.totalorder %s14, 1
    %p32 = por %p30, %p31
    %p33 = scmp.ne.s32.totalorder %s22, %s23
    %p34 = scmp.eq.s32.totalorder %s14, 0
    %p35 = por %p33, %p34
    %p36 = scmp.ne.s32.totalorder %s22, %s23
    %p37 = scmp.eq.s32.totalorder %s15, 1
    %p38 = por %p36, %p37
    %p40 = scmp.ne.s32.totalorder %s23, %s39
    %p41 = scmp.eq.s32.totalorder %s15, 0
    %p42 = por %p40, %p41
    %s43 = ssub.s32 %s9, %s16
    %p44 = scmp.eq.s32.totalorder %s43, 0
    %s46 = sadd.s32 %s45, 1
    %s47 = scalar_select %p44, %s45, %s46
    %p50 = pneg %p44
    %p51 = scmp.eq.s32.totalorder %s9, 1
    %p52 = por %p50, %p51
    %p53 = scmp.ne.s32.totalorder %s45, %s48
    %p54 = scmp.eq.s32.totalorder %s9, 0
    %p55 = por %p53, %p54
    %p56 = scmp.ne.s32.totalorder %s45, %s48
    %p57 = scmp.eq.s32.totalorder %s14, 1
    %p58 = por %p56, %p57
    %p59 = scmp.ne.s32.totalorder %s48, %s49
    %p60 = scmp.eq.s32.totalorder %s14, 0
    %p61 = por %p59, %p60
    %p62 = scmp.ne.s32.totalorder %s48, %s49
    %p63 = scmp.eq.s32.totalorder %s15, 1
    %p64 = por %p62, %p63
    %p66 = scmp.ne.s32.totalorder %s49, %s65
    %p67 = scmp.eq.s32.totalorder %s15, 0
    %p68 = por %p66, %p67
    %s69 = ssub.s32 %s9, %s16
    %p70 = scmp.eq.s32.totalorder %s69, 0
    %s72 = sadd.s32 %s71, 1
    %s73 = scalar_select %p70, %s71, %s72
    %p76 = pneg %p70
    %p77 = scmp.eq.s32.totalorder %s9, 1
    %p78 = por %p76, %p77
    %p79 = scmp.ne.s32.totalorder %s71, %s74
    %p80 = scmp.eq.s32.totalorder %s9, 0
    %p81 = por %p79, %p80
    %p82 = scmp.ne.s32.totalorder %s71, %s74
    %p83 = scmp.eq.s32.totalorder %s14, 1
    %p84 = por %p82, %p83
    %p85 = scmp.ne.s32.totalorder %s74, %s75
    %p86 = scmp.eq.s32.totalorder %s14, 0
    %p87 = por %p85, %p86
    %p88 = scmp.ne.s32.totalorder %s74, %s75
    %p89 = scmp.eq.s32.totalorder %s15, 1
    %p90 = por %p88, %p89
    %p92 = scmp.ne.s32.totalorder %s75, %s91
    %p93 = scmp.eq.s32.totalorder %s15, 0
    %p94 = por %p92, %p93
    %s95 = ssub.s32 %s9, %s16
    %p96 = scmp.eq.s32.totalorder %s95, 0
    %s98 = sadd.s32 %s97, 1
    %s99 = scalar_select %p96, %s97, %s98
    %p102 = pneg %p96
    %p103 = scmp.eq.s32.totalorder %s9, 1
    %p104 = por %p102, %p103
    %p105 = scmp.ne.s32.totalorder %s97, %s100
    %p106 = scmp.eq.s32.totalorder %s9, 0
    %p107 = por %p105, %p106
    %p108 = scmp.ne.s32.totalorder %s97, %s100
    %p109 = scmp.eq.s32.totalorder %s14, 1
    %p110 = por %p108, %p109
    %p111 = scmp.ne.s32.totalorder %s100, %s101
    %p112 = scmp.eq.s32.totalorder %s14, 0
    %p113 = por %p111, %p112
    %p114 = scmp.ne.s32.totalorder %s100, %s101
    %p115 = scmp.eq.s32.totalorder %s15, 1
    %p116 = por %p114, %p115
    %p118 = scmp.ne.s32.totalorder %s101, %s117
    %p119 = scmp.eq.s32.totalorder %s15, 0
    %p120 = por %p118, %p119
    %p121 = scmp.le.s32.totalorder 1, %s9
    %p122 = scmp.lt.s32.totalorder %s9, 3
    %p123 = pnand %p121, %p122
    %p124 = pneg %p123
    // Predicated region
    $region9: #{decoder_layer.15} parent=5 // pred_check
      _
    $region10: #{decoder_layer.15} parent=5 // pred_check_branch
      %126 = sbr.rel (%p123) target = $region12
    $region11: #{decoder_layer.15} parent=5 // pred_region
      %s127 = ssub.s32 %s9, 1
    $region12: #{decoder_layer.15} parent=5 // pred_fallthru
      _
    %p128 = scmp.lt.s32.totalorder %s9, 2
    // Predicated region
    $region13: #{decoder_layer.15} parent=5 // pred_check
      %p129 = pneg %p128
    $region14: #{decoder_layer.15} parent=5 // pred_check_branch
      %131 = sbr.rel (%p129) target = $region16
    $region15: #{decoder_layer.15} parent=5 // pred_region
      // Predicated region
      $region17: #{decoder_layer.15} parent=15 // pred_check
        %p132 = pneg %p29
      $region18: #{decoder_layer.15} parent=15 // pred_check_branch
        %134 = sbr.rel (%p132) target = $region20
      $region19: #{decoder_layer.15} parent=15 // pred_region
        %p135 = scmp.lt.s32.totalorder %s9, 1
        %s136 = scalar_select %p135, %s9, 1
        %s137 = smul.addr %s136, 4
        %s138 = smul.addr %s137, 8
        %s139 = scalar_lea.vmem %s0, %s138
      $region20: #{decoder_layer.15} parent=15 // pred_fallthru
        _
      // Predicated region
      $region21: #{decoder_layer.15} parent=15 // pred_check
        %p140 = pneg %p55
      $region22: #{decoder_layer.15} parent=15 // pred_check_branch
        %142 = sbr.rel (%p140) target = $region24
      $region23: #{decoder_layer.15} parent=15 // pred_region
        %p143 = scmp.lt.s32.totalorder %s9, 1
        %s144 = scalar_select %p143, %s9, 1
        %s145 = smul.addr %s144, 4
        %s146 = smul.addr %s145, 8
        %s147 = scalar_lea.vmem %s1, %s146
      $region24: #{decoder_layer.15} parent=15 // pred_fallthru
        _
      // Predicated region
      $region25: #{decoder_layer.15} parent=15 // pred_check
        %p148 = pneg %p81
      $region26: #{decoder_layer.15} parent=15 // pred_check_branch
        %150 = sbr.rel (%p148) target = $region28
      $region27: #{decoder_layer.15} parent=15 // pred_region
        %p151 = scmp.lt.s32.totalorder %s9, 1
        %s152 = scalar_select %p151, %s9, 1
        %s153 = smul.addr %s152, 4
        %s154 = smul.addr %s153, 8
        %s155 = scalar_lea.vmem %s2, %s154
      $region28: #{decoder_layer.15} parent=15 // pred_fallthru
        _
    $region16: #{decoder_layer.15} parent=5 // pred_fallthru
      _
    %p156 = scmp.le.s32.totalorder 1, %s9
    %p157 = scmp.lt.s32.totalorder %s9, 3
    %p158 = pnand %p156, %p157
    %p159 = pneg %p158
    // Predicated region
    $region29: #{decoder_layer.15} parent=5 // pred_check
      _
    $region30: #{decoder_layer.15} parent=5 // pred_check_branch
      %161 = sbr.rel (%p158) target = $region32
    $region31: #{decoder_layer.15} parent=5 // pred_region
      %s162 = ssub.s32 %s9, 1
      %p163 = scmp.lt.s32.totalorder %s14, 1
      %s164 = scalar_select %p163, %s14, 1
      %s165 = smul.addr %s164, 4
      %s166 = smul.addr %s165, 8
      %s167 = scalar_lea.vmem %s0, %s166
      %p168 = pneg %p35
      %p169 = pneg %p32
      %p170 = scmp.lt.s32.totalorder %s14, 1
      %s171 = scalar_select %p170, %s14, 1
      %s172 = smul.addr %s171, 4
      %s173 = smul.addr %s172, 8
      %s174 = scalar_lea.vmem %s1, %s173
      %p175 = pneg %p61
      %p176 = pneg %p58
      %p177 = scmp.lt.s32.totalorder %s14, 1
      %s178 = scalar_select %p177, %s14, 1
      %s179 = smul.addr %s178, 4
      %s180 = smul.addr %s179, 8
      %s181 = scalar_lea.vmem %s2, %s180
      %p182 = pneg %p87
      %p183 = pneg %p84
      %p184 = pneg %p113
      %p185 = pneg %p110
      %p186 = scmp.lt.s32.totalorder %s14, 1
      %s187 = scalar_select %p186, %s14, 1
      %s188 = smul.addr %s187, 4
      %s189 = smul.addr %s188, 8
      %s190 = scalar_lea.vmem %s3, %s189
      %p191 = scmp.lt.s32.totalorder %s14, 1
      %s192 = scalar_select %p191, %s14, 1
      %s193 = smul.addr %s192, 4
      %s194 = smul.addr %s193, 8
      %s195 = scalar_lea.vmem %s0, %s194
      %p196 = scmp.lt.s32.totalorder %s14, 1
      %s197 = scalar_select %p196, %s14, 1
      %s198 = smul.addr %s197, 4
      %s199 = smul.addr %s198, 8
      %s200 = scalar_lea.vmem %s1, %s199
      %p201 = scmp.lt.s32.totalorder %s14, 1
      %s202 = scalar_select %p201, %s14, 1
      %s203 = smul.addr %s202, 4
      %s204 = smul.addr %s203, 8
      %s205 = scalar_lea.vmem %s2, %s204
      %p206 = scmp.lt.s32.totalorder %s14, 1
      %s207 = scalar_select %p206, %s14, 1
      %s208 = smul.addr %s207, 4
      %s209 = smul.addr %s208, 8
      %s210 = scalar_lea.vmem %s3, %s209
      %v211 = vld [vmem:[%s195] sm:$0xff]
      %v212 = vld [vmem:[%s195 + $0x8] sm:$0xff]
      %v213 = vld [vmem:[%s195 + $0x10] sm:$0xff]
      %v214 = vld [vmem:[%s195 + $0x18] sm:$0xff]
      %v215 = vld [vmem:[%s200] sm:$0xff]
      %v216 = vld [vmem:[%s200 + $0x8] sm:$0xff]
      %v217 = vld [vmem:[%s200 + $0x10] sm:$0xff]
      %v218 = vld [vmem:[%s200 + $0x18] sm:$0xff]
      %v219 = vld [vmem:[%s205] sm:$0xff]
      %v220 = vld [vmem:[%s205 + $0x8] sm:$0xff]
      %v221 = vld [vmem:[%s205 + $0x10] sm:$0xff]
      %v222 = vld [vmem:[%s205 + $0x18] sm:$0xff]
      %vm223 = vcmask 64512
      %v225 = vsel %vm223, %v211, 0
      %v228 = vsel %vm223, %v215, 0
      %230 = vmatprep.subr.mxu0 0.0
      %231 = vmatpush1.xpose.msra.mxu0 %v228
      %232 = vmatprep.subr.mxu0 0.0
      %233 = vmatpush1.xpose.msra.mxu0 0.0
      %234 = vmatprep.subr.mxu0 0.0
      %235 = vmatpush1.xpose.msra.mxu0 0.0
      %236 = vmatprep.subr.mxu0 0.0
      %237 = vmatpush1.xpose.msra.mxu0 0.0
      %238 = vmatprep.subr.mxu0 0.0
      %239 = vmatpush1.xpose.msra.mxu0 0.0
      %240 = vmatprep.subr.mxu0 0.0
      %241 = vmatpush1.xpose.msra.mxu0 0.0
      %242 = vmatprep.subr.mxu0 0.0
      %243 = vmatpush1.xpose.msra.mxu0 0.0
      %244 = vmatprep.subr.mxu0 0.0
      %245 = vmatpush1.xpose.msra.mxu0 0.0
      %246 = vmatprep.subr.mxu0 0.0
      %247 = vmatpush1.xpose.msra.mxu0 0.0
      %248 = vmatprep.subr.mxu0 0.0
      %249 = vmatpush1.xpose.msra.mxu0 0.0
      %250 = vmatprep.subr.mxu0 0.0
      %251 = vmatpush1.xpose.msra.mxu0 0.0
      %252 = vmatprep.subr.mxu0 0.0
      %253 = vmatpush1.xpose.msra.mxu0 0.0
      %254 = vmatprep.subr.mxu0 0.0
      %255 = vmatpush1.xpose.msra.mxu0 0.0
      %256 = vmatprep.subr.mxu0 0.0
      %257 = vmatpush1.xpose.msra.mxu0 0.0
      %258 = vmatprep.subr.mxu0 0.0
      %259 = vmatpush1.xpose.msra.mxu0 0.0
      %260 = vmatprep.subr.mxu0 0.0
      %261 = vmatpush1.xpose.msra.mxu0 0.0
      %262 = vmatprep.subr.mxu0 0.0
      %263 = vmatpush1.xpose.msra.mxu0 0.0
      %264 = vmatprep.subr.mxu0 0.0
      %265 = vmatpush1.xpose.msra.mxu0 0.0
      %266 = vmatprep.subr.mxu0 0.0
      %267 = vmatpush1.xpose.msra.mxu0 0.0
      %268 = vmatprep.subr.mxu0 0.0
      %269 = vmatpush1.xpose.msra.mxu0 0.0
      %270 = vmatprep.subr.mxu0 0.0
      %271 = vmatpush1.xpose.msra.mxu0 0.0
      %272 = vmatprep.subr.mxu0 0.0
      %273 = vmatpush1.xpose.msra.mxu0 0.0
      %274 = vmatprep.subr.mxu0 0.0
      %275 = vmatpush1.xpose.msra.mxu0 0.0
      %276 = vmatprep.subr.mxu0 0.0
      %277 = vmatpush1.xpose.msra.mxu0 0.0
      %278 = vmatprep.subr.mxu0 0.0
      %279 = vmatpush1.xpose.msra.mxu0 0.0
      %280 = vmatprep.subr.mxu0 0.0
      %281 = vmatpush1.xpose.msra.mxu0 0.0
      %282 = vmatprep.subr.mxu0 0.0
      %283 = vmatpush1.xpose.msra.mxu0 0.0
      %284 = vmatprep.subr.mxu0 0.0
      %285 = vmatpush1.xpose.msra.mxu0 0.0
      %286 = vmatprep.subr.mxu0 0.0
      %287 = vmatpush1.xpose.msra.mxu0 0.0
      %288 = vmatprep.subr.mxu0 0.0
      %289 = vmatpush1.xpose.msra.mxu0 0.0
      %290 = vmatprep.subr.mxu0 0.0
      %291 = vmatpush1.xpose.msra.mxu0 0.0
      %292 = vmatprep.subr.mxu0 0.0
      %293 = vmatpush1.xpose.msra.mxu0 0.0
      %294 = vmatprep.mubr.f32.mxu0 0.0
      %295 = vmatmul.mubr.f32.gmra.mrb[0].mxu0 %v225
      %v296 = vpop.f32.mrb[0].mxu0
      %v297 = vadd.f32 0.0, %v296
      %v298 = vpop.f32.mrb[0].mxu0
      %299 = vdwg.mxu0
      %v301 = vsel %vm223, %v212, 0
      %v304 = vsel %vm223, %v216, 0
      %306 = vmatprep.subr.mxu0 0.0
      %307 = vmatpush1.xpose.msra.mxu0 %v304
      %308 = vmatprep.subr.mxu0 0.0
      %309 = vmatpush1.xpose.msra.mxu0 0.0
      %310 = vmatprep.subr.mxu0 0.0
      %311 = vmatpush1.xpose.msra.mxu0 0.0
      %312 = vmatprep.subr.mxu0 0.0
      %313 = vmatpush1.xpose.msra.mxu0 0.0
      %314 = vmatprep.subr.mxu0 0.0
      %315 = vmatpush1.xpose.msra.mxu0 0.0
      %316 = vmatprep.subr.mxu0 0.0
      %317 = vmatpush1.xpose.msra.mxu0 0.0
      %318 = vmatprep.subr.mxu0 0.0
      %319 = vmatpush1.xpose.msra.mxu0 0.0
      %320 = vmatprep.subr.mxu0 0.0
      %321 = vmatpush1.xpose.msra.mxu0 0.0
      %322 = vmatprep.subr.mxu0 0.0
      %323 = vmatpush1.xpose.msra.mxu0 0.0
      %324 = vmatprep.subr.mxu0 0.0
      %325 = vmatpush1.xpose.msra.mxu0 0.0
      %326 = vmatprep.subr.mxu0 0.0
      %327 = vmatpush1.xpose.msra.mxu0 0.0
      %328 = vmatprep.subr.mxu0 0.0
      %329 = vmatpush1.xpose.msra.mxu0 0.0
      %330 = vmatprep.subr.mxu0 0.0
      %331 = vmatpush1.xpose.msra.mxu0 0.0
      %332 = vmatprep.subr.mxu0 0.0
      %333 = vmatpush1.xpose.msra.mxu0 0.0
      %334 = vmatprep.subr.mxu0 0.0
      %335 = vmatpush1.xpose.msra.mxu0 0.0
      %336 = vmatprep.subr.mxu0 0.0
      %337 = vmatpush1.xpose.msra.mxu0 0.0
      %338 = vmatprep.subr.mxu0 0.0
      %339 = vmatpush1.xpose.msra.mxu0 0.0
      %340 = vmatprep.subr.mxu0 0.0
      %341 = vmatpush1.xpose.msra.mxu0 0.0
      %342 = vmatprep.subr.mxu0 0.0
      %343 = vmatpush1.xpose.msra.mxu0 0.0
      %344 = vmatprep.subr.mxu0 0.0
      %345 = vmatpush1.xpose.msra.mxu0 0.0
      %346 = vmatprep.subr.mxu0 0.0
      %347 = vmatpush1.xpose.msra.mxu0 0.0
      %348 = vmatprep.subr.mxu0 0.0
      %349 = vmatpush1.xpose.msra.mxu0 0.0
      %350 = vmatprep.subr.mxu0 0.0
      %351 = vmatpush1.xpose.msra.mxu0 0.0
      %352 = vmatprep.subr.mxu0 0.0
      %353 = vmatpush1.xpose.msra.mxu0 0.0
      %354 = vmatprep.subr.mxu0 0.0
      %355 = vmatpush1.xpose.msra.mxu0 0.0
      %356 = vmatprep.subr.mxu0 0.0
      %357 = vmatpush1.xpose.msra.mxu0 0.0
      %358 = vmatprep.subr.mxu0 0.0
      %359 = vmatpush1.xpose.msra.mxu0 0.0
      %360 = vmatprep.subr.mxu0 0.0
      %361 = vmatpush1.xpose.msra.mxu0 0.0
      %362 = vmatprep.subr.mxu0 0.0
      %363 = vmatpush1.xpose.msra.mxu0 0.0
      %364 = vmatprep.subr.mxu0 0.0
      %365 = vmatpush1.xpose.msra.mxu0 0.0
      %366 = vmatprep.subr.mxu0 0.0
      %367 = vmatpush1.xpose.msra.mxu0 0.0
      %368 = vmatprep.subr.mxu0 0.0
      %369 = vmatpush1.xpose.msra.mxu0 0.0
      %370 = vmatprep.mubr.f32.mxu0 0.0
      %371 = vmatmul.mubr.f32.gmra.mrb[0].mxu0 %v301
      %v372 = vpop.f32.mrb[0].mxu0
      %v373 = vadd.f32 0.0, %v372
      %v374 = vpop.f32.mrb[0].mxu0
      %375 = vdwg.mxu0
      %v377 = vsel %vm223, %v213, 0
      %v380 = vsel %vm223, %v217, 0
      %382 = vmatprep.subr.mxu0 0.0
      %383 = vmatpush1.xpose.msra.mxu0 %v380
      %384 = vmatprep.subr.mxu0 0.0
      %385 = vmatpush1.xpose.msra.mxu0 0.0
      %386 = vmatprep.subr.mxu0 0.0
      %387 = vmatpush1.xpose.msra.mxu0 0.0
      %388 = vmatprep.subr.mxu0 0.0
      %389 = vmatpush1.xpose.msra.mxu0 0.0
      %390 = vmatprep.subr.mxu0 0.0
      %391 = vmatpush1.xpose.msra.mxu0 0.0
      %392 = vmatprep.subr.mxu0 0.0
      %393 = vmatpush1.xpose.msra.mxu0 0.0
      %394 = vmatprep.subr.mxu0 0.0
      %395 = vmatpush1.xpose.msra.mxu0 0.0
      %396 = vmatprep.subr.mxu0 0.0
      %397 = vmatpush1.xpose.msra.mxu0 0.0
      %398 = vmatprep.subr.mxu0 0.0
      %399 = vmatpush1.xpose.msra.mxu0 0.0
      %400 = vmatprep.subr.mxu0 0.0
      %401 = vmatpush1.xpose.msra.mxu0 0.0
      %402 = vmatprep.subr.mxu0 0.0
      %403 = vmatpush1.xpose.msra.mxu0 0.0
      %404 = vmatprep.subr.mxu0 0.0
      %405 = vmatpush1.xpose.msra.mxu0 0.0
      %406 = vmatprep.subr.mxu0 0.0
      %407 = vmatpush1.xpose.msra.mxu0 0.0
      %408 = vmatprep.subr.mxu0 0.0
      %409 = vmatpush1.xpose.msra.mxu0 0.0
      %410 = vmatprep.subr.mxu0 0.0
      %411 = vmatpush1.xpose.msra.mxu0 0.0
      %412 = vmatprep.subr.mxu0 0.0
      %413 = vmatpush1.xpose.msra.mxu0 0.0
      %414 = vmatprep.subr.mxu0 0.0
      %415 = vmatpush1.xpose.msra.mxu0 0.0
      %416 = vmatprep.subr.mxu0 0.0
      %417 = vmatpush1.xpose.msra.mxu0 0.0
      %418 = vmatprep.subr.mxu0 0.0
      %419 = vmatpush1.xpose.msra.mxu0 0.0
      %420 = vmatprep.subr.mxu0 0.0
      %421 = vmatpush1.xpose.msra.mxu0 0.0
      %422 = vmatprep.subr.mxu0 0.0
      %423 = vmatpush1.xpose.msra.mxu0 0.0
      %424 = vmatprep.subr.mxu0 0.0
      %425 = vmatpush1.xpose.msra.mxu0 0.0
      %426 = vmatprep.subr.mxu0 0.0
      %427 = vmatpush1.xpose.msra.mxu0 0.0
      %428 = vmatprep.subr.mxu0 0.0
      %429 = vmatpush1.xpose.msra.mxu0 0.0
      %430 = vmatprep.subr.mxu0 0.0
      %431 = vmatpush1.xpose.msra.mxu0 0.0
      %432 = vmatprep.subr.mxu0 0.0
      %433 = vmatpush1.xpose.msra.mxu0 0.0
      %434 = vmatprep.subr.mxu0 0.0
      %435 = vmatpush1.xpose.msra.mxu0 0.0
      %436 = vmatprep.subr.mxu0 0.0
      %437 = vmatpush1.xpose.msra.mxu0 0.0
      %438 = vmatprep.subr.mxu0 0.0
      %439 = vmatpush1.xpose.msra.mxu0 0.0
      %440 = vmatprep.subr.mxu0 0.0
      %441 = vmatpush1.xpose.msra.mxu0 0.0
      %442 = vmatprep.subr.mxu0 0.0
      %443 = vmatpush1.xpose.msra.mxu0 0.0
      %444 = vmatprep.subr.mxu0 0.0
      %445 = vmatpush1.xpose.msra.mxu0 0.0
      %446 = vmatprep.mubr.f32.mxu0 0.0
      %447 = vmatmul.mubr.f32.gmra.mrb[0].mxu0 %v377
      %v448 = vpop.f32.mrb[0].mxu0
      %v449 = vadd.f32 0.0, %v448
      %v450 = vpop.f32.mrb[0].mxu0
      %451 = vdwg.mxu0
      %v453 = vsel %vm223, %v214, 0
      %v456 = vsel %vm223, %v218, 0
      %458 = vmatprep.subr.mxu0 0.0
      %459 = vmatpush1.xpose.msra.mxu0 %v456
      %460 = vmatprep.subr.mxu0 0.0
      %461 = vmatpush1.xpose.msra.mxu0 0.0
      %462 = vmatprep.subr.mxu0 0.0
      %463 = vmatpush1.xpose.msra.mxu0 0.0
      %464 = vmatprep.subr.mxu0 0.0
      %465 = vmatpush1.xpose.msra.mxu0 0.0
      %466 = vmatprep.subr.mxu0 0.0
      %467 = vmatpush1.xpose.msra.mxu0 0.0
      %468 = vmatprep.subr.mxu0 0.0
      %469 = vmatpush1.xpose.msra.mxu0 0.0
      %470 = vmatprep.subr.mxu0 0.0
      %471 = vmatpush1.xpose.msra.mxu0 0.0
      %472 = vmatprep.subr.mxu0 0.0
      %473 = vmatpush1.xpose.msra.mxu0 0.0
      %474 = vmatprep.subr.mxu0 0.0
      %475 = vmatpush1.xpose.msra.mxu0 0.0
      %476 = vmatprep.subr.mxu0 0.0
      %477 = vmatpush1.xpose.msra.mxu0 0.0
      %478 = vmatprep.subr.mxu0 0.0
      %479 = vmatpush1.xpose.msra.mxu0 0.0
      %480 = vmatprep.subr.mxu0 0.0
      %481 = vmatpush1.xpose.msra.mxu0 0.0
      %482 = vmatprep.subr.mxu0 0.0
      %483 = vmatpush1.xpose.msra.mxu0 0.0
      %484 = vmatprep.subr.mxu0 0.0
      %485 = vmatpush1.xpose.msra.mxu0 0.0
      %486 = vmatprep.subr.mxu0 0.0
      %487 = vmatpush1.xpose.msra.mxu0 0.0
      %488 = vmatprep.subr.mxu0 0.0
      %489 = vmatpush1.xpose.msra.mxu0 0.0
      %490 = vmatprep.subr.mxu0 0.0
      %491 = vmatpush1.xpose.msra.mxu0 0.0
      %492 = vmatprep.subr.mxu0 0.0
      %493 = vmatpush1.xpose.msra.mxu0 0.0
      %494 = vmatprep.subr.mxu0 0.0
      %495 = vmatpush1.xpose.msra.mxu0 0.0
      %496 = vmatprep.subr.mxu0 0.0
      %497 = vmatpush1.xpose.msra.mxu0 0.0
      %498 = vmatprep.subr.mxu0 0.0
      %499 = vmatpush1.xpose.msra.mxu0 0.0
      %500 = vmatprep.subr.mxu0 0.0
      %501 = vmatpush1.xpose.msra.mxu0 0.0
      %502 = vmatprep.subr.mxu0 0.0
      %503 = vmatpush1.xpose.msra.mxu0 0.0
      %504 = vmatprep.subr.mxu0 0.0
      %505 = vmatpush1.xpose.msra.mxu0 0.0
      %506 = vmatprep.subr.mxu0 0.0
      %507 = vmatpush1.xpose.msra.mxu0 0.0
      %508 = vmatprep.subr.mxu0 0.0
      %509 = vmatpush1.xpose.msra.mxu0 0.0
      %510 = vmatprep.subr.mxu0 0.0
      %511 = vmatpush1.xpose.msra.mxu0 0.0
      %512 = vmatprep.subr.mxu0 0.0
      %513 = vmatpush1.xpose.msra.mxu0 0.0
      %514 = vmatprep.subr.mxu0 0.0
      %515 = vmatpush1.xpose.msra.mxu0 0.0
      %516 = vmatprep.subr.mxu0 0.0
      %517 = vmatpush1.xpose.msra.mxu0 0.0
      %518 = vmatprep.subr.mxu0 0.0
      %519 = vmatpush1.xpose.msra.mxu0 0.0
      %520 = vmatprep.subr.mxu0 0.0
      %521 = vmatpush1.xpose.msra.mxu0 0.0
      %522 = vmatprep.mubr.f32.mxu0 0.0
      %523 = vmatmul.mubr.f32.gmra.mrb[0].mxu0 %v453
      %v524 = vpop.f32.mrb[0].mxu0
      %v525 = vadd.f32 0.0, %v524
      %v526 = vpop.f32.mrb[0].mxu0
      %527 = vdwg.mxu0
      %v528 = vsel %vm223, %v297, -inf
      %529 = vmax.xlane.f32.xlu0 %v528
      %v530 = vpop.xlane.xlu0 %529
      %v531 = vsel %vm223, %v373, -inf
      %532 = vmax.xlane.f32.xlu0 %v531
      %v533 = vpop.xlane.xlu0 %532
      %v534 = vsel %vm223, %v449, -inf
      %535 = vmax.xlane.f32.xlu0 %v534
      %v536 = vpop.xlane.xlu0 %535
      %v537 = vsel %vm223, %v525, -inf
      %538 = vmax.xlane.f32.xlu0 %v537
      %v539 = vpop.xlane.xlu0 %538
      %v540 = vsub.f32 %v297, %v530
      %v541 = vsub.f32 %v373, %v533
      %v542 = vsub.f32 %v449, %v536
      %v543 = vsub.f32 %v525, %v539
      %v544 = vmul.f32 %v540, 1.442695
      %v545 = vpow.pop %v544
      %v546 = vmul.f32 %v541, 1.442695
      %v547 = vpow.pop %v546
      %v548 = vmul.f32 %v542, 1.442695
      %v549 = vpow.pop %v548
      %v550 = vmul.f32 %v543, 1.442695
      %v551 = vpow.pop %v550
      %v552 = vsel %vm223, %v545, 0.0
      %553 = vadd.xlane.f32.xlu0 %v552
      %v554 = vpop.xlane.xlu0 %553
      %v555 = vsel %vm223, %v547, 0.0
      %556 = vadd.xlane.f32.xlu0 %v555
      %v557 = vpop.xlane.xlu0 %556
      %v558 = vsel %vm223, %v549, 0.0
      %559 = vadd.xlane.f32.xlu0 %v558
      %v560 = vpop.xlane.xlu0 %559
      %v561 = vsel %vm223, %v551, 0.0
      %562 = vadd.xlane.f32.xlu0 %v561
      %v563 = vpop.xlane.xlu0 %562
      %v564 = vrcp.pop %v554
      %v565 = vrcp.pop %v557
      %v566 = vrcp.pop %v560
      %v567 = vrcp.pop %v563
      %v568 = vmul.f32 %v545, %v564
      %v569 = vmul.f32 %v547, %v565
      %v570 = vmul.f32 %v549, %v566
      %v571 = vmul.f32 %v551, %v567
      %v573 = vsel %vm223, %v568, 0
      %575 = vmatprep.subr.mxu0 0.0
      %576 = vmatpush1.msra.mxu0 %v219
      %577 = vmatprep.subr.mxu0 0.0
      %578 = vmatpush1.msra.mxu0 0.0
      %579 = vmatprep.subr.mxu0 0.0
      %580 = vmatpush1.msra.mxu0 0.0
      %581 = vmatprep.subr.mxu0 0.0
      %582 = vmatpush1.msra.mxu0 0.0
      %583 = vmatprep.subr.mxu0 0.0
      %584 = vmatpush1.msra.mxu0 0.0
      %585 = vmatprep.subr.mxu0 0.0
      %586 = vmatpush1.msra.mxu0 0.0
      %587 = vmatprep.subr.mxu0 0.0
      %588 = vmatpush1.msra.mxu0 0.0
      %589 = vmatprep.subr.mxu0 0.0
      %590 = vmatpush1.msra.mxu0 0.0
      %591 = vmatprep.subr.mxu0 0.0
      %592 = vmatpush1.msra.mxu0 0.0
      %593 = vmatprep.subr.mxu0 0.0
      %594 = vmatpush1.msra.mxu0 0.0
      %595 = vmatprep.subr.mxu0 0.0
      %596 = vmatpush1.msra.mxu0 0.0
      %597 = vmatprep.subr.mxu0 0.0
      %598 = vmatpush1.msra.mxu0 0.0
      %599 = vmatprep.subr.mxu0 0.0
      %600 = vmatpush1.msra.mxu0 0.0
      %601 = vmatprep.subr.mxu0 0.0
      %602 = vmatpush1.msra.mxu0 0.0
      %603 = vmatprep.subr.mxu0 0.0
      %604 = vmatpush1.msra.mxu0 0.0
      %605 = vmatprep.subr.mxu0 0.0
      %606 = vmatpush1.msra.mxu0 0.0
      %607 = vmatprep.subr.mxu0 0.0
      %608 = vmatpush1.msra.mxu0 0.0
      %609 = vmatprep.subr.mxu0 0.0
      %610 = vmatpush1.msra.mxu0 0.0
      %611 = vmatprep.subr.mxu0 0.0
      %612 = vmatpush1.msra.mxu0 0.0
      %613 = vmatprep.subr.mxu0 0.0
      %614 = vmatpush1.msra.mxu0 0.0
      %615 = vmatprep.subr.mxu0 0.0
      %616 = vmatpush1.msra.mxu0 0.0
      %617 = vmatprep.subr.mxu0 0.0
      %618 = vmatpush1.msra.mxu0 0.0
      %619 = vmatprep.subr.mxu0 0.0
      %620 = vmatpush1.msra.mxu0 0.0
      %621 = vmatprep.subr.mxu0 0.0
      %622 = vmatpush1.msra.mxu0 0.0
      %623 = vmatprep.subr.mxu0 0.0
      %624 = vmatpush1.msra.mxu0 0.0
      %625 = vmatprep.subr.mxu0 0.0
      %626 = vmatpush1.msra.mxu0 0.0
      %627 = vmatprep.subr.mxu0 0.0
      %628 = vmatpush1.msra.mxu0 0.0
      %629 = vmatprep.subr.mxu0 0.0
      %630 = vmatpush1.msra.mxu0 0.0
      %631 = vmatprep.subr.mxu0 0.0
      %632 = vmatpush1.msra.mxu0 0.0
      %633 = vmatprep.subr.mxu0 0.0
      %634 = vmatpush1.msra.mxu0 0.0
      %635 = vmatprep.subr.mxu0 0.0
      %636 = vmatpush1.msra.mxu0 0.0
      %637 = vmatprep.subr.mxu0 0.0
      %638 = vmatpush1.msra.mxu0 0.0
      %639 = vmatprep.mubr.f32.mxu0 0.0
      %640 = vmatmul.mubr.f32.gmra.mrb[0].mxu0 %v573
      %v641 = vpop.f32.mrb[0].mxu0
      %v642 = vadd.f32 0.0, %v641
      %v643 = vpop.f32.mrb[0].mxu0
      %644 = vdwg.mxu0
      %v646 = vsel %vm223, %v569, 0
      %648 = vmatprep.subr.mxu0 0.0
      %649 = vmatpush1.msra.mxu0 %v220
      %650 = vmatprep.subr.mxu0 0.0
      %651 = vmatpush1.msra.mxu0 0.0
      %652 = vmatprep.subr.mxu0 0.0
      %653 = vmatpush1.msra.mxu0 0.0
      %654 = vmatprep.subr.mxu0 0.0
      %655 = vmatpush1.msra.mxu0 0.0
      %656 = vmatprep.subr.mxu0 0.0
      %657 = vmatpush1.msra.mxu0 0.0
      %658 = vmatprep.subr.mxu0 0.0
      %659 = vmatpush1.msra.mxu0 0.0
      %660 = vmatprep.subr.mxu0 0.0
      %661 = vmatpush1.msra.mxu0 0.0
      %662 = vmatprep.subr.mxu0 0.0
      %663 = vmatpush1.msra.mxu0 0.0
      %664 = vmatprep.subr.mxu0 0.0
      %665 = vmatpush1.msra.mxu0 0.0
      %666 = vmatprep.subr.mxu0 0.0
      %667 = vmatpush1.msra.mxu0 0.0
      %668 = vmatprep.subr.mxu0 0.0
      %669 = vmatpush1.msra.mxu0 0.0
      %670 = vmatprep.subr.mxu0 0.0
      %671 = vmatpush1.msra.mxu0 0.0
      %672 = vmatprep.subr.mxu0 0.0
      %673 = vmatpush1.msra.mxu0 0.0
      %674 = vmatprep.subr.mxu0 0.0
      %675 = vmatpush1.msra.mxu0 0.0
      %676 = vmatprep.subr.mxu0 0.0
      %677 = vmatpush1.msra.mxu0 0.0
      %678 = vmatprep.subr.mxu0 0.0
      %679 = vmatpush1.msra.mxu0 0.0
      %680 = vmatprep.subr.mxu0 0.0
      %681 = vmatpush1.msra.mxu0 0.0
      %682 = vmatprep.subr.mxu0 0.0
      %683 = vmatpush1.msra.mxu0 0.0
      %684 = vmatprep.subr.mxu0 0.0
      %685 = vmatpush1.msra.mxu0 0.0
      %686 = vmatprep.subr.mxu0 0.0
      %687 = vmatpush1.msra.mxu0 0.0
      %688 = vmatprep.subr.mxu0 0.0
      %689 = vmatpush1.msra.mxu0 0.0
      %690 = vmatprep.subr.mxu0 0.0
      %691 = vmatpush1.msra.mxu0 0.0
      %692 = vmatprep.subr.mxu0 0.0
      %693 = vmatpush1.msra.mxu0 0.0
      %694 = vmatprep.subr.mxu0 0.0
      %695 = vmatpush1.msra.mxu0 0.0
      %696 = vmatprep.subr.mxu0 0.0
      %697 = vmatpush1.msra.mxu0 0.0
      %698 = vmatprep.subr.mxu0 0.0
      %699 = vmatpush1.msra.mxu0 0.0
      %700 = vmatprep.subr.mxu0 0.0
      %701 = vmatpush1.msra.mxu0 0.0
      %702 = vmatprep.subr.mxu0 0.0
      %703 = vmatpush1.msra.mxu0 0.0
      %704 = vmatprep.subr.mxu0 0.0
      %705 = vmatpush1.msra.mxu0 0.0
      %706 = vmatprep.subr.mxu0 0.0
      %707 = vmatpush1.msra.mxu0 0.0
      %708 = vmatprep.subr.mxu0 0.0
      %709 = vmatpush1.msra.mxu0 0.0
      %710 = vmatprep.subr.mxu0 0.0
      %711 = vmatpush1.msra.mxu0 0.0
      %712 = vmatprep.mubr.f32.mxu0 0.0
      %713 = vmatmul.mubr.f32.gmra.mrb[0].mxu0 %v646
      %v714 = vpop.f32.mrb[0].mxu0
      %v715 = vadd.f32 0.0, %v714
      %v716 = vpop.f32.mrb[0].mxu0
      %717 = vdwg.mxu0
      %v719 = vsel %vm223, %v570, 0
      %721 = vmatprep.subr.mxu0 0.0
      %722 = vmatpush1.msra.mxu0 %v221
      %723 = vmatprep.subr.mxu0 0.0
      %724 = vmatpush1.msra.mxu0 0.0
      %725 = vmatprep.subr.mxu0 0.0
      %726 = vmatpush1.msra.mxu0 0.0
      %727 = vmatprep.subr.mxu0 0.0
      %728 = vmatpush1.msra.mxu0 0.0
      %729 = vmatprep.subr.mxu0 0.0
      %730 = vmatpush1.msra.mxu0 0.0
      %731 = vmatprep.subr.mxu0 0.0
      %732 = vmatpush1.msra.mxu0 0.0
      %733 = vmatprep.subr.mxu0 0.0
      %734 = vmatpush1.msra.mxu0 0.0
      %735 = vmatprep.subr.mxu0 0.0
      %736 = vmatpush1.msra.mxu0 0.0
      %737 = vmatprep.subr.mxu0 0.0
      %738 = vmatpush1.msra.mxu0 0.0
      %739 = vmatprep.subr.mxu0 0.0
      %740 = vmatpush1.msra.mxu0 0.0
      %741 = vmatprep.subr.mxu0 0.0
      %742 = vmatpush1.msra.mxu0 0.0
      %743 = vmatprep.subr.mxu0 0.0
      %744 = vmatpush1.msra.mxu0 0.0
      %745 = vmatprep.subr.mxu0 0.0
      %746 = vmatpush1.msra.mxu0 0.0
      %747 = vmatprep.subr.mxu0 0.0
      %748 = vmatpush1.msra.mxu0 0.0
      %749 = vmatprep.subr.mxu0 0.0
      %750 = vmatpush1.msra.mxu0 0.0
      %751 = vmatprep.subr.mxu0 0.0
      %752 = vmatpush1.msra.mxu0 0.0
      %753 = vmatprep.subr.mxu0 0.0
      %754 = vmatpush1.msra.mxu0 0.0
      %755 = vmatprep.subr.mxu0 0.0
      %756 = vmatpush1.msra.mxu0 0.0
      %757 = vmatprep.subr.mxu0 0.0
      %758 = vmatpush1.msra.mxu0 0.0
      %759 = vmatprep.subr.mxu0 0.0
      %760 = vmatpush1.msra.mxu0 0.0
      %761 = vmatprep.subr.mxu0 0.0
      %762 = vmatpush1.msra.mxu0 0.0
      %763 = vmatprep.subr.mxu0 0.0
      %764 = vmatpush1.msra.mxu0 0.0
      %765 = vmatprep.subr.mxu0 0.0
      %766 = vmatpush1.msra.mxu0 0.0
      %767 = vmatprep.subr.mxu0 0.0
      %768 = vmatpush1.msra.mxu0 0.0
      %769 = vmatprep.subr.mxu0 0.0
      %770 = vmatpush1.msra.mxu0 0.0
      %771 = vmatprep.subr.mxu0 0.0
      %772 = vmatpush1.msra.mxu0 0.0
      %773 = vmatprep.subr.mxu0 0.0
      %774 = vmatpush1.msra.mxu0 0.0
      %775 = vmatprep.subr.mxu0 0.0
      %776 = vmatpush1.msra.mxu0 0.0
      %777 = vmatprep.subr.mxu0 0.0
      %778 = vmatpush1.msra.mxu0 0.0
      %779 = vmatprep.subr.mxu0 0.0
      %780 = vmatpush1.msra.mxu0 0.0
      %781 = vmatprep.subr.mxu0 0.0
      %782 = vmatpush1.msra.mxu0 0.0
      %783 = vmatprep.subr.mxu0 0.0
      %784 = vmatpush1.msra.mxu0 0.0
      %785 = vmatprep.mubr.f32.mxu0 0.0
      %786 = vmatmul.mubr.f32.gmra.mrb[0].mxu0 %v719
      %v787 = vpop.f32.mrb[0].mxu0
      %v788 = vadd.f32 0.0, %v787
      %v789 = vpop.f32.mrb[0].mxu0
      %790 = vdwg.mxu0
      %v792 = vsel %vm223, %v571, 0
      %794 = vmatprep.subr.mxu0 0.0
      %795 = vmatpush1.msra.mxu0 %v222
      %796 = vmatprep.subr.mxu0 0.0
      %797 = vmatpush1.msra.mxu0 0.0
      %798 = vmatprep.subr.mxu0 0.0
      %799 = vmatpush1.msra.mxu0 0.0
      %800 = vmatprep.subr.mxu0 0.0
      %801 = vmatpush1.msra.mxu0 0.0
      %802 = vmatprep.subr.mxu0 0.0
      %803 = vmatpush1.msra.mxu0 0.0
      %804 = vmatprep.subr.mxu0 0.0
      %805 = vmatpush1.msra.mxu0 0.0
      %806 = vmatprep.subr.mxu0 0.0
      %807 = vmatpush1.msra.mxu0 0.0
      %808 = vmatprep.subr.mxu0 0.0
      %809 = vmatpush1.msra.mxu0 0.0
      %810 = vmatprep.subr.mxu0 0.0
      %811 = vmatpush1.msra.mxu0 0.0
      %812 = vmatprep.subr.mxu0 0.0
      %813 = vmatpush1.msra.mxu0 0.0
      %814 = vmatprep.subr.mxu0 0.0
      %815 = vmatpush1.msra.mxu0 0.0
      %816 = vmatprep.subr.mxu0 0.0
      %817 = vmatpush1.msra.mxu0 0.0
      %818 = vmatprep.subr.mxu0 0.0
      %819 = vmatpush1.msra.mxu0 0.0
      %820 = vmatprep.subr.mxu0 0.0
      %821 = vmatpush1.msra.mxu0 0.0
      %822 = vmatprep.subr.mxu0 0.0
      %823 = vmatpush1.msra.mxu0 0.0
      %824 = vmatprep.subr.mxu0 0.0
      %825 = vmatpush1.msra.mxu0 0.0
      %826 = vmatprep.subr.mxu0 0.0
      %827 = vmatpush1.msra.mxu0 0.0
      %828 = vmatprep.subr.mxu0 0.0
      %829 = vmatpush1.msra.mxu0 0.0
      %830 = vmatprep.subr.mxu0 0.0
      %831 = vmatpush1.msra.mxu0 0.0
      %832 = vmatprep.subr.mxu0 0.0
      %833 = vmatpush1.msra.mxu0 0.0
      %834 = vmatprep.subr.mxu0 0.0
      %835 = vmatpush1.msra.mxu0 0.0
      %836 = vmatprep.subr.mxu0 0.0
      %837 = vmatpush1.msra.mxu0 0.0
      %838 = vmatprep.subr.mxu0 0.0
      %839 = vmatpush1.msra.mxu0 0.0
      %840 = vmatprep.subr.mxu0 0.0
      %841 = vmatpush1.msra.mxu0 0.0
      %842 = vmatprep.subr.mxu0 0.0
      %843 = vmatpush1.msra.mxu0 0.0
      %844 = vmatprep.subr.mxu0 0.0
      %845 = vmatpush1.msra.mxu0 0.0
      %846 = vmatprep.subr.mxu0 0.0
      %847 = vmatpush1.msra.mxu0 0.0
      %848 = vmatprep.subr.mxu0 0.0
      %849 = vmatpush1.msra.mxu0 0.0
      %850 = vmatprep.subr.mxu0 0.0
      %851 = vmatpush1.msra.mxu0 0.0
      %852 = vmatprep.subr.mxu0 0.0
      %853 = vmatpush1.msra.mxu0 0.0
      %854 = vmatprep.subr.mxu0 0.0
      %855 = vmatpush1.msra.mxu0 0.0
      %856 = vmatprep.subr.mxu0 0.0
      %857 = vmatpush1.msra.mxu0 0.0
      %858 = vmatprep.mubr.f32.mxu0 0.0
      %859 = vmatmul.mubr.f32.gmra.mrb[0].mxu0 %v792
      %v860 = vpop.f32.mrb[0].mxu0
      %v861 = vadd.f32 0.0, %v860
      %v862 = vpop.f32.mrb[0].mxu0
      %863 = vdwg.mxu0
      %864 = vst.msk [vmem:[%s210] sm:$0xff] %vm223, %v642
      %865 = vst.msk [vmem:[%s210 + $0x8] sm:$0xff] %vm223, %v715
      %866 = vst.msk [vmem:[%s210 + $0x10] sm:$0xff] %vm223, %v788
      %867 = vst.msk [vmem:[%s210 + $0x18] sm:$0xff] %vm223, %v861
      %p868 = scmp.lt.s32.totalorder %s14, 1
      %s869 = scalar_select %p868, %s14, 1
      %s870 = smul.addr %s869, 4
      %s871 = smul.addr %s870, 8
      %s872 = scalar_lea.vmem %s3, %s871
      // Predicated region
      $region33: #{decoder_layer.15} parent=31 // pred_check
        %p873 = pneg %p110
      $region34: #{decoder_layer.15} parent=31 // pred_check_branch
        %875 = sbr.rel (%p873) target = $region36
      $region35: #{decoder_layer.15} parent=31 // pred_region
        _
      $region36: #{decoder_layer.15} parent=31 // pred_fallthru
        _
    $region32: #{decoder_layer.15} parent=5 // pred_fallthru
      _
    %p876 = scmp.le.s32.totalorder 2, %s9
    // Predicated region
    $region37: #{decoder_layer.15} parent=5 // pred_check
      %p877 = pneg %p876
    $region38: #{decoder_layer.15} parent=5 // pred_check_branch
      %879 = sbr.rel (%p877) target = $region40
    $region39: #{decoder_layer.15} parent=5 // pred_region
      %s880 = ssub.s32 %s9, 2
      // Predicated region
      $region41: #{decoder_layer.15} parent=39 // pred_check
        %p881 = pneg %p116
      $region42: #{decoder_layer.15} parent=39 // pred_check_branch
        %883 = sbr.rel (%p881) target = $region44
      $region43: #{decoder_layer.15} parent=39 // pred_region
        %p884 = scmp.lt.s32.totalorder %s15, 1
        %s885 = scalar_select %p884, %s15, 1
        %s886 = smul.addr %s885, 4
        %s887 = smul.addr %s886, 8
        %s888 = scalar_lea.vmem %s3, %s887
      $region44: #{decoder_layer.15} parent=39 // pred_fallthru
        _
    $region40: #{decoder_layer.15} parent=5 // pred_fallthru
      _
  $region6: #{decoder_layer.15} parent=0 // loop_footer
    %s13 = sadd.s32 1, %s9
  $region7: #{decoder_layer.15} parent=0 // loop_footer_branch
    %8 = sbr.rel target = $region3
  $region8: #{decoder_layer.15} parent=0 // loop_exit
    _

</llo_original>
